<compile_context>
chip_gen: v7x
topology: tpu7x:2x2x1
jax: 0.10.0
libtpu: 0.0.40
codegen_flags: <defaults>
</compile_context>

<pallas_src>
import math
from collections import OrderedDict

import jax
import jax.numpy as jnp
from jax import lax
from jax.experimental import pallas as pl
from jax.experimental.pallas import tpu as pltpu

# ----------------------------- config ---------------------------------------
IMG_SZ = 64
PATCH = 16
GRID_HW = IMG_SZ // PATCH            # 4
N_TOKENS = GRID_HW * GRID_HW         # 16
IN_CH = 3
PATCH_DIM = IN_CH * PATCH * PATCH    # 768
EMBED_DIM = 128
NUM_HEADS = 4
HEAD_DIM = EMBED_DIM // NUM_HEADS    # 32
MLP_DIM = 4 * EMBED_DIM              # 512
DEPTH = 2
LN_EPS = 1e-6

_F32 = jnp.float32
_BF16 = jnp.bfloat16


# --------------------------- shared math (kernel + reference) ----------------
def _layernorm(x, gamma, beta):
    mu = jnp.mean(x, axis=-1, keepdims=True)
    xc = x - mu
    var = jnp.mean(xc * xc, axis=-1, keepdims=True)
    inv = lax.rsqrt(var + LN_EPS)
    return xc * inv * gamma + beta


def _gelu_exact(x):
    # PyTorch nn.GELU default (erf-based, exact).  On v5e the erf polynomial
    # loads the f32 VALU; switching to tanh-approx GELU (EUP) is a numerics
    # change vs. PyTorch, so we keep erf for parity.
    return 0.5 * x * (1.0 + lax.erf(x * (1.0 / math.sqrt(2.0))))


def _dot_bf16(a, b):
    # MXU matmul: bf16 operands, f32 accumulate.
    return jnp.dot(a.astype(_BF16), b.astype(_BF16),
                   preferred_element_type=_F32)


def _attention(q, k, v, w_o, b_o, recip):
    """Multi-head self-attention + output projection on packed (R, D) rows.

    q is pre-scaled by 1/sqrt(head_dim) (folded into W_qkv outside the
    kernel).  Attention is block-diagonal over the images packed into the R
    rows: the image/batch dimension is handled with one 3-D batched einsum
    per head (a single MXU stream over all images); heads stay a small static
    unroll so the lane axis is never relayouted into a batch dim in-kernel.
    Per-head outputs are concatenated along the lane axis and projected with
    a single K=EMBED_DIM matmul against W_o.
    """
    rows = q.shape[0]
    bc = rows // N_TOKENS

    # One bf16 cast per tensor (not per head).
    q16 = q.astype(_BF16)
    k16 = k.astype(_BF16)
    v16 = v.astype(_BF16)

    def heads(t):
        # (R, hd) -> (Bc, N, hd); row split at a tile-friendly boundary.
        return t.reshape(bc, N_TOKENS, HEAD_DIM)

    head_outs = []
    for hi in range(NUM_HEADS):                               # small static unroll
        cs = slice(hi * HEAD_DIM, (hi + 1) * HEAD_DIM)
        qh, kh, vh = heads(q16[:, cs]), heads(k16[:, cs]), heads(v16[:, cs])
        s = jnp.einsum("bqd,bkd->bqk", qh, kh,
                       preferred_element_type=_F32)           # (Bc, N, N)
        s = s - jnp.max(s, axis=-1, keepdims=True)
        p = jnp.exp(s)
        p = p * recip(jnp.sum(p, axis=-1, keepdims=True))
        oh = jnp.einsum("bqk,bkd->bqd", p.astype(_BF16), vh,
                        preferred_element_type=_F32)          # (Bc, N, hd)
        head_outs.append(oh.reshape(rows, HEAD_DIM))
    o = jnp.concatenate(head_outs, axis=-1)                   # (R, D) lane concat
    return _dot_bf16(o, w_o) + b_o                            # single K=D matmul


def _encoder_block(x, ln1_g, ln1_b, w_qkv, b_qkv, w_o, b_o,
                   ln2_g, ln2_b, w_fc1, b_fc1, w_fc2, b_fc2, recip):
    """One pre-LN transformer encoder block on packed (R, D) tokens."""
    h = _layernorm(x, ln1_g, ln1_b)
    qkv = _dot_bf16(h, w_qkv) + b_qkv                         # (R, 3D)
    q = qkv[:, 0 * EMBED_DIM:1 * EMBED_DIM]                   # pre-scaled Q
    k = qkv[:, 1 * EMBED_DIM:2 * EMBED_DIM]
    v = qkv[:, 2 * EMBED_DIM:3 * EMBED_DIM]
    x = x + _attention(q, k, v, w_o, b_o, recip)

    h2 = _layernorm(x, ln2_g, ln2_b)
    # TODO(synk): at ViT-B/16 production size, token(M)-tile this MLP
    # (pltpu.emit_pipeline over ~256-row chunks) instead of materializing the
    # full (R, MLP_DIM) f32 GELU intermediate; irrelevant at this toy size.
    m = _gelu_exact(_dot_bf16(h2, w_fc1) + b_fc1)
    m = _dot_bf16(m, w_fc2) + b_fc2
    return x + m


# --------------------------- kernel 1: patch embed ---------------------------
def patch_embed_kernel(xp_ref, pw_ref, pb_ref, pos_ref, o_ref):
    tok = _dot_bf16(xp_ref[...], pw_ref[...]) + pb_ref[...]   # (B*N, D)
    b = tok.shape[0] // N_TOKENS
    # Broadcast-add the (N, D) positional table; 16 rows is a multiple of the
    # 8-sublane tile so the reshape does not cross tile boundaries.
    tok = tok.reshape(b, N_TOKENS, EMBED_DIM) + pos_ref[...][None, :, :]
    o_ref[...] = tok.reshape(b * N_TOKENS, EMBED_DIM)


def patch_embed_call(xp, patch_w, patch_b, pos):
    bn = xp.shape[0]
    return pl.pallas_call(
        patch_embed_kernel,
        out_shape=jax.ShapeDtypeStruct((bn, EMBED_DIM), _F32),
        grid=(1,),
        in_specs=[
            pl.BlockSpec((bn, PATCH_DIM), lambda i: (0, 0)),
            pl.BlockSpec((PATCH_DIM, EMBED_DIM), lambda i: (0, 0)),
            pl.BlockSpec((1, EMBED_DIM), lambda i: (0, 0)),
            pl.BlockSpec((N_TOKENS, EMBED_DIM), lambda i: (0, 0)),
        ],
        out_specs=pl.BlockSpec((bn, EMBED_DIM), lambda i: (0, 0)),
        compiler_params=pltpu.CompilerParams(
            dimension_semantics=("arbitrary",)),
    )(xp, patch_w, patch_b, pos)


# ------------------- kernel 2: fused transformer stack -----------------------
def vit_blocks_kernel(tok_hbm,                                  # pl.ANY (HBM)
                      l1g_ref, l1b_ref, wqkv_ref, bqkv_ref, wo_ref, bo_ref,
                      l2g_ref, l2b_ref, w1_ref, bm1_ref, w2_ref, bm2_ref,
                      ng_ref, nb_ref,
                      o_ref,
                      tok_ref, dma_sem):
    """grid = (token_chunk [parallel], layer [arbitrary/sequential]).

    Layer 0 DMAs this chunk's tokens from HBM into the resident VMEM scratch;
    the last layer applies the final LayerNorm and writes the output block.
    """
    c = pl.program_id(0)
    l = pl.program_id(1)
    rows = tok_ref.shape[0]

    @pl.when(l == 0)
    def _():
        start = pl.multiple_of(c * rows, rows)
        cp = pltpu.make_async_copy(tok_hbm.at[pl.ds(start, rows)],
                                   tok_ref, dma_sem)
        cp.start()
        cp.wait()

    recip = lambda t: pl.reciprocal(t, approx=True)            # EUP, not VALU div

    x = _encoder_block(
        tok_ref[...],
        l1g_ref[...], l1b_ref[...], wqkv_ref[...], bqkv_ref[...],
        wo_ref[...], bo_ref[...], l2g_ref[...], l2b_ref[...],
        w1_ref[...], bm1_ref[...], w2_ref[...], bm2_ref[...],
        recip)
    tok_ref[...] = x

    @pl.when(l == pl.num_programs(1) - 1)
    def _():
        o_ref[...] = _layernorm(x, ng_ref[...], nb_ref[...]).astype(o_ref.dtype)


def vit_blocks_call(prep, tok, *, num_chunks=1):
    """tok: (B*N, D) f32 -> (B*N, D) f32 after DEPTH blocks + final LN.

    num_chunks splits the token rows along a leading "parallel" grid axis
    (per-chunk resident scratch).  On v7x (2 TensorCores) use num_chunks>=2
    with real batches; here num_chunks=1 keeps matmul M maximal at B*N=32.
    """
    bn = tok.shape[0]
    assert bn % num_chunks == 0
    rows = bn // num_chunks
    assert rows % N_TOKENS == 0

    def const_spec(shape2d):
        # Only the two tiny final-norm vectors remain layer-constant inputs;
        # everything bulky was moved out of per-layer residency structurally.
        # (At production size, additionally pass pipeline_mode=pl.Buffered(1)
        # here and on out_specs to drop the second pipeline buffer.)
        return pl.BlockSpec(shape2d, lambda c, l: (0, 0))

    def layer_spec(shape2d):
        # Stacked (DEPTH, ...) weight indexed by the layer axis; leading layer
        # dim squeezed so the kernel sees a 2-D tile.  Default double-buffering
        # prefetches layer l+1 weights behind layer l compute.
        return pl.BlockSpec((None,) + shape2d, lambda c, l: (l, 0, 0))

    return pl.pallas_call(
        vit_blocks_kernel,
        out_shape=jax.ShapeDtypeStruct((bn, EMBED_DIM), _F32),
        grid=(num_chunks, DEPTH),
        in_specs=[
            pl.BlockSpec(memory_space=pl.ANY),             # tokens (stay in HBM)
            layer_spec((1, EMBED_DIM)),                    # ln1 gamma
            layer_spec((1, EMBED_DIM)),                    # ln1 beta
            layer_spec((EMBED_DIM, 3 * EMBED_DIM)),        # W_qkv (bf16)
            layer_spec((1, 3 * EMBED_DIM)),                # b_qkv
            layer_spec((EMBED_DIM, EMBED_DIM)),            # W_o (bf16)
            layer_spec((1, EMBED_DIM)),                    # b_o
            layer_spec((1, EMBED_DIM)),                    # ln2 gamma
            layer_spec((1, EMBED_DIM)),                    # ln2 beta
            layer_spec((EMBED_DIM, MLP_DIM)),              # W_fc1 (bf16)
            layer_spec((1, MLP_DIM)),                      # b_fc1
            layer_spec((MLP_DIM, EMBED_DIM)),              # W_fc2 (bf16)
            layer_spec((1, EMBED_DIM)),                    # b_fc2
            const_spec((1, EMBED_DIM)),                    # final norm gamma
            const_spec((1, EMBED_DIM)),                    # final norm beta
        ],
        out_specs=pl.BlockSpec((rows, EMBED_DIM), lambda c, l: (c, 0)),
        scratch_shapes=[pltpu.VMEM((rows, EMBED_DIM), _F32),   # resident tokens
                        pltpu.SemaphoreType.DMA],
        compiler_params=pltpu.CompilerParams(
            dimension_semantics=("parallel", "arbitrary"),
            # NOTE: production ViT-B/16 budgets: ~64 MiB on v6e (128 MiB
            # physical), ~48-56 MiB on v7x (64 MiB physical; if still over,
            # K-tile the MLP weights or single-buffer the largest weight).
            vmem_limit_bytes=32 * 1024 * 1024),
    )(tok, prep["ln1_g"], prep["ln1_b"], prep["w_qkv"], prep["b_qkv"],
      prep["w_o"], prep["b_o"], prep["ln2_g"], prep["ln2_b"],
      prep["w_fc1"], prep["b_fc1"], prep["w_fc2"], prep["b_fc2"],
      prep["norm_g"], prep["norm_b"])


# ----------------------------- parameter init ---------------------------------
def init_params(key):
    def nrm(k, shape, scale=0.02):
        return scale * jax.random.normal(k, shape, dtype=_F32)

    keys = jax.random.split(key, 4 + DEPTH * 4)
    params = {
        # conv(3,16,16)->D flattened to (PATCH_DIM, D) with (c, ph, pw) order
        "patch_w": nrm(keys[0], (PATCH_DIM, EMBED_DIM)),
        "patch_b": jnp.zeros((1, EMBED_DIM), _F32),
        "pos": nrm(keys[1], (N_TOKENS, EMBED_DIM)),
        "norm_g": jnp.ones((1, EMBED_DIM), _F32),
        "norm_b": jnp.zeros((1, EMBED_DIM), _F32),
        "blocks": [],
    }
    for d in range(DEPTH):
        k0, k1, k2, k3 = keys[4 + 4 * d: 4 + 4 * d + 4]
        params["blocks"].append({
            "ln1_g": jnp.ones((1, EMBED_DIM), _F32),
            "ln1_b": jnp.zeros((1, EMBED_DIM), _F32),
            "w_qkv": nrm(k0, (EMBED_DIM, 3 * EMBED_DIM)),
            "b_qkv": jnp.zeros((1, 3 * EMBED_DIM), _F32),
            "w_o": nrm(k1, (EMBED_DIM, EMBED_DIM)),
            "b_o": jnp.zeros((1, EMBED_DIM), _F32),
            "ln2_g": jnp.ones((1, EMBED_DIM), _F32),
            "ln2_b": jnp.zeros((1, EMBED_DIM), _F32),
            "w_fc1": nrm(k2, (EMBED_DIM, MLP_DIM)),
            "b_fc1": jnp.zeros((1, MLP_DIM), _F32),
            "w_fc2": nrm(k3, (MLP_DIM, EMBED_DIM)),
            "b_fc2": jnp.zeros((1, EMBED_DIM), _F32),
        })
    return params


def prepare_weights(params):
    """Stack per-block weights along a layer axis, fold 1/sqrt(head_dim) into
    the Q columns of W_qkv/b_qkv (outside the kernel), cast matmul weights to
    bf16 (biases / LN params stay f32)."""
    scale = 1.0 / math.sqrt(HEAD_DIM)

    def stack(name):
        return jnp.stack([blk[name] for blk in params["blocks"]], axis=0)

    w_qkv = stack("w_qkv")
    b_qkv = stack("b_qkv")
    w_qkv = w_qkv.at[:, :, :EMBED_DIM].multiply(scale)
    b_qkv = b_qkv.at[:, :, :EMBED_DIM].multiply(scale)

    return {
        # TODO(synk): with the real MAE checkpoint, re-validate the bf16 patch
        # embed against the f32 PyTorch Conv2d (largest single precision loss).
        "patch_w": params["patch_w"].astype(_BF16),
        "patch_b": params["patch_b"],
        "pos": params["pos"],
        "norm_g": params["norm_g"],
        "norm_b": params["norm_b"],
        "ln1_g": stack("ln1_g"), "ln1_b": stack("ln1_b"),
        "w_qkv": w_qkv.astype(_BF16), "b_qkv": b_qkv,
        "w_o": stack("w_o").astype(_BF16), "b_o": stack("b_o"),
        "ln2_g": stack("ln2_g"), "ln2_b": stack("ln2_b"),
        "w_fc1": stack("w_fc1").astype(_BF16), "b_fc1": stack("b_fc1"),
        "w_fc2": stack("w_fc2").astype(_BF16), "b_fc2": stack("b_fc2"),
    }


# ----------------------------- forward ----------------------------------------
def patchify(x):
    # NCHW -> (B, N, C*ph*pw) with (c, ph, pw) ordering == flattened conv weight
    B, C, H, W = x.shape
    gh, gw = H // PATCH, W // PATCH
    x = x.reshape(B, C, gh, PATCH, gw, PATCH)
    x = x.transpose(0, 2, 4, 1, 3, 5)
    return x.reshape(B, gh * gw, C * PATCH * PATCH)


def vit_backbone_forward(prep, x, output_layers=None):
    """Equivalent of ViT_Backone.forward.  x: (B, 3, IMG_SZ, IMG_SZ) NCHW."""
    B = x.shape[0]
    xp = patchify(x.astype(_F32)).reshape(B * N_TOKENS, PATCH_DIM)
    tok0 = patch_embed_call(xp, prep["patch_w"], prep["patch_b"], prep["pos"])
    tok = vit_blocks_call(prep, tok0)                         # (B*N, D)

    # x.permute(0, 2, 1).reshape(b, c, img/16, img/16)
    feat = tok.reshape(B, N_TOKENS, EMBED_DIM).transpose(0, 2, 1)
    feat = feat.reshape(B, EMBED_DIM, GRID_HW, GRID_HW)
    outputs = OrderedDict()
    outputs["layer3"] = feat
    return outputs


# ------------------------- precision-matched reference -------------------------
def reference_forward(prep, xp):
    """Pure-JAX reference using the same prepared weights and the same bf16
    dot-operand precision (softmax uses exact division)."""
    batch = xp.shape[0] // N_TOKENS
    recip = lambda t: 1.0 / t
    tok = _dot_bf16(xp, prep["patch_w"]) + prep["patch_b"]
    tok = (tok.reshape(batch, N_TOKENS, EMBED_DIM)
           + prep["pos"][None]).reshape(batch * N_TOKENS, EMBED_DIM)
    for d in range(DEPTH):
        tok = _encoder_block(
            tok,
            prep["ln1_g"][d], prep["ln1_b"][d],
            prep["w_qkv"][d], prep["b_qkv"][d],
            prep["w_o"][d], prep["b_o"][d],
            prep["ln2_g"][d], prep["ln2_b"][d],
            prep["w_fc1"][d], prep["b_fc1"][d],
            prep["w_fc2"][d], prep["b_fc2"][d],
            recip)
    return _layernorm(tok, prep["norm_g"], prep["norm_b"])


# ------------------------------- main ------------------------------------------
if __name__ == "__main__":
    BATCH = 2
    key = jax.random.PRNGKey(0)
    kp, kx = jax.random.split(key)
    params = init_params(kp)
    prep = prepare_weights(params)
    x = jax.random.normal(kx, (BATCH, IN_CH, IMG_SZ, IMG_SZ), dtype=_F32)

    fwd = jax.jit(lambda p, xx: vit_backbone_forward(p, xx)["layer3"])
    feat = jax.block_until_ready(fwd(prep, x))
    assert feat.shape == (BATCH, EMBED_DIM, GRID_HW, GRID_HW)
    assert bool(jnp.all(jnp.isfinite(feat)))

    # Correctness gate vs. precision-matched pure-JAX reference (only
    # differences: approx reciprocal in softmax + op ordering).
    xp = patchify(x).reshape(BATCH * N_TOKENS, PATCH_DIM)
    ref_tok = reference_forward(prep, xp)
    ref_feat = ref_tok.reshape(BATCH, N_TOKENS, EMBED_DIM).transpose(0, 2, 1)
    ref_feat = ref_feat.reshape(BATCH, EMBED_DIM, GRID_HW, GRID_HW)
    max_diff = float(jnp.max(jnp.abs(feat - ref_feat)))
    assert max_diff < 5e-2, f"kernel/reference mismatch: max_diff={max_diff}"

    print("KERNEL_OK")
</pallas_src>

<mosaic_0001>
module attributes {stable_mosaic.version = 11 : i64} {
  func.func @patch_embed_kernel(%arg0: i32, %arg1: memref<32x768xf32, #tpu.memory_space<vmem>>, %arg2: memref<768x128xbf16, #tpu.memory_space<vmem>>, %arg3: memref<1x128xf32, #tpu.memory_space<vmem>>, %arg4: memref<16x128xf32, #tpu.memory_space<vmem>>, %arg5: memref<32x128xf32, #tpu.memory_space<vmem>>) attributes {dimension_semantics = [#tpu.dimension_semantics<arbitrary>], iteration_bounds = array<i64: 1>, scalar_prefetch = 0 : i64, scratch_operands = 0 : i64, tpu.core_type = #tpu.core_type<tc>, window_params = [{pipeline_mode = #tpu.pipeline_mode<synchronous>, transform_indices = @transform_0, window_bounds = array<i64: 32, 768>}, {pipeline_mode = #tpu.pipeline_mode<synchronous>, transform_indices = @transform_1, window_bounds = array<i64: 768, 128>}, {pipeline_mode = #tpu.pipeline_mode<synchronous>, transform_indices = @transform_2, window_bounds = array<i64: 1, 128>}, {pipeline_mode = #tpu.pipeline_mode<synchronous>, transform_indices = @transform_3, window_bounds = array<i64: 16, 128>}, {pipeline_mode = #tpu.pipeline_mode<synchronous>, transform_indices = @transform_4, window_bounds = array<i64: 32, 128>}]} {
    %c0 = arith.constant 0 : index
    %c0_0 = arith.constant 0 : index
    %0 = vector.load %arg1[%c0, %c0_0] : memref<32x768xf32, #tpu.memory_space<vmem>>, vector<32x768xf32>
    %c0_1 = arith.constant 0 : index
    %c0_2 = arith.constant 0 : index
    %1 = vector.load %arg2[%c0_1, %c0_2] : memref<768x128xbf16, #tpu.memory_space<vmem>>, vector<768x128xbf16>
    %2 = arith.truncf %0 : vector<32x768xf32> to vector<32x768xbf16>
    %cst = arith.constant dense<0.000000e+00> : vector<32x128xf32>
    %3 = tpu.matmul %2, %1, %cst {dimension_numbers = #tpu.dot_dimension_numbers<[1], [0], [0], [1], [0, 0, 1, 1], [], []>} : vector<32x768xbf16>, vector<768x128xbf16>, vector<32x128xf32> -> vector<32x128xf32>
    %c0_3 = arith.constant 0 : index
    %c0_4 = arith.constant 0 : index
    %4 = vector.load %arg3[%c0_3, %c0_4] : memref<1x128xf32, #tpu.memory_space<vmem>>, vector<1x128xf32>
    %5 = vector.broadcast %4 : vector<1x128xf32> to vector<32x128xf32>
    %6 = arith.addf %3, %5 : vector<32x128xf32>
    %7 = vector.shape_cast %6 : vector<32x128xf32> to vector<2x16x128xf32>
    %c0_5 = arith.constant 0 : index
    %c0_6 = arith.constant 0 : index
    %8 = vector.load %arg4[%c0_5, %c0_6] : memref<16x128xf32, #tpu.memory_space<vmem>>, vector<16x128xf32>
    %9 = vector.shape_cast %8 : vector<16x128xf32> to vector<1x16x128xf32>
    %10 = vector.broadcast %9 : vector<1x16x128xf32> to vector<2x16x128xf32>
    %11 = arith.addf %7, %10 : vector<2x16x128xf32>
    %12 = vector.shape_cast %11 : vector<2x16x128xf32> to vector<32x128xf32>
    %c0_7 = arith.constant 0 : index
    %c0_8 = arith.constant 0 : index
    %13 = vector.load %arg5[%c0_7, %c0_8] : memref<32x128xf32, #tpu.memory_space<vmem>>, vector<32x128xf32>
    tpu.vector_store %arg5[%c0_7, %c0_8], %12 {strides = array<i32>} : memref<32x128xf32, #tpu.memory_space<vmem>>, vector<32x128xf32>,
    return
  }
  func.func @transform_0(%arg0: i32) -> (i32, i32) {
    %c0_i32 = arith.constant 0 : i32
    %c0_i32_0 = arith.constant 0 : i32
    %c0_i32_1 = arith.constant 0 : i32
    return %c0_i32, %c0_i32_0 : i32, i32
  }
  func.func @transform_1(%arg0: i32) -> (i32, i32) {
    %c0_i32 = arith.constant 0 : i32
    %c0_i32_0 = arith.constant 0 : i32
    %c0_i32_1 = arith.constant 0 : i32
    return %c0_i32, %c0_i32_0 : i32, i32
  }
  func.func @transform_2(%arg0: i32) -> (i32, i32) {
    %c0_i32 = arith.constant 0 : i32
    %c0_i32_0 = arith.constant 0 : i32
    %c0_i32_1 = arith.constant 0 : i32
    return %c0_i32, %c0_i32_0 : i32, i32
  }
  func.func @transform_3(%arg0: i32) -> (i32, i32) {
    %c0_i32 = arith.constant 0 : i32
    %c0_i32_0 = arith.constant 0 : i32
    %c0_i32_1 = arith.constant 0 : i32
    return %c0_i32, %c0_i32_0 : i32, i32
  }
  func.func @transform_4(%arg0: i32) -> (i32, i32) {
    %c0_i32 = arith.constant 0 : i32
    %c0_i32_0 = arith.constant 0 : i32
    %c0_i32_1 = arith.constant 0 : i32
    return %c0_i32, %c0_i32_0 : i32, i32
  }
}

module attributes {stable_mosaic.version = 11 : i64} {
  func.func @vit_blocks_kernel(%arg0: i32, %arg1: i32, %arg2: memref<32x128xf32, #tpu.memory_space<any>>, %arg3: memref<1x1x128xf32, #tpu.memory_space<vmem>>, %arg4: memref<1x1x128xf32, #tpu.memory_space<vmem>>, %arg5: memref<1x128x384xbf16, #tpu.memory_space<vmem>>, %arg6: memref<1x1x384xf32, #tpu.memory_space<vmem>>, %arg7: memref<1x128x128xbf16, #tpu.memory_space<vmem>>, %arg8: memref<1x1x128xf32, #tpu.memory_space<vmem>>, %arg9: memref<1x1x128xf32, #tpu.memory_space<vmem>>, %arg10: memref<1x1x128xf32, #tpu.memory_space<vmem>>, %arg11: memref<1x128x512xbf16, #tpu.memory_space<vmem>>, %arg12: memref<1x1x512xf32, #tpu.memory_space<vmem>>, %arg13: memref<1x512x128xbf16, #tpu.memory_space<vmem>>, %arg14: memref<1x1x128xf32, #tpu.memory_space<vmem>>, %arg15: memref<1x128xf32, #tpu.memory_space<vmem>>, %arg16: memref<1x128xf32, #tpu.memory_space<vmem>>, %arg17: memref<32x128xf32, #tpu.memory_space<vmem>>, %arg18: memref<32x128xf32, #tpu.memory_space<vmem>>, %arg19: memref<!tpu.dma_semaphore, #tpu.memory_space<semaphore_mem>>) attributes {dimension_semantics = [#tpu.dimension_semantics<parallel>, #tpu.dimension_semantics<arbitrary>], iteration_bounds = array<i64: 1, 2>, scalar_prefetch = 0 : i64, scratch_operands = 2 : i64, tpu.core_type = #tpu.core_type<tc>, window_params = [{}, {transform_indices = @transform_1, window_bounds = array<i64: 1, 1, 128>}, {transform_indices = @transform_2, window_bounds = array<i64: 1, 1, 128>}, {transform_indices = @transform_3, window_bounds = array<i64: 1, 128, 384>}, {transform_indices = @transform_4, window_bounds = array<i64: 1, 1, 384>}, {transform_indices = @transform_5, window_bounds = array<i64: 1, 128, 128>}, {transform_indices = @transform_6, window_bounds = array<i64: 1, 1, 128>}, {transform_indices = @transform_7, window_bounds = array<i64: 1, 1, 128>}, {transform_indices = @transform_8, window_bounds = array<i64: 1, 1, 128>}, {transform_indices = @transform_9, window_bounds = array<i64: 1, 128, 512>}, {transform_indices = @transform_10, window_bounds = array<i64: 1, 1, 512>}, {transform_indices = @transform_11, window_bounds = array<i64: 1, 512, 128>}, {transform_indices = @transform_12, window_bounds = array<i64: 1, 1, 128>}, {pipeline_mode = #tpu.pipeline_mode<synchronous>, transform_indices = @transform_13, window_bounds = array<i64: 1, 128>}, {pipeline_mode = #tpu.pipeline_mode<synchronous>, transform_indices = @transform_14, window_bounds = array<i64: 1, 128>}, {transform_indices = @transform_15, window_bounds = array<i64: 32, 128>}]} {
    %c0_i32 = arith.constant 0 : i32
    %0 = arith.cmpi eq, %arg1, %c0_i32 : i32
    %1 = arith.extui %0 : i1 to i32
    %c0_i32_0 = arith.constant 0 : i32
    %2 = arith.cmpi ne, %1, %c0_i32_0 : i32
    scf.if %2 {
      %c32_i32 = arith.constant 32 : i32
      %185 = arith.muli %arg0, %c32_i32 : i32
      %186 = tpu.assume_multiple %185, 32 : i32
      %c0_i32_73 = arith.constant 0 : i32
      %187 = tpu.memref_slice %arg2[%186, %c0_i32_73] : memref<32x128xf32, #tpu.memory_space<any>> -> memref<32x128xf32, #tpu.memory_space<any>>
      tpu.enqueue_dma source(%187 : memref<32x128xf32, #tpu.memory_space<any>>) target(%arg18 : memref<32x128xf32, #tpu.memory_space<vmem>>) target_semaphore(%arg19 : memref<!tpu.dma_semaphore, #tpu.memory_space<semaphore_mem>>)
      %c0_i32_74 = arith.constant 0 : i32
      %188 = tpu.memref_slice %arg2[%186, %c0_i32_74] : memref<32x128xf32, #tpu.memory_space<any>> -> memref<32x128xf32, #tpu.memory_space<any>>
      tpu.wait_dma2 semaphore(%arg19 : memref<!tpu.dma_semaphore, #tpu.memory_space<semaphore_mem>>) src(%188 : memref<32x128xf32, #tpu.memory_space<any>>) dst(%arg18 : memref<32x128xf32, #tpu.memory_space<vmem>>)
    } else {
    }
    %c0 = arith.constant 0 : index
    %c0_1 = arith.constant 0 : index
    %3 = vector.load %arg18[%c0, %c0_1] : memref<32x128xf32, #tpu.memory_space<vmem>>, vector<32x128xf32>
    %c0_2 = arith.constant 0 : index
    %c0_3 = arith.constant 0 : index
    %c0_4 = arith.constant 0 : index
    %4 = vector.load %arg3[%c0_2, %c0_3, %c0_4] : memref<1x1x128xf32, #tpu.memory_space<vmem>>, vector<1x1x128xf32>
    %5 = vector.shape_cast %4 : vector<1x1x128xf32> to vector<1x128xf32>
    %c0_5 = arith.constant 0 : index
    %c0_6 = arith.constant 0 : index
    %c0_7 = arith.constant 0 : index
    %6 = vector.load %arg4[%c0_5, %c0_6, %c0_7] : memref<1x1x128xf32, #tpu.memory_space<vmem>>, vector<1x1x128xf32>
    %7 = vector.shape_cast %6 : vector<1x1x128xf32> to vector<1x128xf32>
    %c0_8 = arith.constant 0 : index
    %c0_9 = arith.constant 0 : index
    %c0_10 = arith.constant 0 : index
    %8 = vector.load %arg5[%c0_8, %c0_9, %c0_10] : memref<1x128x384xbf16, #tpu.memory_space<vmem>>, vector<1x128x384xbf16>
    %9 = vector.shape_cast %8 : vector<1x128x384xbf16> to vector<128x384xbf16>
    %c0_11 = arith.constant 0 : index
    %c0_12 = arith.constant 0 : index
    %c0_13 = arith.constant 0 : index
    %10 = vector.load %arg6[%c0_11, %c0_12, %c0_13] : memref<1x1x384xf32, #tpu.memory_space<vmem>>, vector<1x1x384xf32>
    %11 = vector.shape_cast %10 : vector<1x1x384xf32> to vector<1x384xf32>
    %c0_14 = arith.constant 0 : index
    %c0_15 = arith.constant 0 : index
    %c0_16 = arith.constant 0 : index
    %12 = vector.load %arg7[%c0_14, %c0_15, %c0_16] : memref<1x128x128xbf16, #tpu.memory_space<vmem>>, vector<1x128x128xbf16>
    %13 = vector.shape_cast %12 : vector<1x128x128xbf16> to vector<128x128xbf16>
    %c0_17 = arith.constant 0 : index
    %c0_18 = arith.constant 0 : index
    %c0_19 = arith.constant 0 : index
    %14 = vector.load %arg8[%c0_17, %c0_18, %c0_19] : memref<1x1x128xf32, #tpu.memory_space<vmem>>, vector<1x1x128xf32>
    %15 = vector.shape_cast %14 : vector<1x1x128xf32> to vector<1x128xf32>
    %c0_20 = arith.constant 0 : index
    %c0_21 = arith.constant 0 : index
    %c0_22 = arith.constant 0 : index
    %16 = vector.load %arg9[%c0_20, %c0_21, %c0_22] : memref<1x1x128xf32, #tpu.memory_space<vmem>>, vector<1x1x128xf32>
    %17 = vector.shape_cast %16 : vector<1x1x128xf32> to vector<1x128xf32>
    %c0_23 = arith.constant 0 : index
    %c0_24 = arith.constant 0 : index
    %c0_25 = arith.constant 0 : index
    %18 = vector.load %arg10[%c0_23, %c0_24, %c0_25] : memref<1x1x128xf32, #tpu.memory_space<vmem>>, vector<1x1x128xf32>
    %19 = vector.shape_cast %18 : vector<1x1x128xf32> to vector<1x128xf32>
    %c0_26 = arith.constant 0 : index
    %c0_27 = arith.constant 0 : index
    %c0_28 = arith.constant 0 : index
    %20 = vector.load %arg11[%c0_26, %c0_27, %c0_28] : memref<1x128x512xbf16, #tpu.memory_space<vmem>>, vector<1x128x512xbf16>
    %21 = vector.shape_cast %20 : vector<1x128x512xbf16> to vector<128x512xbf16>
    %c0_29 = arith.constant 0 : index
    %c0_30 = arith.constant 0 : index
    %c0_31 = arith.constant 0 : index
    %22 = vector.load %arg12[%c0_29, %c0_30, %c0_31] : memref<1x1x512xf32, #tpu.memory_space<vmem>>, vector<1x1x512xf32>
    %23 = vector.shape_cast %22 : vector<1x1x512xf32> to vector<1x512xf32>
    %c0_32 = arith.constant 0 : index
    %c0_33 = arith.constant 0 : index
    %c0_34 = arith.constant 0 : index
    %24 = vector.load %arg13[%c0_32, %c0_33, %c0_34] : memref<1x512x128xbf16, #tpu.memory_space<vmem>>, vector<1x512x128xbf16>
    %25 = vector.shape_cast %24 : vector<1x512x128xbf16> to vector<512x128xbf16>
    %c0_35 = arith.constant 0 : index
    %c0_36 = arith.constant 0 : index
    %c0_37 = arith.constant 0 : index
    %26 = vector.load %arg14[%c0_35, %c0_36, %c0_37] : memref<1x1x128xf32, #tpu.memory_space<vmem>>, vector<1x1x128xf32>
    %27 = vector.shape_cast %26 : vector<1x1x128xf32> to vector<1x128xf32>
    %cst = arith.constant dense<0.000000e+00> : vector<32xf32>
    %28 = vector.multi_reduction <add>, %3, %cst [1] : vector<32x128xf32> to vector<32xf32>
    %29 = vector.shape_cast %28 : vector<32xf32> to vector<32x1xf32>
    %cst_38 = arith.constant 1.280000e+02 : f32
    %30 = vector.broadcast %cst_38 : f32 to vector<32x1xf32>
    %31 = arith.divf %29, %30 : vector<32x1xf32>
    %32 = vector.broadcast %31 : vector<32x1xf32> to vector<32x128xf32>
    %33 = arith.subf %3, %32 : vector<32x128xf32>
    %34 = arith.mulf %33, %33 : vector<32x128xf32>
    %cst_39 = arith.constant dense<0.000000e+00> : vector<32xf32>
    %35 = vector.multi_reduction <add>, %34, %cst_39 [1] : vector<32x128xf32> to vector<32xf32>
    %36 = vector.shape_cast %35 : vector<32xf32> to vector<32x1xf32>
    %cst_40 = arith.constant 1.280000e+02 : f32
    %37 = vector.broadcast %cst_40 : f32 to vector<32x1xf32>
    %38 = arith.divf %36, %37 : vector<32x1xf32>
    %cst_41 = arith.constant 9.99999997E-7 : f32
    %39 = vector.broadcast %cst_41 : f32 to vector<32x1xf32>
    %40 = arith.addf %38, %39 : vector<32x1xf32>
    %41 = math.rsqrt %40 : vector<32x1xf32>
    %42 = vector.broadcast %41 : vector<32x1xf32> to vector<32x128xf32>
    %43 = arith.mulf %33, %42 : vector<32x128xf32>
    %44 = vector.broadcast %5 : vector<1x128xf32> to vector<32x128xf32>
    %45 = arith.mulf %43, %44 : vector<32x128xf32>
    %46 = vector.broadcast %7 : vector<1x128xf32> to vector<32x128xf32>
    %47 = arith.addf %45, %46 : vector<32x128xf32>
    %48 = arith.truncf %47 : vector<32x128xf32> to vector<32x128xbf16>
    %cst_42 = arith.constant dense<0.000000e+00> : vector<32x384xf32>
    %49 = tpu.matmul %48, %9, %cst_42 {dimension_numbers = #tpu.dot_dimension_numbers<[1], [0], [0], [1], [0, 0, 1, 1], [], []>} : vector<32x128xbf16>, vector<128x384xbf16>, vector<32x384xf32> -> vector<32x384xf32>
    %50 = vector.broadcast %11 : vector<1x384xf32> to vector<32x384xf32>
    %51 = arith.addf %49, %50 : vector<32x384xf32>
    %52 = vector.extract_strided_slice %51 {offsets = [0, 0], sizes = [32, 128], strides = [1, 1]} : vector<32x384xf32> to vector<32x128xf32>
    %53 = vector.extract_strided_slice %51 {offsets = [0, 128], sizes = [32, 128], strides = [1, 1]} : vector<32x384xf32> to vector<32x128xf32>
    %54 = vector.extract_strided_slice %51 {offsets = [0, 256], sizes = [32, 128], strides = [1, 1]} : vector<32x384xf32> to vector<32x128xf32>
    %55 = arith.truncf %52 : vector<32x128xf32> to vector<32x128xbf16>
    %56 = arith.truncf %53 : vector<32x128xf32> to vector<32x128xbf16>
    %57 = arith.truncf %54 : vector<32x128xf32> to vector<32x128xbf16>
    %58 = vector.extract_strided_slice %55 {offsets = [0, 0], sizes = [32, 32], strides = [1, 1]} : vector<32x128xbf16> to vector<32x32xbf16>
    %59 = vector.shape_cast %58 : vector<32x32xbf16> to vector<2x16x32xbf16>
    %60 = vector.extract_strided_slice %56 {offsets = [0, 0], sizes = [32, 32], strides = [1, 1]} : vector<32x128xbf16> to vector<32x32xbf16>
    %61 = vector.shape_cast %60 : vector<32x32xbf16> to vector<2x16x32xbf16>
    %62 = vector.extract_strided_slice %57 {offsets = [0, 0], sizes = [32, 32], strides = [1, 1]} : vector<32x128xbf16> to vector<32x32xbf16>
    %63 = vector.shape_cast %62 : vector<32x32xbf16> to vector<2x16x32xbf16>
    "tpu.trace_start"() <{level = 10 : i32, message = "bqd,bkd->bqk"}> : () -> ()
    %cst_43 = arith.constant dense<0.000000e+00> : vector<2x16x16xf32>
    %64 = tpu.matmul %59, %61, %cst_43 {dimension_numbers = #tpu.dot_dimension_numbers<[2], [2], [1], [1], [0, 0, 0, 1, 1, 1], [0], [0]>} : vector<2x16x32xbf16>, vector<2x16x32xbf16>, vector<2x16x16xf32> -> vector<2x16x16xf32>
    "tpu.trace_stop"() : () -> ()
    %cst_44 = arith.constant dense<0xFF800000> : vector<2x16xf32>
    %65 = vector.multi_reduction <maximumf>, %64, %cst_44 [2] : vector<2x16x16xf32> to vector<2x16xf32>
    %66 = vector.shape_cast %65 : vector<2x16xf32> to vector<2x16x1xf32>
    %67 = vector.broadcast %66 : vector<2x16x1xf32> to vector<2x16x16xf32>
    %68 = arith.subf %64, %67 : vector<2x16x16xf32>
    %69 = math.exp %68 : vector<2x16x16xf32>
    %cst_45 = arith.constant dense<0.000000e+00> : vector<2x16xf32>
    %70 = vector.multi_reduction <add>, %69, %cst_45 [2] : vector<2x16x16xf32> to vector<2x16xf32>
    %71 = vector.shape_cast %70 : vector<2x16xf32> to vector<2x16x1xf32>
    %72 = tpu.reciprocal %71 {approx = true} : vector<2x16x1xf32> -> vector<2x16x1xf32>
    %73 = vector.broadcast %72 : vector<2x16x1xf32> to vector<2x16x16xf32>
    %74 = arith.mulf %69, %73 : vector<2x16x16xf32>
    %75 = arith.truncf %74 : vector<2x16x16xf32> to vector<2x16x16xbf16>
    "tpu.trace_start"() <{level = 10 : i32, message = "bqk,bkd->bqd"}> : () -> ()
    %cst_46 = arith.constant dense<0.000000e+00> : vector<2x16x32xf32>
    %76 = tpu.matmul %75, %63, %cst_46 {dimension_numbers = #tpu.dot_dimension_numbers<[2], [1], [1], [2], [0, 0, 0, 1, 1, 2], [0], [0]>} : vector<2x16x16xbf16>, vector<2x16x32xbf16>, vector<2x16x32xf32> -> vector<2x16x32xf32>
    "tpu.trace_stop"() : () -> ()
    %77 = vector.shape_cast %76 : vector<2x16x32xf32> to vector<32x32xf32>
    %78 = vector.extract_strided_slice %55 {offsets = [0, 32], sizes = [32, 32], strides = [1, 1]} : vector<32x128xbf16> to vector<32x32xbf16>
    %79 = vector.shape_cast %78 : vector<32x32xbf16> to vector<2x16x32xbf16>
    %80 = vector.extract_strided_slice %56 {offsets = [0, 32], sizes = [32, 32], strides = [1, 1]} : vector<32x128xbf16> to vector<32x32xbf16>
    %81 = vector.shape_cast %80 : vector<32x32xbf16> to vector<2x16x32xbf16>
    %82 = vector.extract_strided_slice %57 {offsets = [0, 32], sizes = [32, 32], strides = [1, 1]} : vector<32x128xbf16> to vector<32x32xbf16>
    %83 = vector.shape_cast %82 : vector<32x32xbf16> to vector<2x16x32xbf16>
    "tpu.trace_start"() <{level = 10 : i32, message = "bqd,bkd->bqk"}> : () -> ()
    %cst_47 = arith.constant dense<0.000000e+00> : vector<2x16x16xf32>
    %84 = tpu.matmul %79, %81, %cst_47 {dimension_numbers = #tpu.dot_dimension_numbers<[2], [2], [1], [1], [0, 0, 0, 1, 1, 1], [0], [0]>} : vector<2x16x32xbf16>, vector<2x16x32xbf16>, vector<2x16x16xf32> -> vector<2x16x16xf32>
    "tpu.trace_stop"() : () -> ()
    %cst_48 = arith.constant dense<0xFF800000> : vector<2x16xf32>
    %85 = vector.multi_reduction <maximumf>, %84, %cst_48 [2] : vector<2x16x16xf32> to vector<2x16xf32>
    %86 = vector.shape_cast %85 : vector<2x16xf32> to vector<2x16x1xf32>
    %87 = vector.broadcast %86 : vector<2x16x1xf32> to vector<2x16x16xf32>
    %88 = arith.subf %84, %87 : vector<2x16x16xf32>
    %89 = math.exp %88 : vector<2x16x16xf32>
    %cst_49 = arith.constant dense<0.000000e+00> : vector<2x16xf32>
    %90 = vector.multi_reduction <add>, %89, %cst_49 [2] : vector<2x16x16xf32> to vector<2x16xf32>
    %91 = vector.shape_cast %90 : vector<2x16xf32> to vector<2x16x1xf32>
    %92 = tpu.reciprocal %91 {approx = true} : vector<2x16x1xf32> -> vector<2x16x1xf32>
    %93 = vector.broadcast %92 : vector<2x16x1xf32> to vector<2x16x16xf32>
    %94 = arith.mulf %89, %93 : vector<2x16x16xf32>
    %95 = arith.truncf %94 : vector<2x16x16xf32> to vector<2x16x16xbf16>
    "tpu.trace_start"() <{level = 10 : i32, message = "bqk,bkd->bqd"}> : () -> ()
    %cst_50 = arith.constant dense<0.000000e+00> : vector<2x16x32xf32>
    %96 = tpu.matmul %95, %83, %cst_50 {dimension_numbers = #tpu.dot_dimension_numbers<[2], [1], [1], [2], [0, 0, 0, 1, 1, 2], [0], [0]>} : vector<2x16x16xbf16>, vector<2x16x32xbf16>, vector<2x16x32xf32> -> vector<2x16x32xf32>
    "tpu.trace_stop"() : () -> ()
    %97 = vector.shape_cast %96 : vector<2x16x32xf32> to vector<32x32xf32>
    %98 = vector.extract_strided_slice %55 {offsets = [0, 64], sizes = [32, 32], strides = [1, 1]} : vector<32x128xbf16> to vector<32x32xbf16>
    %99 = vector.shape_cast %98 : vector<32x32xbf16> to vector<2x16x32xbf16>
    %100 = vector.extract_strided_slice %56 {offsets = [0, 64], sizes = [32, 32], strides = [1, 1]} : vector<32x128xbf16> to vector<32x32xbf16>
    %101 = vector.shape_cast %100 : vector<32x32xbf16> to vector<2x16x32xbf16>
    %102 = vector.extract_strided_slice %57 {offsets = [0, 64], sizes = [32, 32], strides = [1, 1]} : vector<32x128xbf16> to vector<32x32xbf16>
    %103 = vector.shape_cast %102 : vector<32x32xbf16> to vector<2x16x32xbf16>
    "tpu.trace_start"() <{level = 10 : i32, message = "bqd,bkd->bqk"}> : () -> ()
    %cst_51 = arith.constant dense<0.000000e+00> : vector<2x16x16xf32>
    %104 = tpu.matmul %99, %101, %cst_51 {dimension_numbers = #tpu.dot_dimension_numbers<[2], [2], [1], [1], [0, 0, 0, 1, 1, 1], [0], [0]>} : vector<2x16x32xbf16>, vector<2x16x32xbf16>, vector<2x16x16xf32> -> vector<2x16x16xf32>
    "tpu.trace_stop"() : () -> ()
    %cst_52 = arith.constant dense<0xFF800000> : vector<2x16xf32>
    %105 = vector.multi_reduction <maximumf>, %104, %cst_52 [2] : vector<2x16x16xf32> to vector<2x16xf32>
    %106 = vector.shape_cast %105 : vector<2x16xf32> to vector<2x16x1xf32>
    %107 = vector.broadcast %106 : vector<2x16x1xf32> to vector<2x16x16xf32>
    %108 = arith.subf %104, %107 : vector<2x16x16xf32>
    %109 = math.exp %108 : vector<2x16x16xf32>
    %cst_53 = arith.constant dense<0.000000e+00> : vector<2x16xf32>
    %110 = vector.multi_reduction <add>, %109, %cst_53 [2] : vector<2x16x16xf32> to vector<2x16xf32>
    %111 = vector.shape_cast %110 : vector<2x16xf32> to vector<2x16x1xf32>
    %112 = tpu.reciprocal %111 {approx = true} : vector<2x16x1xf32> -> vector<2x16x1xf32>
    %113 = vector.broadcast %112 : vector<2x16x1xf32> to vector<2x16x16xf32>
    %114 = arith.mulf %109, %113 : vector<2x16x16xf32>
    %115 = arith.truncf %114 : vector<2x16x16xf32> to vector<2x16x16xbf16>
    "tpu.trace_start"() <{level = 10 : i32, message = "bqk,bkd->bqd"}> : () -> ()
    %cst_54 = arith.constant dense<0.000000e+00> : vector<2x16x32xf32>
    %116 = tpu.matmul %115, %103, %cst_54 {dimension_numbers = #tpu.dot_dimension_numbers<[2], [1], [1], [2], [0, 0, 0, 1, 1, 2], [0], [0]>} : vector<2x16x16xbf16>, vector<2x16x32xbf16>, vector<2x16x32xf32> -> vector<2x16x32xf32>
    "tpu.trace_stop"() : () -> ()
    %117 = vector.shape_cast %116 : vector<2x16x32xf32> to vector<32x32xf32>
    %118 = vector.extract_strided_slice %55 {offsets = [0, 96], sizes = [32, 32], strides = [1, 1]} : vector<32x128xbf16> to vector<32x32xbf16>
    %119 = vector.shape_cast %118 : vector<32x32xbf16> to vector<2x16x32xbf16>
    %120 = vector.extract_strided_slice %56 {offsets = [0, 96], sizes = [32, 32], strides = [1, 1]} : vector<32x128xbf16> to vector<32x32xbf16>
    %121 = vector.shape_cast %120 : vector<32x32xbf16> to vector<2x16x32xbf16>
    %122 = vector.extract_strided_slice %57 {offsets = [0, 96], sizes = [32, 32], strides = [1, 1]} : vector<32x128xbf16> to vector<32x32xbf16>
    %123 = vector.shape_cast %122 : vector<32x32xbf16> to vector<2x16x32xbf16>
    "tpu.trace_start"() <{level = 10 : i32, message = "bqd,bkd->bqk"}> : () -> ()
    %cst_55 = arith.constant dense<0.000000e+00> : vector<2x16x16xf32>
    %124 = tpu.matmul %119, %121, %cst_55 {dimension_numbers = #tpu.dot_dimension_numbers<[2], [2], [1], [1], [0, 0, 0, 1, 1, 1], [0], [0]>} : vector<2x16x32xbf16>, vector<2x16x32xbf16>, vector<2x16x16xf32> -> vector<2x16x16xf32>
    "tpu.trace_stop"() : () -> ()
    %cst_56 = arith.constant dense<0xFF800000> : vector<2x16xf32>
    %125 = vector.multi_reduction <maximumf>, %124, %cst_56 [2] : vector<2x16x16xf32> to vector<2x16xf32>
    %126 = vector.shape_cast %125 : vector<2x16xf32> to vector<2x16x1xf32>
    %127 = vector.broadcast %126 : vector<2x16x1xf32> to vector<2x16x16xf32>
    %128 = arith.subf %124, %127 : vector<2x16x16xf32>
    %129 = math.exp %128 : vector<2x16x16xf32>
    %cst_57 = arith.constant dense<0.000000e+00> : vector<2x16xf32>
    %130 = vector.multi_reduction <add>, %129, %cst_57 [2] : vector<2x16x16xf32> to vector<2x16xf32>
    %131 = vector.shape_cast %130 : vector<2x16xf32> to vector<2x16x1xf32>
    %132 = tpu.reciprocal %131 {approx = true} : vector<2x16x1xf32> -> vector<2x16x1xf32>
    %133 = vector.broadcast %132 : vector<2x16x1xf32> to vector<2x16x16xf32>
    %134 = arith.mulf %129, %133 : vector<2x16x16xf32>
    %135 = arith.truncf %134 : vector<2x16x16xf32> to vector<2x16x16xbf16>
    "tpu.trace_start"() <{level = 10 : i32, message = "bqk,bkd->bqd"}> : () -> ()
    %cst_58 = arith.constant dense<0.000000e+00> : vector<2x16x32xf32>
    %136 = tpu.matmul %135, %123, %cst_58 {dimension_numbers = #tpu.dot_dimension_numbers<[2], [1], [1], [2], [0, 0, 0, 1, 1, 2], [0], [0]>} : vector<2x16x16xbf16>, vector<2x16x32xbf16>, vector<2x16x32xf32> -> vector<2x16x32xf32>
    "tpu.trace_stop"() : () -> ()
    %137 = vector.shape_cast %136 : vector<2x16x32xf32> to vector<32x32xf32>
    %138 = tpu.concatenate %77, %97, %117, %137 in 1 : vector<32x32xf32>, vector<32x32xf32>, vector<32x32xf32>, vector<32x32xf32> -> vector<32x128xf32>
    %139 = arith.truncf %138 : vector<32x128xf32> to vector<32x128xbf16>
    %cst_59 = arith.constant dense<0.000000e+00> : vector<32x128xf32>
    %140 = tpu.matmul %139, %13, %cst_59 {dimension_numbers = #tpu.dot_dimension_numbers<[1], [0], [0], [1], [0, 0, 1, 1], [], []>} : vector<32x128xbf16>, vector<128x128xbf16>, vector<32x128xf32> -> vector<32x128xf32>
    %141 = vector.broadcast %15 : vector<1x128xf32> to vector<32x128xf32>
    %142 = arith.addf %140, %141 : vector<32x128xf32>
    %143 = arith.addf %3, %142 : vector<32x128xf32>
    %cst_60 = arith.constant dense<0.000000e+00> : vector<32xf32>
    %144 = vector.multi_reduction <add>, %143, %cst_60 [1] : vector<32x128xf32> to vector<32xf32>
    %145 = vector.shape_cast %144 : vector<32xf32> to vector<32x1xf32>
    %cst_61 = arith.constant 1.280000e+02 : f32
    %146 = vector.broadcast %cst_61 : f32 to vector<32x1xf32>
    %147 = arith.divf %145, %146 : vector<32x1xf32>
    %148 = vector.broadcast %147 : vector<32x1xf32> to vector<32x128xf32>
    %149 = arith.subf %143, %148 : vector<32x128xf32>
    %150 = arith.mulf %149, %149 : vector<32x128xf32>
    %cst_62 = arith.constant dense<0.000000e+00> : vector<32xf32>
    %151 = vector.multi_reduction <add>, %150, %cst_62 [1] : vector<32x128xf32> to vector<32xf32>
    %152 = vector.shape_cast %151 : vector<32xf32> to vector<32x1xf32>
    %cst_63 = arith.constant 1.280000e+02 : f32
    %153 = vector.broadcast %cst_63 : f32 to vector<32x1xf32>
    %154 = arith.divf %152, %153 : vector<32x1xf32>
    %cst_64 = arith.constant 9.99999997E-7 : f32
    %155 = vector.broadcast %cst_64 : f32 to vector<32x1xf32>
    %156 = arith.addf %154, %155 : vector<32x1xf32>
    %157 = math.rsqrt %156 : vector<32x1xf32>
    %158 = vector.broadcast %157 : vector<32x1xf32> to vector<32x128xf32>
    %159 = arith.mulf %149, %158 : vector<32x128xf32>
    %160 = vector.broadcast %17 : vector<1x128xf32> to vector<32x128xf32>
    %161 = arith.mulf %159, %160 : vector<32x128xf32>
    %162 = vector.broadcast %19 : vector<1x128xf32> to vector<32x128xf32>
    %163 = arith.addf %161, %162 : vector<32x128xf32>
    %164 = arith.truncf %163 : vector<32x128xf32> to vector<32x128xbf16>
    %cst_65 = arith.constant dense<0.000000e+00> : vector<32x512xf32>
    %165 = tpu.matmul %164, %21, %cst_65 {dimension_numbers = #tpu.dot_dimension_numbers<[1], [0], [0], [1], [0, 0, 1, 1], [], []>} : vector<32x128xbf16>, vector<128x512xbf16>, vector<32x512xf32> -> vector<32x512xf32>
    %166 = vector.broadcast %23 : vector<1x512xf32> to vector<32x512xf32>
    %167 = arith.addf %165, %166 : vector<32x512xf32>
    %cst_66 = arith.constant 5.000000e-01 : f32
    %168 = vector.broadcast %cst_66 : f32 to vector<32x512xf32>
    %169 = arith.mulf %168, %167 : vector<32x512xf32>
    %cst_67 = arith.constant 0.707106769 : f32
    %170 = vector.broadcast %cst_67 : f32 to vector<32x512xf32>
    %171 = arith.mulf %167, %170 : vector<32x512xf32>
    %172 = math.erf %171 : vector<32x512xf32>
    %cst_68 = arith.constant 1.000000e+00 : f32
    %173 = vector.broadcast %cst_68 : f32 to vector<32x512xf32>
    %174 = arith.addf %173, %172 : vector<32x512xf32>
    %175 = arith.mulf %169, %174 : vector<32x512xf32>
    %176 = arith.truncf %175 : vector<32x512xf32> to vector<32x512xbf16>
    %cst_69 = arith.constant dense<0.000000e+00> : vector<32x128xf32>
    %177 = tpu.matmul %176, %25, %cst_69 {dimension_numbers = #tpu.dot_dimension_numbers<[1], [0], [0], [1], [0, 0, 1, 1], [], []>} : vector<32x512xbf16>, vector<512x128xbf16>, vector<32x128xf32> -> vector<32x128xf32>
    %178 = vector.broadcast %27 : vector<1x128xf32> to vector<32x128xf32>
    %179 = arith.addf %177, %178 : vector<32x128xf32>
    %180 = arith.addf %143, %179 : vector<32x128xf32>
    %c0_70 = arith.constant 0 : index
    %c0_71 = arith.constant 0 : index
    %181 = vector.load %arg18[%c0_70, %c0_71] : memref<32x128xf32, #tpu.memory_space<vmem>>, vector<32x128xf32>
    tpu.vector_store %arg18[%c0_70, %c0_71], %180 {strides = array<i32>} : memref<32x128xf32, #tpu.memory_space<vmem>>, vector<32x128xf32>,
    %c1_i32 = arith.constant 1 : i32
    %182 = arith.cmpi eq, %arg1, %c1_i32 : i32
    %183 = arith.extui %182 : i1 to i32
    %c0_i32_72 = arith.constant 0 : i32
    %184 = arith.cmpi ne, %183, %c0_i32_72 : i32
    scf.if %184 {
      %c0_73 = arith.constant 0 : index
      %c0_74 = arith.constant 0 : index
      %185 = vector.load %arg15[%c0_73, %c0_74] : memref<1x128xf32, #tpu.memory_space<vmem>>, vector<1x128xf32>
      %c0_75 = arith.constant 0 : index
      %c0_76 = arith.constant 0 : index
      %186 = vector.load %arg16[%c0_75, %c0_76] : memref<1x128xf32, #tpu.memory_space<vmem>>, vector<1x128xf32>
      %cst_77 = arith.constant dense<0.000000e+00> : vector<32xf32>
      %187 = vector.multi_reduction <add>, %180, %cst_77 [1] : vector<32x128xf32> to vector<32xf32>
      %188 = vector.shape_cast %187 : vector<32xf32> to vector<32x1xf32>
      %cst_78 = arith.constant 1.280000e+02 : f32
      %189 = vector.broadcast %cst_78 : f32 to vector<32x1xf32>
      %190 = arith.divf %188, %189 : vector<32x1xf32>
      %191 = vector.broadcast %190 : vector<32x1xf32> to vector<32x128xf32>
      %192 = arith.subf %180, %191 : vector<32x128xf32>
      %193 = arith.mulf %192, %192 : vector<32x128xf32>
      %cst_79 = arith.constant dense<0.000000e+00> : vector<32xf32>
      %194 = vector.multi_reduction <add>, %193, %cst_79 [1] : vector<32x128xf32> to vector<32xf32>
      %195 = vector.shape_cast %194 : vector<32xf32> to vector<32x1xf32>
      %cst_80 = arith.constant 1.280000e+02 : f32
      %196 = vector.broadcast %cst_80 : f32 to vector<32x1xf32>
      %197 = arith.divf %195, %196 : vector<32x1xf32>
      %cst_81 = arith.constant 9.99999997E-7 : f32
      %198 = vector.broadcast %cst_81 : f32 to vector<32x1xf32>
      %199 = arith.addf %197, %198 : vector<32x1xf32>
      %200 = math.rsqrt %199 : vector<32x1xf32>
      %201 = vector.broadcast %200 : vector<32x1xf32> to vector<32x128xf32>
      %202 = arith.mulf %192, %201 : vector<32x128xf32>
      %203 = vector.broadcast %185 : vector<1x128xf32> to vector<32x128xf32>
      %204 = arith.mulf %202, %203 : vector<32x128xf32>
      %205 = vector.broadcast %186 : vector<1x128xf32> to vector<32x128xf32>
      %206 = arith.addf %204, %205 : vector<32x128xf32>
      %c0_82 = arith.constant 0 : index
      %c0_83 = arith.constant 0 : index
      %207 = vector.load %arg17[%c0_82, %c0_83] : memref<32x128xf32, #tpu.memory_space<vmem>>, vector<32x128xf32>
      tpu.vector_store %arg17[%c0_82, %c0_83], %206 {strides = array<i32>} : memref<32x128xf32, #tpu.memory_space<vmem>>, vector<32x128xf32>,
    } else {
    }
    return
  }
  func.func @transform_1(%arg0: i32, %arg1: i32) -> (i32, i32, i32) {
    %c0_i32 = arith.constant 0 : i32
    %c0_i32_0 = arith.constant 0 : i32
    %c0_i32_1 = arith.constant 0 : i32
    return %arg1, %c0_i32, %c0_i32_0 : i32, i32, i32
  }
  func.func @transform_2(%arg0: i32, %arg1: i32) -> (i32, i32, i32) {
    %c0_i32 = arith.constant 0 : i32
    %c0_i32_0 = arith.constant 0 : i32
    %c0_i32_1 = arith.constant 0 : i32
    return %arg1, %c0_i32, %c0_i32_0 : i32, i32, i32
  }
  func.func @transform_3(%arg0: i32, %arg1: i32) -> (i32, i32, i32) {
    %c0_i32 = arith.constant 0 : i32
    %c0_i32_0 = arith.constant 0 : i32
    %c0_i32_1 = arith.constant 0 : i32
    return %arg1, %c0_i32, %c0_i32_0 : i32, i32, i32
  }
  func.func @transform_4(%arg0: i32, %arg1: i32) -> (i32, i32, i32) {
    %c0_i32 = arith.constant 0 : i32
    %c0_i32_0 = arith.constant 0 : i32
    %c0_i32_1 = arith.constant 0 : i32
    return %arg1, %c0_i32, %c0_i32_0 : i32, i32, i32
  }
  func.func @transform_5(%arg0: i32, %arg1: i32) -> (i32, i32, i32) {
    %c0_i32 = arith.constant 0 : i32
    %c0_i32_0 = arith.constant 0 : i32
    %c0_i32_1 = arith.constant 0 : i32
    return %arg1, %c0_i32, %c0_i32_0 : i32, i32, i32
  }
  func.func @transform_6(%arg0: i32, %arg1: i32) -> (i32, i32, i32) {
    %c0_i32 = arith.constant 0 : i32
    %c0_i32_0 = arith.constant 0 : i32
    %c0_i32_1 = arith.constant 0 : i32
    return %arg1, %c0_i32, %c0_i32_0 : i32, i32, i32
  }
  func.func @transform_7(%arg0: i32, %arg1: i32) -> (i32, i32, i32) {
    %c0_i32 = arith.constant 0 : i32
    %c0_i32_0 = arith.constant 0 : i32
    %c0_i32_1 = arith.constant 0 : i32
    return %arg1, %c0_i32, %c0_i32_0 : i32, i32, i32
  }
  func.func @transform_8(%arg0: i32, %arg1: i32) -> (i32, i32, i32) {
    %c0_i32 = arith.constant 0 : i32
    %c0_i32_0 = arith.constant 0 : i32
    %c0_i32_1 = arith.constant 0 : i32
    return %arg1, %c0_i32, %c0_i32_0 : i32, i32, i32
  }
  func.func @transform_9(%arg0: i32, %arg1: i32) -> (i32, i32, i32) {
    %c0_i32 = arith.constant 0 : i32
    %c0_i32_0 = arith.constant 0 : i32
    %c0_i32_1 = arith.constant 0 : i32
    return %arg1, %c0_i32, %c0_i32_0 : i32, i32, i32
  }
  func.func @transform_10(%arg0: i32, %arg1: i32) -> (i32, i32, i32) {
    %c0_i32 = arith.constant 0 : i32
    %c0_i32_0 = arith.constant 0 : i32
    %c0_i32_1 = arith.constant 0 : i32
    return %arg1, %c0_i32, %c0_i32_0 : i32, i32, i32
  }
  func.func @transform_11(%arg0: i32, %arg1: i32) -> (i32, i32, i32) {
    %c0_i32 = arith.constant 0 : i32
    %c0_i32_0 = arith.constant 0 : i32
    %c0_i32_1 = arith.constant 0 : i32
    return %arg1, %c0_i32, %c0_i32_0 : i32, i32, i32
  }
  func.func @transform_12(%arg0: i32, %arg1: i32) -> (i32, i32, i32) {
    %c0_i32 = arith.constant 0 : i32
    %c0_i32_0 = arith.constant 0 : i32
    %c0_i32_1 = arith.constant 0 : i32
    return %arg1, %c0_i32, %c0_i32_0 : i32, i32, i32
  }
  func.func @transform_13(%arg0: i32, %arg1: i32) -> (i32, i32) {
    %c0_i32 = arith.constant 0 : i32
    %c0_i32_0 = arith.constant 0 : i32
    %c0_i32_1 = arith.constant 0 : i32
    return %c0_i32, %c0_i32_0 : i32, i32
  }
  func.func @transform_14(%arg0: i32, %arg1: i32) -> (i32, i32) {
    %c0_i32 = arith.constant 0 : i32
    %c0_i32_0 = arith.constant 0 : i32
    %c0_i32_1 = arith.constant 0 : i32
    return %c0_i32, %c0_i32_0 : i32, i32
  }
  func.func @transform_15(%arg0: i32, %arg1: i32) -> (i32, i32) {
    %c0_i32 = arith.constant 0 : i32
    %c0_i32_0 = arith.constant 0 : i32
    return %arg0, %c0_i32 : i32, i32
  }
}

</mosaic_0001>

<llo_original>
// kernel: _lambda_.2
$region0: #{_lambda_.2}
  #allocation0 [shape = 'u32[]', space=smem, size = 0x4, offset = 0x4, fixed_abs, tag = 'smem constant byte address 0x4 - core index']
  #allocation1 [shape = 'u32[144,128]{1,0:T(1,128)}', space=vmem, size = 0x12000, scoped, tag = 'internal scratch']
  %s0 = inlined_call_operand.vmem [shape: f32[32,768], index: 0, kind: input, shape index: {}]
  %s1 = inlined_call_operand.vmem [shape: bf16[768,128], index: 1, kind: input, shape index: {}]
  %s2 = inlined_call_operand.vmem [shape: f32[1,128], index: 2, kind: input, shape index: {}]
  %s3 = inlined_call_operand.vmem [shape: f32[16,128], index: 3, kind: input, shape index: {}]
  %s4 = inlined_call_operand.vmem [shape: f32[32,128], index: 4, kind: output, shape index: {}]
  %s5 = sld [smem:[#allocation0]]
  $region26: #{_lambda_.2} parent=0
    _
  %s7 = ssub.s32 1, %s5
  %s8 = scalar_select 0, %s7, %s5
  // Predicated region
  $region2: #{_lambda_.2} parent=0 // pred_check
    _
  $region3: #{_lambda_.2} parent=0 // pred_check_branch
    %10 = sbr.rel (0) target = $region5
  $region4: #{_lambda_.2} parent=0 // pred_region
    _
  $region5: #{_lambda_.2} parent=0 // pred_fallthru
    _
  // Predicated region
  $region6: #{_lambda_.2} parent=0 // pred_check
    _
  $region7: #{_lambda_.2} parent=0 // pred_check_branch
    %12 = sbr.rel (0) target = $region9
  $region8: #{_lambda_.2} parent=0 // pred_region
    _
  $region9: #{_lambda_.2} parent=0 // pred_fallthru
    _
  // Predicated region
  $region10: #{_lambda_.2} parent=0 // pred_check
    _
  $region11: #{_lambda_.2} parent=0 // pred_check_branch
    %14 = sbr.rel (0) target = $region13
  $region12: #{_lambda_.2} parent=0 // pred_region
    _
  $region13: #{_lambda_.2} parent=0 // pred_fallthru
    _
  // Predicated region
  $region14: #{_lambda_.2} parent=0 // pred_check
    _
  $region15: #{_lambda_.2} parent=0 // pred_check_branch
    %16 = sbr.rel (0) target = $region17
  $region16: #{_lambda_.2} parent=0 // pred_region
    _
  $region17: #{_lambda_.2} parent=0 // pred_fallthru
    _
  %v18 = vld [vmem:[%s0] sm:$0xff]
  %v19 = vld [vmem:[%s0 + $0x8] sm:$0xff]
  %v20 = vld [vmem:[%s0 + $0x10] sm:$0xff]
  %v21 = vld [vmem:[%s0 + $0x18] sm:$0xff]
  %v22 = vld [vmem:[%s0 + $0x20] sm:$0xff]
  %v23 = vld [vmem:[%s0 + $0x28] sm:$0xff]
  %v24 = vld [vmem:[%s0 + $0x30] sm:$0xff]
  %v25 = vld [vmem:[%s0 + $0x38] sm:$0xff]
  %v26 = vld [vmem:[%s0 + $0x40] sm:$0xff]
  %v27 = vld [vmem:[%s0 + $0x48] sm:$0xff]
  %v28 = vld [vmem:[%s0 + $0x50] sm:$0xff]
  %v29 = vld [vmem:[%s0 + $0x58] sm:$0xff]
  %v30 = vld [vmem:[%s0 + $0x60] sm:$0xff]
  %v31 = vld [vmem:[%s0 + $0x68] sm:$0xff]
  %v32 = vld [vmem:[%s0 + $0x70] sm:$0xff]
  %v33 = vld [vmem:[%s0 + $0x78] sm:$0xff]
  %v34 = vld [vmem:[%s0 + $0x80] sm:$0xff]
  %v35 = vld [vmem:[%s0 + $0x88] sm:$0xff]
  %v36 = vld [vmem:[%s0 + $0x90] sm:$0xff]
  %v37 = vld [vmem:[%s0 + $0x98] sm:$0xff]
  %v38 = vld [vmem:[%s0 + $0xa0] sm:$0xff]
  %v39 = vld [vmem:[%s0 + $0xa8] sm:$0xff]
  %v40 = vld [vmem:[%s0 + $0xb0] sm:$0xff]
  %v41 = vld [vmem:[%s0 + $0xb8] sm:$0xff]
  %v42 = vld [vmem:[%s1] sm:$0xf]
  %v43 = vld [vmem:[%s1 + $0x4] sm:$0xf]
  %v44 = vld [vmem:[%s1 + $0x8] sm:$0xf]
  %v45 = vld [vmem:[%s1 + $0xc] sm:$0xf]
  %v46 = vld [vmem:[%s1 + $0x10] sm:$0xf]
  %v47 = vld [vmem:[%s1 + $0x14] sm:$0xf]
  %v48 = vld [vmem:[%s1 + $0x18] sm:$0xf]
  %v49 = vld [vmem:[%s1 + $0x1c] sm:$0xf]
  %v50 = vld [vmem:[%s1 + $0x20] sm:$0xf]
  %v51 = vld [vmem:[%s1 + $0x24] sm:$0xf]
  %v52 = vld [vmem:[%s1 + $0x28] sm:$0xf]
  %v53 = vld [vmem:[%s1 + $0x2c] sm:$0xf]
  %v54 = vld [vmem:[%s1 + $0x30] sm:$0xf]
  %v55 = vld [vmem:[%s1 + $0x34] sm:$0xf]
  %v56 = vld [vmem:[%s1 + $0x38] sm:$0xf]
  %v57 = vld [vmem:[%s1 + $0x3c] sm:$0xf]
  %v58 = vld [vmem:[%s1 + $0x40] sm:$0xf]
  %v59 = vld [vmem:[%s1 + $0x44] sm:$0xf]
  %v60 = vld [vmem:[%s1 + $0x48] sm:$0xf]
  %v61 = vld [vmem:[%s1 + $0x4c] sm:$0xf]
  %v62 = vld [vmem:[%s1 + $0x50] sm:$0xf]
  %v63 = vld [vmem:[%s1 + $0x54] sm:$0xf]
  %v64 = vld [vmem:[%s1 + $0x58] sm:$0xf]
  %v65 = vld [vmem:[%s1 + $0x5c] sm:$0xf]
  %v66 = vld [vmem:[%s1 + $0x60] sm:$0xf]
  %v67 = vld [vmem:[%s1 + $0x64] sm:$0xf]
  %v68 = vld [vmem:[%s1 + $0x68] sm:$0xf]
  %v69 = vld [vmem:[%s1 + $0x6c] sm:$0xf]
  %v70 = vld [vmem:[%s1 + $0x70] sm:$0xf]
  %v71 = vld [vmem:[%s1 + $0x74] sm:$0xf]
  %v72 = vld [vmem:[%s1 + $0x78] sm:$0xf]
  %v73 = vld [vmem:[%s1 + $0x7c] sm:$0xf]
  %v74 = vld [vmem:[%s1 + $0x80] sm:$0xf]
  %v75 = vld [vmem:[%s1 + $0x84] sm:$0xf]
  %v76 = vld [vmem:[%s1 + $0x88] sm:$0xf]
  %v77 = vld [vmem:[%s1 + $0x8c] sm:$0xf]
  %v78 = vld [vmem:[%s1 + $0x90] sm:$0xf]
  %v79 = vld [vmem:[%s1 + $0x94] sm:$0xf]
  %v80 = vld [vmem:[%s1 + $0x98] sm:$0xf]
  %v81 = vld [vmem:[%s1 + $0x9c] sm:$0xf]
  %v82 = vld [vmem:[%s1 + $0xa0] sm:$0xf]
  %v83 = vld [vmem:[%s1 + $0xa4] sm:$0xf]
  %v84 = vld [vmem:[%s1 + $0xa8] sm:$0xf]
  %v85 = vld [vmem:[%s1 + $0xac] sm:$0xf]
  %v86 = vld [vmem:[%s1 + $0xb0] sm:$0xf]
  %v87 = vld [vmem:[%s1 + $0xb4] sm:$0xf]
  %v88 = vld [vmem:[%s1 + $0xb8] sm:$0xf]
  %v89 = vld [vmem:[%s1 + $0xbc] sm:$0xf]
  %v90 = vld [vmem:[%s1 + $0xc0] sm:$0xf]
  %v91 = vld [vmem:[%s1 + $0xc4] sm:$0xf]
  %v92 = vld [vmem:[%s1 + $0xc8] sm:$0xf]
  %v93 = vld [vmem:[%s1 + $0xcc] sm:$0xf]
  %v94 = vld [vmem:[%s1 + $0xd0] sm:$0xf]
  %v95 = vld [vmem:[%s1 + $0xd4] sm:$0xf]
  %v96 = vld [vmem:[%s1 + $0xd8] sm:$0xf]
  %v97 = vld [vmem:[%s1 + $0xdc] sm:$0xf]
  %v98 = vld [vmem:[%s1 + $0xe0] sm:$0xf]
  %v99 = vld [vmem:[%s1 + $0xe4] sm:$0xf]
  %v100 = vld [vmem:[%s1 + $0xe8] sm:$0xf]
  %v101 = vld [vmem:[%s1 + $0xec] sm:$0xf]
  %v102 = vld [vmem:[%s1 + $0xf0] sm:$0xf]
  %v103 = vld [vmem:[%s1 + $0xf4] sm:$0xf]
  %v104 = vld [vmem:[%s1 + $0xf8] sm:$0xf]
  %v105 = vld [vmem:[%s1 + $0xfc] sm:$0xf]
  %v106 = vld [vmem:[%s1 + $0x100] sm:$0xf]
  %v107 = vld [vmem:[%s1 + $0x104] sm:$0xf]
  %v108 = vld [vmem:[%s1 + $0x108] sm:$0xf]
  %v109 = vld [vmem:[%s1 + $0x10c] sm:$0xf]
  %v110 = vld [vmem:[%s1 + $0x110] sm:$0xf]
  %v111 = vld [vmem:[%s1 + $0x114] sm:$0xf]
  %v112 = vld [vmem:[%s1 + $0x118] sm:$0xf]
  %v113 = vld [vmem:[%s1 + $0x11c] sm:$0xf]
  %v114 = vld [vmem:[%s1 + $0x120] sm:$0xf]
  %v115 = vld [vmem:[%s1 + $0x124] sm:$0xf]
  %v116 = vld [vmem:[%s1 + $0x128] sm:$0xf]
  %v117 = vld [vmem:[%s1 + $0x12c] sm:$0xf]
  %v118 = vld [vmem:[%s1 + $0x130] sm:$0xf]
  %v119 = vld [vmem:[%s1 + $0x134] sm:$0xf]
  %v120 = vld [vmem:[%s1 + $0x138] sm:$0xf]
  %v121 = vld [vmem:[%s1 + $0x13c] sm:$0xf]
  %v122 = vld [vmem:[%s1 + $0x140] sm:$0xf]
  %v123 = vld [vmem:[%s1 + $0x144] sm:$0xf]
  %v124 = vld [vmem:[%s1 + $0x148] sm:$0xf]
  %v125 = vld [vmem:[%s1 + $0x14c] sm:$0xf]
  %v126 = vld [vmem:[%s1 + $0x150] sm:$0xf]
  %v127 = vld [vmem:[%s1 + $0x154] sm:$0xf]
  %v128 = vld [vmem:[%s1 + $0x158] sm:$0xf]
  %v129 = vld [vmem:[%s1 + $0x15c] sm:$0xf]
  %v130 = vld [vmem:[%s1 + $0x160] sm:$0xf]
  %v131 = vld [vmem:[%s1 + $0x164] sm:$0xf]
  %v132 = vld [vmem:[%s1 + $0x168] sm:$0xf]
  %v133 = vld [vmem:[%s1 + $0x16c] sm:$0xf]
  %v134 = vld [vmem:[%s1 + $0x170] sm:$0xf]
  %v135 = vld [vmem:[%s1 + $0x174] sm:$0xf]
  %v136 = vld [vmem:[%s1 + $0x178] sm:$0xf]
  %v137 = vld [vmem:[%s1 + $0x17c] sm:$0xf]
  %v138 = vpack.c.bf16 %v24, %v18
  %v139 = vpack.c.bf16 %v25, %v19
  %v140 = vpack.c.bf16 %v26, %v20
  %v141 = vpack.c.bf16 %v27, %v21
  %v142 = vpack.c.bf16 %v28, %v22
  %v143 = vpack.c.bf16 %v29, %v23
  %v144 = vpack.c.bf16 %v36, %v30
  %v145 = vpack.c.bf16 %v37, %v31
  %v146 = vpack.c.bf16 %v38, %v32
  %v147 = vpack.c.bf16 %v39, %v33
  %v148 = vpack.c.bf16 %v40, %v34
  %v149 = vpack.c.bf16 %v41, %v35
  %v150 = vld [vmem:[%s2] sm:$0x1]
  %v152 = vlaneseq
  %v153 = vshrl.u32 %v152, 7
  %v154 = vsub.s32 0, %v153
  %v155 = vrot.slane %v150, %v154
  %v253 = vunpack.c.l.b16 %v42
  %v254 = vunpack.c.l.b16 %v43
  %v255 = vunpack.c.l.b16 %v44
  %v256 = vunpack.c.l.b16 %v45
  %v257 = vunpack.c.l.b16 %v46
  %v258 = vunpack.c.l.b16 %v47
  %v259 = vunpack.c.l.b16 %v48
  %v260 = vunpack.c.l.b16 %v49
  %v261 = vunpack.c.l.b16 %v50
  %v262 = vunpack.c.l.b16 %v51
  %v263 = vunpack.c.l.b16 %v52
  %v264 = vunpack.c.l.b16 %v53
  %v265 = vunpack.c.l.b16 %v54
  %v266 = vunpack.c.l.b16 %v55
  %v267 = vunpack.c.l.b16 %v56
  %v268 = vunpack.c.l.b16 %v57
  %v269 = vunpack.c.l.b16 %v58
  %v270 = vunpack.c.l.b16 %v59
  %v271 = vunpack.c.l.b16 %v60
  %v272 = vunpack.c.l.b16 %v61
  %v273 = vunpack.c.l.b16 %v62
  %v274 = vunpack.c.l.b16 %v63
  %v275 = vunpack.c.l.b16 %v64
  %v276 = vunpack.c.l.b16 %v65
  %v277 = vunpack.c.l.b16 %v66
  %v278 = vunpack.c.l.b16 %v67
  %v279 = vunpack.c.l.b16 %v68
  %v280 = vunpack.c.l.b16 %v69
  %v281 = vunpack.c.l.b16 %v70
  %v282 = vunpack.c.l.b16 %v71
  %v283 = vunpack.c.l.b16 %v72
  %v284 = vunpack.c.l.b16 %v73
  %v285 = vunpack.c.l.b16 %v74
  %v286 = vunpack.c.l.b16 %v75
  %v287 = vunpack.c.l.b16 %v76
  %v288 = vunpack.c.l.b16 %v77
  %v289 = vunpack.c.l.b16 %v78
  %v290 = vunpack.c.l.b16 %v79
  %v291 = vunpack.c.l.b16 %v80
  %v292 = vunpack.c.l.b16 %v81
  %v293 = vunpack.c.l.b16 %v82
  %v294 = vunpack.c.l.b16 %v83
  %v295 = vunpack.c.l.b16 %v84
  %v296 = vunpack.c.l.b16 %v85
  %v297 = vunpack.c.l.b16 %v86
  %v298 = vunpack.c.l.b16 %v87
  %v299 = vunpack.c.l.b16 %v88
  %v300 = vunpack.c.l.b16 %v89
  %v301 = vunpack.c.l.b16 %v90
  %v302 = vunpack.c.l.b16 %v91
  %v303 = vunpack.c.l.b16 %v92
  %v304 = vunpack.c.l.b16 %v93
  %v305 = vunpack.c.l.b16 %v94
  %v306 = vunpack.c.l.b16 %v95
  %v307 = vunpack.c.l.b16 %v96
  %v308 = vunpack.c.l.b16 %v97
  %v309 = vunpack.c.l.b16 %v98
  %v310 = vunpack.c.l.b16 %v99
  %v311 = vunpack.c.l.b16 %v100
  %v312 = vunpack.c.l.b16 %v101
  %v313 = vunpack.c.l.b16 %v102
  %v314 = vunpack.c.l.b16 %v103
  %v315 = vunpack.c.l.b16 %v104
  %v316 = vunpack.c.l.b16 %v105
  %v317 = vunpack.c.l.b16 %v106
  %v318 = vunpack.c.l.b16 %v107
  %v319 = vunpack.c.l.b16 %v108
  %v320 = vunpack.c.l.b16 %v109
  %v321 = vunpack.c.l.b16 %v110
  %v322 = vunpack.c.l.b16 %v111
  %v323 = vunpack.c.l.b16 %v112
  %v324 = vunpack.c.l.b16 %v113
  %v325 = vunpack.c.l.b16 %v114
  %v326 = vunpack.c.l.b16 %v115
  %v327 = vunpack.c.l.b16 %v116
  %v328 = vunpack.c.l.b16 %v117
  %v329 = vunpack.c.l.b16 %v118
  %v330 = vunpack.c.l.b16 %v119
  %v331 = vunpack.c.l.b16 %v120
  %v332 = vunpack.c.l.b16 %v121
  %v333 = vunpack.c.l.b16 %v122
  %v334 = vunpack.c.l.b16 %v123
  %v335 = vunpack.c.l.b16 %v124
  %v336 = vunpack.c.l.b16 %v125
  %v337 = vunpack.c.l.b16 %v126
  %v338 = vunpack.c.l.b16 %v127
  %v339 = vunpack.c.l.b16 %v128
  %v340 = vunpack.c.l.b16 %v129
  %v341 = vunpack.c.l.b16 %v130
  %v342 = vunpack.c.l.b16 %v131
  %v343 = vunpack.c.l.b16 %v132
  %v344 = vunpack.c.l.b16 %v133
  %v345 = vunpack.c.l.b16 %v134
  %v346 = vunpack.c.l.b16 %v135
  %v347 = vunpack.c.l.b16 %v136
  %v348 = vunpack.c.l.b16 %v137
  %v349 = vpack.c.b16 %v254, %v253
  %v350 = vpack.c.b16 %v256, %v255
  %v351 = vpack.c.b16 %v258, %v257
  %v352 = vpack.c.b16 %v260, %v259
  %v353 = vpack.c.b16 %v262, %v261
  %v354 = vpack.c.b16 %v264, %v263
  %v355 = vpack.c.b16 %v266, %v265
  %v356 = vpack.c.b16 %v268, %v267
  %v357 = vpack.c.b16 %v270, %v269
  %v358 = vpack.c.b16 %v272, %v271
  %v359 = vpack.c.b16 %v274, %v273
  %v360 = vpack.c.b16 %v276, %v275
  %v361 = vpack.c.b16 %v278, %v277
  %v362 = vpack.c.b16 %v280, %v279
  %v363 = vpack.c.b16 %v282, %v281
  %v364 = vpack.c.b16 %v284, %v283
  %v365 = vpack.c.b16 %v286, %v285
  %v366 = vpack.c.b16 %v288, %v287
  %v367 = vpack.c.b16 %v290, %v289
  %v368 = vpack.c.b16 %v292, %v291
  %v369 = vpack.c.b16 %v294, %v293
  %v370 = vpack.c.b16 %v296, %v295
  %v371 = vpack.c.b16 %v298, %v297
  %v372 = vpack.c.b16 %v300, %v299
  %v373 = vpack.c.b16 %v302, %v301
  %v374 = vpack.c.b16 %v304, %v303
  %v375 = vpack.c.b16 %v306, %v305
  %v376 = vpack.c.b16 %v308, %v307
  %v377 = vpack.c.b16 %v310, %v309
  %v378 = vpack.c.b16 %v312, %v311
  %v379 = vpack.c.b16 %v314, %v313
  %v380 = vpack.c.b16 %v316, %v315
  %v381 = vpack.c.b16 %v318, %v317
  %v382 = vpack.c.b16 %v320, %v319
  %v383 = vpack.c.b16 %v322, %v321
  %v384 = vpack.c.b16 %v324, %v323
  %v385 = vpack.c.b16 %v326, %v325
  %v386 = vpack.c.b16 %v328, %v327
  %v387 = vpack.c.b16 %v330, %v329
  %v388 = vpack.c.b16 %v332, %v331
  %v389 = vpack.c.b16 %v334, %v333
  %v390 = vpack.c.b16 %v336, %v335
  %v391 = vpack.c.b16 %v338, %v337
  %v392 = vpack.c.b16 %v340, %v339
  %v393 = vpack.c.b16 %v342, %v341
  %v394 = vpack.c.b16 %v344, %v343
  %v395 = vpack.c.b16 %v346, %v345
  %v396 = vpack.c.b16 %v348, %v347
  %445 = vmatprep.subr.bf16.mxu0 0
  %446 = vmatpush1.bf16.msra.mxu0 %v349
  %447 = vmatprep.subr.bf16.mxu0 0
  %448 = vmatpush1.bf16.msra.mxu0 %v350
  %449 = vmatprep.subr.bf16.mxu0 0
  %450 = vmatpush1.bf16.msra.mxu0 %v351
  %451 = vmatprep.subr.bf16.mxu0 0
  %452 = vmatpush1.bf16.msra.mxu0 %v352
  %453 = vmatprep.subr.bf16.mxu0 0
  %454 = vmatpush1.bf16.msra.mxu0 %v353
  %455 = vmatprep.subr.bf16.mxu0 0
  %456 = vmatpush1.bf16.msra.mxu0 %v354
  %457 = vmatprep.subr.bf16.mxu0 0
  %458 = vmatpush1.bf16.msra.mxu0 %v355
  %459 = vmatprep.subr.bf16.mxu0 0
  %460 = vmatpush1.bf16.msra.mxu0 %v356
  %461 = vmatprep.subr.bf16.mxu0 0
  %462 = vmatpush1.bf16.msra.mxu0 %v357
  %463 = vmatprep.subr.bf16.mxu0 0
  %464 = vmatpush1.bf16.msra.mxu0 %v358
  %465 = vmatprep.subr.bf16.mxu0 0
  %466 = vmatpush1.bf16.msra.mxu0 %v359
  %467 = vmatprep.subr.bf16.mxu0 0
  %468 = vmatpush1.bf16.msra.mxu0 %v360
  %469 = vmatprep.subr.bf16.mxu0 0
  %470 = vmatpush1.bf16.msra.mxu0 %v361
  %471 = vmatprep.subr.bf16.mxu0 0
  %472 = vmatpush1.bf16.msra.mxu0 %v362
  %473 = vmatprep.subr.bf16.mxu0 0
  %474 = vmatpush1.bf16.msra.mxu0 %v363
  %475 = vmatprep.subr.bf16.mxu0 0
  %476 = vmatpush1.bf16.msra.mxu0 %v364
  %477 = vmatprep.mubr.bf16.mxu0 %v139
  %478 = vmatmul.mubr.bf16.gmra.mrb[0].mxu0 %v138
  %v479 = vpop.f32.mrb[0].mxu0
  %v480 = vadd.f32 %v155, %v479
  %v481 = vpop.f32.mrb[0].mxu0
  %v482 = vpop.f32.mrb[0].mxu0
  %v483 = vadd.f32 %v155, %v482
  %v484 = vpop.f32.mrb[0].mxu0
  %485 = vmatprep.mubr.bf16.mxu0 %v145
  %486 = vmatmul.mubr.bf16.gmra.mrb[0].mxu0 %v144
  %v487 = vpop.f32.mrb[0].mxu0
  %v488 = vadd.f32 %v155, %v487
  %v489 = vpop.f32.mrb[0].mxu0
  %v490 = vpop.f32.mrb[0].mxu0
  %v491 = vadd.f32 %v155, %v490
  %v492 = vpop.f32.mrb[0].mxu0
  %493 = vdwg.mxu0
  %494 = vmatprep.subr.bf16.mxu0 0
  %495 = vmatpush1.bf16.msra.mxu0 %v365
  %496 = vmatprep.subr.bf16.mxu0 0
  %497 = vmatpush1.bf16.msra.mxu0 %v366
  %498 = vmatprep.subr.bf16.mxu0 0
  %499 = vmatpush1.bf16.msra.mxu0 %v367
  %500 = vmatprep.subr.bf16.mxu0 0
  %501 = vmatpush1.bf16.msra.mxu0 %v368
  %502 = vmatprep.subr.bf16.mxu0 0
  %503 = vmatpush1.bf16.msra.mxu0 %v369
  %504 = vmatprep.subr.bf16.mxu0 0
  %505 = vmatpush1.bf16.msra.mxu0 %v370
  %506 = vmatprep.subr.bf16.mxu0 0
  %507 = vmatpush1.bf16.msra.mxu0 %v371
  %508 = vmatprep.subr.bf16.mxu0 0
  %509 = vmatpush1.bf16.msra.mxu0 %v372
  %510 = vmatprep.subr.bf16.mxu0 0
  %511 = vmatpush1.bf16.msra.mxu0 %v373
  %512 = vmatprep.subr.bf16.mxu0 0
  %513 = vmatpush1.bf16.msra.mxu0 %v374
  %514 = vmatprep.subr.bf16.mxu0 0
  %515 = vmatpush1.bf16.msra.mxu0 %v375
  %516 = vmatprep.subr.bf16.mxu0 0
  %517 = vmatpush1.bf16.msra.mxu0 %v376
  %518 = vmatprep.subr.bf16.mxu0 0
  %519 = vmatpush1.bf16.msra.mxu0 %v377
  %520 = vmatprep.subr.bf16.mxu0 0
  %521 = vmatpush1.bf16.msra.mxu0 %v378
  %522 = vmatprep.subr.bf16.mxu0 0
  %523 = vmatpush1.bf16.msra.mxu0 %v379
  %524 = vmatprep.subr.bf16.mxu0 0
  %525 = vmatpush1.bf16.msra.mxu0 %v380
  %526 = vmatprep.mubr.bf16.mxu0 %v141
  %527 = vmatmul.mubr.bf16.gmra.mrb[0].mxu0 %v140
  %v528 = vpop.f32.mrb[0].mxu0
  %v529 = vadd.f32 %v480, %v528
  %v530 = vpop.f32.mrb[0].mxu0
  %v531 = vpop.f32.mrb[0].mxu0
  %v532 = vadd.f32 %v483, %v531
  %v533 = vpop.f32.mrb[0].mxu0
  %534 = vmatprep.mubr.bf16.mxu0 %v147
  %535 = vmatmul.mubr.bf16.gmra.mrb[0].mxu0 %v146
  %v536 = vpop.f32.mrb[0].mxu0
  %v537 = vadd.f32 %v488, %v536
  %v538 = vpop.f32.mrb[0].mxu0
  %v539 = vpop.f32.mrb[0].mxu0
  %v540 = vadd.f32 %v491, %v539
  %v541 = vpop.f32.mrb[0].mxu0
  %542 = vdwg.mxu0
  %543 = vmatprep.subr.bf16.mxu0 0
  %544 = vmatpush1.bf16.msra.mxu0 %v381
  %545 = vmatprep.subr.bf16.mxu0 0
  %546 = vmatpush1.bf16.msra.mxu0 %v382
  %547 = vmatprep.subr.bf16.mxu0 0
  %548 = vmatpush1.bf16.msra.mxu0 %v383
  %549 = vmatprep.subr.bf16.mxu0 0
  %550 = vmatpush1.bf16.msra.mxu0 %v384
  %551 = vmatprep.subr.bf16.mxu0 0
  %552 = vmatpush1.bf16.msra.mxu0 %v385
  %553 = vmatprep.subr.bf16.mxu0 0
  %554 = vmatpush1.bf16.msra.mxu0 %v386
  %555 = vmatprep.subr.bf16.mxu0 0
  %556 = vmatpush1.bf16.msra.mxu0 %v387
  %557 = vmatprep.subr.bf16.mxu0 0
  %558 = vmatpush1.bf16.msra.mxu0 %v388
  %559 = vmatprep.subr.bf16.mxu0 0
  %560 = vmatpush1.bf16.msra.mxu0 %v389
  %561 = vmatprep.subr.bf16.mxu0 0
  %562 = vmatpush1.bf16.msra.mxu0 %v390
  %563 = vmatprep.subr.bf16.mxu0 0
  %564 = vmatpush1.bf16.msra.mxu0 %v391
  %565 = vmatprep.subr.bf16.mxu0 0
  %566 = vmatpush1.bf16.msra.mxu0 %v392
  %567 = vmatprep.subr.bf16.mxu0 0
  %568 = vmatpush1.bf16.msra.mxu0 %v393
  %569 = vmatprep.subr.bf16.mxu0 0
  %570 = vmatpush1.bf16.msra.mxu0 %v394
  %571 = vmatprep.subr.bf16.mxu0 0
  %572 = vmatpush1.bf16.msra.mxu0 %v395
  %573 = vmatprep.subr.bf16.mxu0 0
  %574 = vmatpush1.bf16.msra.mxu0 %v396
  %575 = vmatprep.mubr.bf16.mxu0 %v143
  %576 = vmatmul.mubr.bf16.gmra.mrb[0].mxu0 %v142
  %v577 = vpop.f32.mrb[0].mxu0
  %v578 = vadd.f32 %v529, %v577
  %v579 = vpop.f32.mrb[0].mxu0
  %v580 = vpop.f32.mrb[0].mxu0
  %v581 = vadd.f32 %v532, %v580
  %v582 = vpop.f32.mrb[0].mxu0
  %583 = vmatprep.mubr.bf16.mxu0 %v149
  %584 = vmatmul.mubr.bf16.gmra.mrb[0].mxu0 %v148
  %v585 = vpop.f32.mrb[0].mxu0
  %v586 = vadd.f32 %v537, %v585
  %v587 = vpop.f32.mrb[0].mxu0
  %v588 = vpop.f32.mrb[0].mxu0
  %v589 = vadd.f32 %v540, %v588
  %v590 = vpop.f32.mrb[0].mxu0
  %591 = vdwg.mxu0
  %v592 = vld [vmem:[%s3] sm:$0xff]
  %v593 = vld [vmem:[%s3 + $0x8] sm:$0xff]
  %v594 = vadd.f32 %v578, %v592
  %v595 = vadd.f32 %v581, %v593
  %v596 = vadd.f32 %v586, %v592
  %v597 = vadd.f32 %v589, %v593
  %598 = vst [vmem:[%s4] sm:$0xff] %v594
  %599 = vst [vmem:[%s4 + $0x8] sm:$0xff] %v595
  %600 = vst [vmem:[%s4 + $0x10] sm:$0xff] %v596
  %601 = vst [vmem:[%s4 + $0x18] sm:$0xff] %v597
  // Predicated region
  $region18: #{_lambda_.2} parent=0 // pred_check
    _
  $region19: #{_lambda_.2} parent=0 // pred_check_branch
    %603 = sbr.rel (0) target = $region21
  $region20: #{_lambda_.2} parent=0 // pred_region
    _
  $region21: #{_lambda_.2} parent=0 // pred_fallthru
    _
  // Predicated region
  $region22: #{_lambda_.2} parent=0 // pred_check
    _
  $region23: #{_lambda_.2} parent=0 // pred_check_branch
    %605 = sbr.rel (0) target = $region25
  $region24: #{_lambda_.2} parent=0 // pred_region
    _
  $region25: #{_lambda_.2} parent=0 // pred_fallthru
    _

// kernel: _lambda_.3
$region0: #{_lambda_.3}
  #allocation0 [shape = 'u32[]', space=smem, size = 0x4, offset = 0x4, fixed_abs, tag = 'smem constant byte address 0x4 - core index']
  #allocation1 [shape = 'u32[144,128]{1,0:T(1,128)}', space=vmem, size = 0x12000, scoped, tag = 'internal scratch']
  #allocation2 [shape = 'f32[32,128]{1,0:T(8,128)}', space=vmem, size = 0x4000, scoped, tag = 'scratch operand']
  #allocation3 [shape = 's32[1]{0}', space=sflag, size = 0x4, scoped, tag = 'scratch operand']
  #allocation6 [shape = 's32[]', space=sflag, size = 0x4, offset = 0, fixed_abs, tag = 'sflag constant byte address 0x0 - dummy sync flag']
  %s0 = inlined_call_operand.vmem [shape: f32[32,128], index: 0, kind: input, shape index: {}]
  %s1 = inlined_call_operand.vmem [shape: f32[2,1,128], index: 1, kind: input, shape index: {}]
  %s2 = inlined_call_operand.vmem [shape: f32[2,1,128], index: 2, kind: input, shape index: {}]
  %s3 = inlined_call_operand.vmem [shape: bf16[2,128,384], index: 3, kind: input, shape index: {}]
  %s4 = inlined_call_operand.vmem [shape: f32[2,1,384], index: 4, kind: input, shape index: {}]
  %s5 = inlined_call_operand.vmem [shape: bf16[2,128,128], index: 5, kind: input, shape index: {}]
  %s6 = inlined_call_operand.vmem [shape: f32[2,1,128], index: 6, kind: input, shape index: {}]
  %s7 = inlined_call_operand.vmem [shape: f32[2,1,128], index: 7, kind: input, shape index: {}]
  %s8 = inlined_call_operand.vmem [shape: f32[2,1,128], index: 8, kind: input, shape index: {}]
  %s9 = inlined_call_operand.vmem [shape: bf16[2,128,512], index: 9, kind: input, shape index: {}]
  %s10 = inlined_call_operand.vmem [shape: f32[2,1,512], index: 10, kind: input, shape index: {}]
  %s11 = inlined_call_operand.vmem [shape: bf16[2,512,128], index: 11, kind: input, shape index: {}]
  %s12 = inlined_call_operand.vmem [shape: f32[2,1,128], index: 12, kind: input, shape index: {}]
  %s13 = inlined_call_operand.vmem [shape: f32[1,128], index: 13, kind: input, shape index: {}]
  %s14 = inlined_call_operand.vmem [shape: f32[1,128], index: 14, kind: input, shape index: {}]
  %s15 = inlined_call_operand.hbm [shape: f32[32,128], index: 15, kind: output, shape index: {}]
  %s16 = sld [smem:[#allocation0]]
  $region131: #{_lambda_.3} parent=0
    _
  %s18 = ssub.s32 1, %s16
  %s19 = scalar_select 0, %s18, %s16
  $region1: #{_lambda_.3} parent=0
    #allocation4 [shape = 'u8[16384]{0}', space=vmem, size = 0x4000, scoped, tag = 'output window, operand 0, single buffered']
    #allocation5 [shape = 's32[2]{0}', space=sflag, size = 0x8, scoped, tag = 'scoped memory for _lambda_.3']
    %20 = vsyncpa [#allocation5], 0
    loop: start=0, step=1, limit=4
    $region2: #{_lambda_.3} parent=1 // loop_pre_header
      _
    $region3: #{_lambda_.3} parent=1 // loop_header
      %s22 = sphi 0, %s26
      %p23 = scmp.ge.s32.totalorder %s22, 4
      %s29 = sphi 0, %s41
      %s30 = sphi 0, %s37
      %s31 = sphi 0, %s29
      %s32 = sphi 0, %s30
      %s33 = sphi 0, %s31
      %s34 = sphi 0, %s32
      %s44 = sphi 0, %s46
      %s47 = sphi 0, %s44
      %s48 = sphi 0, %s47
      %s64 = sphi 0, %s48
      %s70 = sphi 0, %s72
      %s73 = sphi 0, %s70
      %s74 = sphi 0, %s73
      %s90 = sphi 0, %s74
      %s96 = sphi 0, %s98
      %s99 = sphi 0, %s96
      %s100 = sphi 0, %s99
      %s116 = sphi 0, %s100
      %s122 = sphi 0, %s124
      %s125 = sphi 0, %s122
      %s126 = sphi 0, %s125
      %s142 = sphi 0, %s126
      %s148 = sphi 0, %s150
      %s151 = sphi 0, %s148
      %s152 = sphi 0, %s151
      %s168 = sphi 0, %s152
      %s174 = sphi 0, %s176
      %s177 = sphi 0, %s174
      %s178 = sphi 0, %s177
      %s194 = sphi 0, %s178
      %s200 = sphi 0, %s202
      %s203 = sphi 0, %s200
      %s204 = sphi 0, %s203
      %s220 = sphi 0, %s204
      %s226 = sphi 0, %s228
      %s229 = sphi 0, %s226
      %s230 = sphi 0, %s229
      %s246 = sphi 0, %s230
      %s252 = sphi 0, %s254
      %s255 = sphi 0, %s252
      %s256 = sphi 0, %s255
      %s272 = sphi 0, %s256
      %s278 = sphi 0, %s280
      %s281 = sphi 0, %s278
      %s282 = sphi 0, %s281
      %s298 = sphi 0, %s282
      %s304 = sphi 0, %s306
      %s307 = sphi 0, %s304
      %s308 = sphi 0, %s307
      %s324 = sphi 0, %s308
      %s330 = sphi 0, %s332
      %s333 = sphi 0, %s330
      %s334 = sphi 0, %s333
      %s350 = sphi 0, %s334
      %s354 = sphi 0, %s354
      %s356 = sphi 0, %s354
      %s357 = sphi 0, %s356
      %s371 = sphi 0, %s357
      %s375 = sphi 0, %s375
      %s377 = sphi 0, %s375
      %s378 = sphi 0, %s377
      %s392 = sphi 0, %s378
      %s398 = sphi 0, %s400
      %s401 = sphi 0, %s398
      %s402 = sphi 0, %s401
      %s418 = sphi 0, %s402
    $region4: #{_lambda_.3} parent=1 // loop_header_branch
      %25 = sbr.rel (%p23) target = $region8
    $region5: #{_lambda_.3} parent=1 // loop_body
      %s27 = ssub.s32 %s22, 1
      %s28 = ssub.s32 %s22, 2
      %s35 = sadd.s32 1, %s30
      %p36 = scmp.ge.s32.totalorder %s35, 2
      %s37 = scalar_select %p36, 0, %s35
      %s38 = sadd.s32 1, %s29
      %s39 = scalar_select %p36, %s38, %s29
      %p40 = scmp.ge.s32.totalorder %s39, 1
      %s41 = scalar_select %p40, 0, %s39
      %s42 = ssub.s32 %s30, %s37
      %p43 = scmp.eq.s32.totalorder %s42, 0
      %s45 = sadd.s32 %s44, 1
      %s46 = scalar_select %p43, %s44, %s45
      %p49 = pneg %p43
      %p50 = scmp.eq.s32.totalorder %s22, 1
      %p51 = por %p49, %p50
      %p52 = scmp.ne.s32.totalorder %s44, %s47
      %p53 = scmp.eq.s32.totalorder %s22, 0
      %p54 = por %p52, %p53
      %p55 = scmp.ne.s32.totalorder %s44, %s47
      %p56 = scmp.eq.s32.totalorder %s27, 1
      %p57 = por %p55, %p56
      %p58 = scmp.ne.s32.totalorder %s47, %s48
      %p59 = scmp.eq.s32.totalorder %s27, 0
      %p60 = por %p58, %p59
      %p61 = scmp.ne.s32.totalorder %s47, %s48
      %p62 = scmp.eq.s32.totalorder %s28, 1
      %p63 = por %p61, %p62
      %p65 = scmp.ne.s32.totalorder %s48, %s64
      %p66 = scmp.eq.s32.totalorder %s28, 0
      %p67 = por %p65, %p66
      %s68 = ssub.s32 %s30, %s37
      %p69 = scmp.eq.s32.totalorder %s68, 0
      %s71 = sadd.s32 %s70, 1
      %s72 = scalar_select %p69, %s70, %s71
      %p75 = pneg %p69
      %p76 = scmp.eq.s32.totalorder %s22, 1
      %p77 = por %p75, %p76
      %p78 = scmp.ne.s32.totalorder %s70, %s73
      %p79 = scmp.eq.s32.totalorder %s22, 0
      %p80 = por %p78, %p79
      %p81 = scmp.ne.s32.totalorder %s70, %s73
      %p82 = scmp.eq.s32.totalorder %s27, 1
      %p83 = por %p81, %p82
      %p84 = scmp.ne.s32.totalorder %s73, %s74
      %p85 = scmp.eq.s32.totalorder %s27, 0
      %p86 = por %p84, %p85
      %p87 = scmp.ne.s32.totalorder %s73, %s74
      %p88 = scmp.eq.s32.totalorder %s28, 1
      %p89 = por %p87, %p88
      %p91 = scmp.ne.s32.totalorder %s74, %s90
      %p92 = scmp.eq.s32.totalorder %s28, 0
      %p93 = por %p91, %p92
      %s94 = ssub.s32 %s30, %s37
      %p95 = scmp.eq.s32.totalorder %s94, 0
      %s97 = sadd.s32 %s96, 1
      %s98 = scalar_select %p95, %s96, %s97
      %p101 = pneg %p95
      %p102 = scmp.eq.s32.totalorder %s22, 1
      %p103 = por %p101, %p102
      %p104 = scmp.ne.s32.totalorder %s96, %s99
      %p105 = scmp.eq.s32.totalorder %s22, 0
      %p106 = por %p104, %p105
      %p107 = scmp.ne.s32.totalorder %s96, %s99
      %p108 = scmp.eq.s32.totalorder %s27, 1
      %p109 = por %p107, %p108
      %p110 = scmp.ne.s32.totalorder %s99, %s100
      %p111 = scmp.eq.s32.totalorder %s27, 0
      %p112 = por %p110, %p111
      %p113 = scmp.ne.s32.totalorder %s99, %s100
      %p114 = scmp.eq.s32.totalorder %s28, 1
      %p115 = por %p113, %p114
      %p117 = scmp.ne.s32.totalorder %s100, %s116
      %p118 = scmp.eq.s32.totalorder %s28, 0
      %p119 = por %p117, %p118
      %s120 = ssub.s32 %s30, %s37
      %p121 = scmp.eq.s32.totalorder %s120, 0
      %s123 = sadd.s32 %s122, 1
      %s124 = scalar_select %p121, %s122, %s123
      %p127 = pneg %p121
      %p128 = scmp.eq.s32.totalorder %s22, 1
      %p129 = por %p127, %p128
      %p130 = scmp.ne.s32.totalorder %s122, %s125
      %p131 = scmp.eq.s32.totalorder %s22, 0
      %p132 = por %p130, %p131
      %p133 = scmp.ne.s32.totalorder %s122, %s125
      %p134 = scmp.eq.s32.totalorder %s27, 1
      %p135 = por %p133, %p134
      %p136 = scmp.ne.s32.totalorder %s125, %s126
      %p137 = scmp.eq.s32.totalorder %s27, 0
      %p138 = por %p136, %p137
      %p139 = scmp.ne.s32.totalorder %s125, %s126
      %p140 = scmp.eq.s32.totalorder %s28, 1
      %p141 = por %p139, %p140
      %p143 = scmp.ne.s32.totalorder %s126, %s142
      %p144 = scmp.eq.s32.totalorder %s28, 0
      %p145 = por %p143, %p144
      %s146 = ssub.s32 %s30, %s37
      %p147 = scmp.eq.s32.totalorder %s146, 0
      %s149 = sadd.s32 %s148, 1
      %s150 = scalar_select %p147, %s148, %s149
      %p153 = pneg %p147
      %p154 = scmp.eq.s32.totalorder %s22, 1
      %p155 = por %p153, %p154
      %p156 = scmp.ne.s32.totalorder %s148, %s151
      %p157 = scmp.eq.s32.totalorder %s22, 0
      %p158 = por %p156, %p157
      %p159 = scmp.ne.s32.totalorder %s148, %s151
      %p160 = scmp.eq.s32.totalorder %s27, 1
      %p161 = por %p159, %p160
      %p162 = scmp.ne.s32.totalorder %s151, %s152
      %p163 = scmp.eq.s32.totalorder %s27, 0
      %p164 = por %p162, %p163
      %p165 = scmp.ne.s32.totalorder %s151, %s152
      %p166 = scmp.eq.s32.totalorder %s28, 1
      %p167 = por %p165, %p166
      %p169 = scmp.ne.s32.totalorder %s152, %s168
      %p170 = scmp.eq.s32.totalorder %s28, 0
      %p171 = por %p169, %p170
      %s172 = ssub.s32 %s30, %s37
      %p173 = scmp.eq.s32.totalorder %s172, 0
      %s175 = sadd.s32 %s174, 1
      %s176 = scalar_select %p173, %s174, %s175
      %p179 = pneg %p173
      %p180 = scmp.eq.s32.totalorder %s22, 1
      %p181 = por %p179, %p180
      %p182 = scmp.ne.s32.totalorder %s174, %s177
      %p183 = scmp.eq.s32.totalorder %s22, 0
      %p184 = por %p182, %p183
      %p185 = scmp.ne.s32.totalorder %s174, %s177
      %p186 = scmp.eq.s32.totalorder %s27, 1
      %p187 = por %p185, %p186
      %p188 = scmp.ne.s32.totalorder %s177, %s178
      %p189 = scmp.eq.s32.totalorder %s27, 0
      %p190 = por %p188, %p189
      %p191 = scmp.ne.s32.totalorder %s177, %s178
      %p192 = scmp.eq.s32.totalorder %s28, 1
      %p193 = por %p191, %p192
      %p195 = scmp.ne.s32.totalorder %s178, %s194
      %p196 = scmp.eq.s32.totalorder %s28, 0
      %p197 = por %p195, %p196
      %s198 = ssub.s32 %s30, %s37
      %p199 = scmp.eq.s32.totalorder %s198, 0
      %s201 = sadd.s32 %s200, 1
      %s202 = scalar_select %p199, %s200, %s201
      %p205 = pneg %p199
      %p206 = scmp.eq.s32.totalorder %s22, 1
      %p207 = por %p205, %p206
      %p208 = scmp.ne.s32.totalorder %s200, %s203
      %p209 = scmp.eq.s32.totalorder %s22, 0
      %p210 = por %p208, %p209
      %p211 = scmp.ne.s32.totalorder %s200, %s203
      %p212 = scmp.eq.s32.totalorder %s27, 1
      %p213 = por %p211, %p212
      %p214 = scmp.ne.s32.totalorder %s203, %s204
      %p215 = scmp.eq.s32.totalorder %s27, 0
      %p216 = por %p214, %p215
      %p217 = scmp.ne.s32.totalorder %s203, %s204
      %p218 = scmp.eq.s32.totalorder %s28, 1
      %p219 = por %p217, %p218
      %p221 = scmp.ne.s32.totalorder %s204, %s220
      %p222 = scmp.eq.s32.totalorder %s28, 0
      %p223 = por %p221, %p222
      %s224 = ssub.s32 %s30, %s37
      %p225 = scmp.eq.s32.totalorder %s224, 0
      %s227 = sadd.s32 %s226, 1
      %s228 = scalar_select %p225, %s226, %s227
      %p231 = pneg %p225
      %p232 = scmp.eq.s32.totalorder %s22, 1
      %p233 = por %p231, %p232
      %p234 = scmp.ne.s32.totalorder %s226, %s229
      %p235 = scmp.eq.s32.totalorder %s22, 0
      %p236 = por %p234, %p235
      %p237 = scmp.ne.s32.totalorder %s226, %s229
      %p238 = scmp.eq.s32.totalorder %s27, 1
      %p239 = por %p237, %p238
      %p240 = scmp.ne.s32.totalorder %s229, %s230
      %p241 = scmp.eq.s32.totalorder %s27, 0
      %p242 = por %p240, %p241
      %p243 = scmp.ne.s32.totalorder %s229, %s230
      %p244 = scmp.eq.s32.totalorder %s28, 1
      %p245 = por %p243, %p244
      %p247 = scmp.ne.s32.totalorder %s230, %s246
      %p248 = scmp.eq.s32.totalorder %s28, 0
      %p249 = por %p247, %p248
      %s250 = ssub.s32 %s30, %s37
      %p251 = scmp.eq.s32.totalorder %s250, 0
      %s253 = sadd.s32 %s252, 1
      %s254 = scalar_select %p251, %s252, %s253
      %p257 = pneg %p251
      %p258 = scmp.eq.s32.totalorder %s22, 1
      %p259 = por %p257, %p258
      %p260 = scmp.ne.s32.totalorder %s252, %s255
      %p261 = scmp.eq.s32.totalorder %s22, 0
      %p262 = por %p260, %p261
      %p263 = scmp.ne.s32.totalorder %s252, %s255
      %p264 = scmp.eq.s32.totalorder %s27, 1
      %p265 = por %p263, %p264
      %p266 = scmp.ne.s32.totalorder %s255, %s256
      %p267 = scmp.eq.s32.totalorder %s27, 0
      %p268 = por %p266, %p267
      %p269 = scmp.ne.s32.totalorder %s255, %s256
      %p270 = scmp.eq.s32.totalorder %s28, 1
      %p271 = por %p269, %p270
      %p273 = scmp.ne.s32.totalorder %s256, %s272
      %p274 = scmp.eq.s32.totalorder %s28, 0
      %p275 = por %p273, %p274
      %s276 = ssub.s32 %s30, %s37
      %p277 = scmp.eq.s32.totalorder %s276, 0
      %s279 = sadd.s32 %s278, 1
      %s280 = scalar_select %p277, %s278, %s279
      %p283 = pneg %p277
      %p284 = scmp.eq.s32.totalorder %s22, 1
      %p285 = por %p283, %p284
      %p286 = scmp.ne.s32.totalorder %s278, %s281
      %p287 = scmp.eq.s32.totalorder %s22, 0
      %p288 = por %p286, %p287
      %p289 = scmp.ne.s32.totalorder %s278, %s281
      %p290 = scmp.eq.s32.totalorder %s27, 1
      %p291 = por %p289, %p290
      %p292 = scmp.ne.s32.totalorder %s281, %s282
      %p293 = scmp.eq.s32.totalorder %s27, 0
      %p294 = por %p292, %p293
      %p295 = scmp.ne.s32.totalorder %s281, %s282
      %p296 = scmp.eq.s32.totalorder %s28, 1
      %p297 = por %p295, %p296
      %p299 = scmp.ne.s32.totalorder %s282, %s298
      %p300 = scmp.eq.s32.totalorder %s28, 0
      %p301 = por %p299, %p300
      %s302 = ssub.s32 %s30, %s37
      %p303 = scmp.eq.s32.totalorder %s302, 0
      %s305 = sadd.s32 %s304, 1
      %s306 = scalar_select %p303, %s304, %s305
      %p309 = pneg %p303
      %p310 = scmp.eq.s32.totalorder %s22, 1
      %p311 = por %p309, %p310
      %p312 = scmp.ne.s32.totalorder %s304, %s307
      %p313 = scmp.eq.s32.totalorder %s22, 0
      %p314 = por %p312, %p313
      %p315 = scmp.ne.s32.totalorder %s304, %s307
      %p316 = scmp.eq.s32.totalorder %s27, 1
      %p317 = por %p315, %p316
      %p318 = scmp.ne.s32.totalorder %s307, %s308
      %p319 = scmp.eq.s32.totalorder %s27, 0
      %p320 = por %p318, %p319
      %p321 = scmp.ne.s32.totalorder %s307, %s308
      %p322 = scmp.eq.s32.totalorder %s28, 1
      %p323 = por %p321, %p322
      %p325 = scmp.ne.s32.totalorder %s308, %s324
      %p326 = scmp.eq.s32.totalorder %s28, 0
      %p327 = por %p325, %p326
      %s328 = ssub.s32 %s30, %s37
      %p329 = scmp.eq.s32.totalorder %s328, 0
      %s331 = sadd.s32 %s330, 1
      %s332 = scalar_select %p329, %s330, %s331
      %p335 = pneg %p329
      %p336 = scmp.eq.s32.totalorder %s22, 1
      %p337 = por %p335, %p336
      %p338 = scmp.ne.s32.totalorder %s330, %s333
      %p339 = scmp.eq.s32.totalorder %s22, 0
      %p340 = por %p338, %p339
      %p341 = scmp.ne.s32.totalorder %s330, %s333
      %p342 = scmp.eq.s32.totalorder %s27, 1
      %p343 = por %p341, %p342
      %p344 = scmp.ne.s32.totalorder %s333, %s334
      %p345 = scmp.eq.s32.totalorder %s27, 0
      %p346 = por %p344, %p345
      %p347 = scmp.ne.s32.totalorder %s333, %s334
      %p348 = scmp.eq.s32.totalorder %s28, 1
      %p349 = por %p347, %p348
      %p351 = scmp.ne.s32.totalorder %s334, %s350
      %p352 = scmp.eq.s32.totalorder %s28, 0
      %p353 = por %p351, %p352
      %s355 = sadd.s32 %s354, 1
      %p358 = scmp.eq.s32.totalorder %s22, 1
      %p359 = scmp.ne.s32.totalorder %s354, %s356
      %p360 = scmp.eq.s32.totalorder %s22, 0
      %p361 = por %p359, %p360
      %p362 = scmp.ne.s32.totalorder %s354, %s356
      %p363 = scmp.eq.s32.totalorder %s27, 1
      %p364 = por %p362, %p363
      %p365 = scmp.ne.s32.totalorder %s356, %s357
      %p366 = scmp.eq.s32.totalorder %s27, 0
      %p367 = por %p365, %p366
      %p368 = scmp.ne.s32.totalorder %s356, %s357
      %p369 = scmp.eq.s32.totalorder %s28, 1
      %p370 = por %p368, %p369
      %p372 = scmp.ne.s32.totalorder %s357, %s371
      %p373 = scmp.eq.s32.totalorder %s28, 0
      %p374 = por %p372, %p373
      %s376 = sadd.s32 %s375, 1
      %p379 = scmp.eq.s32.totalorder %s22, 1
      %p380 = scmp.ne.s32.totalorder %s375, %s377
      %p381 = scmp.eq.s32.totalorder %s22, 0
      %p382 = por %p380, %p381
      %p383 = scmp.ne.s32.totalorder %s375, %s377
      %p384 = scmp.eq.s32.totalorder %s27, 1
      %p385 = por %p383, %p384
      %p386 = scmp.ne.s32.totalorder %s377, %s378
      %p387 = scmp.eq.s32.totalorder %s27, 0
      %p388 = por %p386, %p387
      %p389 = scmp.ne.s32.totalorder %s377, %s378
      %p390 = scmp.eq.s32.totalorder %s28, 1
      %p391 = por %p389, %p390
      %p393 = scmp.ne.s32.totalorder %s378, %s392
      %p394 = scmp.eq.s32.totalorder %s28, 0
      %p395 = por %p393, %p394
      %s396 = ssub.s32 %s29, %s41
      %p397 = scmp.eq.s32.totalorder %s396, 0
      %s399 = sadd.s32 %s398, 1
      %s400 = scalar_select %p397, %s398, %s399
      %p403 = pneg %p397
      %p404 = scmp.eq.s32.totalorder %s22, 1
      %p405 = por %p403, %p404
      %p406 = scmp.ne.s32.totalorder %s398, %s401
      %p407 = scmp.eq.s32.totalorder %s22, 0
      %p408 = por %p406, %p407
      %p409 = scmp.ne.s32.totalorder %s398, %s401
      %p410 = scmp.eq.s32.totalorder %s27, 1
      %p411 = por %p409, %p410
      %p412 = scmp.ne.s32.totalorder %s401, %s402
      %p413 = scmp.eq.s32.totalorder %s27, 0
      %p414 = por %p412, %p413
      %p415 = scmp.ne.s32.totalorder %s401, %s402
      %p416 = scmp.eq.s32.totalorder %s28, 1
      %p417 = por %p415, %p416
      %p419 = scmp.ne.s32.totalorder %s402, %s418
      %p420 = scmp.eq.s32.totalorder %s28, 0
      %p421 = por %p419, %p420
      %p422 = scmp.le.s32.totalorder 1, %s22
      %p423 = scmp.lt.s32.totalorder %s22, 3
      %p424 = pnand %p422, %p423
      %p425 = pneg %p424
      // Predicated region
      $region9: #{_lambda_.3} parent=5 // pred_check
        _
      $region10: #{_lambda_.3} parent=5 // pred_check_branch
        %427 = sbr.rel (%p424) target = $region12
      $region11: #{_lambda_.3} parent=5 // pred_region
        %s428 = ssub.s32 %s22, 1
        // Predicated region
        $region13: #{_lambda_.3} parent=11 // pred_check
          %p429 = pneg %p367
        $region14: #{_lambda_.3} parent=11 // pred_check_branch
          %431 = sbr.rel (%p429) target = $region16
        $region15: #{_lambda_.3} parent=11 // pred_region
          _
        $region16: #{_lambda_.3} parent=11 // pred_fallthru
          _
        // Predicated region
        $region17: #{_lambda_.3} parent=11 // pred_check
          %p432 = pneg %p388
        $region18: #{_lambda_.3} parent=11 // pred_check_branch
          %434 = sbr.rel (%p432) target = $region20
        $region19: #{_lambda_.3} parent=11 // pred_region
          _
        $region20: #{_lambda_.3} parent=11 // pred_fallthru
          _
      $region12: #{_lambda_.3} parent=5 // pred_fallthru
        _
      %p435 = scmp.lt.s32.totalorder %s22, 2
      // Predicated region
      $region21: #{_lambda_.3} parent=5 // pred_check
        %p436 = pneg %p435
      $region22: #{_lambda_.3} parent=5 // pred_check_branch
        %438 = sbr.rel (%p436) target = $region24
      $region23: #{_lambda_.3} parent=5 // pred_region
        // Predicated region
        $region25: #{_lambda_.3} parent=23 // pred_check
          %p439 = pneg %p54
        $region26: #{_lambda_.3} parent=23 // pred_check_branch
          %441 = sbr.rel (%p439) target = $region28
        $region27: #{_lambda_.3} parent=23 // pred_region
          %p442 = scmp.lt.s32.totalorder %s30, 1
          %s443 = scalar_select %p442, %s30, 1
          %s444 = scalar_lea.vmem %s1, %s443
        $region28: #{_lambda_.3} parent=23 // pred_fallthru
          _
        // Predicated region
        $region29: #{_lambda_.3} parent=23 // pred_check
          %p445 = pneg %p80
        $region30: #{_lambda_.3} parent=23 // pred_check_branch
          %447 = sbr.rel (%p445) target = $region32
        $region31: #{_lambda_.3} parent=23 // pred_region
          %p448 = scmp.lt.s32.totalorder %s30, 1
          %s449 = scalar_select %p448, %s30, 1
          %s450 = scalar_lea.vmem %s2, %s449
        $region32: #{_lambda_.3} parent=23 // pred_fallthru
          _
        // Predicated region
        $region33: #{_lambda_.3} parent=23 // pred_check
          %p451 = pneg %p106
        $region34: #{_lambda_.3} parent=23 // pred_check_branch
          %453 = sbr.rel (%p451) target = $region36
        $region35: #{_lambda_.3} parent=23 // pred_region
          %p454 = scmp.lt.s32.totalorder %s30, 1
          %s455 = scalar_select %p454, %s30, 1
          %s456 = smul.addr %s455, 48
          %s457 = smul.addr %s456, 4
          %s458 = scalar_lea.vmem %s3, %s457
        $region36: #{_lambda_.3} parent=23 // pred_fallthru
          _
        // Predicated region
        $region37: #{_lambda_.3} parent=23 // pred_check
          %p459 = pneg %p132
        $region38: #{_lambda_.3} parent=23 // pred_check_branch
          %461 = sbr.rel (%p459) target = $region40
        $region39: #{_lambda_.3} parent=23 // pred_region
          %p462 = scmp.lt.s32.totalorder %s30, 1
          %s463 = scalar_select %p462, %s30, 1
          %s464 = smul.addr %s463, 3
          %s465 = scalar_lea.vmem %s4, %s464
        $region40: #{_lambda_.3} parent=23 // pred_fallthru
          _
        // Predicated region
        $region41: #{_lambda_.3} parent=23 // pred_check
          %p466 = pneg %p158
        $region42: #{_lambda_.3} parent=23 // pred_check_branch
          %468 = sbr.rel (%p466) target = $region44
        $region43: #{_lambda_.3} parent=23 // pred_region
          %p469 = scmp.lt.s32.totalorder %s30, 1
          %s470 = scalar_select %p469, %s30, 1
          %s471 = smul.addr %s470, 16
          %s472 = smul.addr %s471, 4
          %s473 = scalar_lea.vmem %s5, %s472
        $region44: #{_lambda_.3} parent=23 // pred_fallthru
          _
        // Predicated region
        $region45: #{_lambda_.3} parent=23 // pred_check
          %p474 = pneg %p184
        $region46: #{_lambda_.3} parent=23 // pred_check_branch
          %476 = sbr.rel (%p474) target = $region48
        $region47: #{_lambda_.3} parent=23 // pred_region
          %p477 = scmp.lt.s32.totalorder %s30, 1
          %s478 = scalar_select %p477, %s30, 1
          %s479 = scalar_lea.vmem %s6, %s478
        $region48: #{_lambda_.3} parent=23 // pred_fallthru
          _
        // Predicated region
        $region49: #{_lambda_.3} parent=23 // pred_check
          %p480 = pneg %p210
        $region50: #{_lambda_.3} parent=23 // pred_check_branch
          %482 = sbr.rel (%p480) target = $region52
        $region51: #{_lambda_.3} parent=23 // pred_region
          %p483 = scmp.lt.s32.totalorder %s30, 1
          %s484 = scalar_select %p483, %s30, 1
          %s485 = scalar_lea.vmem %s7, %s484
        $region52: #{_lambda_.3} parent=23 // pred_fallthru
          _
        // Predicated region
        $region53: #{_lambda_.3} parent=23 // pred_check
          %p486 = pneg %p236
        $region54: #{_lambda_.3} parent=23 // pred_check_branch
          %488 = sbr.rel (%p486) target = $region56
        $region55: #{_lambda_.3} parent=23 // pred_region
          %p489 = scmp.lt.s32.totalorder %s30, 1
          %s490 = scalar_select %p489, %s30, 1
          %s491 = scalar_lea.vmem %s8, %s490
        $region56: #{_lambda_.3} parent=23 // pred_fallthru
          _
        // Predicated region
        $region57: #{_lambda_.3} parent=23 // pred_check
          %p492 = pneg %p262
        $region58: #{_lambda_.3} parent=23 // pred_check_branch
          %494 = sbr.rel (%p492) target = $region60
        $region59: #{_lambda_.3} parent=23 // pred_region
          %p495 = scmp.lt.s32.totalorder %s30, 1
          %s496 = scalar_select %p495, %s30, 1
          %s497 = smul.addr %s496, 64
          %s498 = smul.addr %s497, 4
          %s499 = scalar_lea.vmem %s9, %s498
        $region60: #{_lambda_.3} parent=23 // pred_fallthru
          _
        // Predicated region
        $region61: #{_lambda_.3} parent=23 // pred_check
          %p500 = pneg %p288
        $region62: #{_lambda_.3} parent=23 // pred_check_branch
          %502 = sbr.rel (%p500) target = $region64
        $region63: #{_lambda_.3} parent=23 // pred_region
          %p503 = scmp.lt.s32.totalorder %s30, 1
          %s504 = scalar_select %p503, %s30, 1
          %s505 = smul.addr %s504, 4
          %s506 = scalar_lea.vmem %s10, %s505
        $region64: #{_lambda_.3} parent=23 // pred_fallthru
          _
        // Predicated region
        $region65: #{_lambda_.3} parent=23 // pred_check
          %p507 = pneg %p314
        $region66: #{_lambda_.3} parent=23 // pred_check_branch
          %509 = sbr.rel (%p507) target = $region68
        $region67: #{_lambda_.3} parent=23 // pred_region
          %p510 = scmp.lt.s32.totalorder %s30, 1
          %s511 = scalar_select %p510, %s30, 1
          %s512 = smul.addr %s511, 64
          %s513 = smul.addr %s512, 4
          %s514 = scalar_lea.vmem %s11, %s513
        $region68: #{_lambda_.3} parent=23 // pred_fallthru
          _
        // Predicated region
        $region69: #{_lambda_.3} parent=23 // pred_check
          %p515 = pneg %p340
        $region70: #{_lambda_.3} parent=23 // pred_check_branch
          %517 = sbr.rel (%p515) target = $region72
        $region71: #{_lambda_.3} parent=23 // pred_region
          %p518 = scmp.lt.s32.totalorder %s30, 1
          %s519 = scalar_select %p518, %s30, 1
          %s520 = scalar_lea.vmem %s12, %s519
        $region72: #{_lambda_.3} parent=23 // pred_fallthru
          _
      $region24: #{_lambda_.3} parent=5 // pred_fallthru
        _
      %p521 = scmp.le.s32.totalorder 1, %s22
      %p522 = scmp.lt.s32.totalorder %s22, 3
      %p523 = pnand %p521, %p522
      %p524 = pneg %p523
      // Predicated region
      $region73: #{_lambda_.3} parent=5 // pred_check
        _
      $region74: #{_lambda_.3} parent=5 // pred_check_branch
        %526 = sbr.rel (%p523) target = $region76
      $region75: #{_lambda_.3} parent=5 // pred_region
        %s527 = ssub.s32 %s22, 1
        %p528 = scmp.lt.s32.totalorder %s32, 1
        %s529 = scalar_select %p528, %s32, 1
        %s530 = scalar_lea.vmem %s1, %s529
        %p531 = pneg %p60
        %p532 = pneg %p57
        %p533 = scmp.lt.s32.totalorder %s32, 1
        %s534 = scalar_select %p533, %s32, 1
        %s535 = scalar_lea.vmem %s2, %s534
        %p536 = pneg %p86
        %p537 = pneg %p83
        %p538 = scmp.lt.s32.totalorder %s32, 1
        %s539 = scalar_select %p538, %s32, 1
        %s540 = smul.addr %s539, 48
        %s541 = smul.addr %s540, 4
        %s542 = scalar_lea.vmem %s3, %s541
        %p543 = pneg %p112
        %p544 = pneg %p109
        %p545 = scmp.lt.s32.totalorder %s32, 1
        %s546 = scalar_select %p545, %s32, 1
        %s547 = smul.addr %s546, 3
        %s548 = scalar_lea.vmem %s4, %s547
        %p549 = pneg %p138
        %p550 = pneg %p135
        %p551 = scmp.lt.s32.totalorder %s32, 1
        %s552 = scalar_select %p551, %s32, 1
        %s553 = smul.addr %s552, 16
        %s554 = smul.addr %s553, 4
        %s555 = scalar_lea.vmem %s5, %s554
        %p556 = pneg %p164
        %p557 = pneg %p161
        %p558 = scmp.lt.s32.totalorder %s32, 1
        %s559 = scalar_select %p558, %s32, 1
        %s560 = scalar_lea.vmem %s6, %s559
        %p561 = pneg %p190
        %p562 = pneg %p187
        %p563 = scmp.lt.s32.totalorder %s32, 1
        %s564 = scalar_select %p563, %s32, 1
        %s565 = scalar_lea.vmem %s7, %s564
        %p566 = pneg %p216
        %p567 = pneg %p213
        %p568 = scmp.lt.s32.totalorder %s32, 1
        %s569 = scalar_select %p568, %s32, 1
        %s570 = scalar_lea.vmem %s8, %s569
        %p571 = pneg %p242
        %p572 = pneg %p239
        %p573 = scmp.lt.s32.totalorder %s32, 1
        %s574 = scalar_select %p573, %s32, 1
        %s575 = smul.addr %s574, 64
        %s576 = smul.addr %s575, 4
        %s577 = scalar_lea.vmem %s9, %s576
        %p578 = pneg %p268
        %p579 = pneg %p265
        %p580 = scmp.lt.s32.totalorder %s32, 1
        %s581 = scalar_select %p580, %s32, 1
        %s582 = smul.addr %s581, 4
        %s583 = scalar_lea.vmem %s10, %s582
        %p584 = pneg %p294
        %p585 = pneg %p291
        %p586 = scmp.lt.s32.totalorder %s32, 1
        %s587 = scalar_select %p586, %s32, 1
        %s588 = smul.addr %s587, 64
        %s589 = smul.addr %s588, 4
        %s590 = scalar_lea.vmem %s11, %s589
        %p591 = pneg %p320
        %p592 = pneg %p317
        %p593 = scmp.lt.s32.totalorder %s32, 1
        %s594 = scalar_select %p593, %s32, 1
        %s595 = scalar_lea.vmem %s12, %s594
        %p596 = pneg %p346
        %p597 = pneg %p343
        %p598 = pneg %p367
        %p599 = pneg %p364
        %p600 = pneg %p388
        %p601 = pneg %p385
        %p602 = pneg %p414
        %p603 = pneg %p411
        %p604 = scmp.lt.s32.totalorder %s32, 1
        %s605 = scalar_select %p604, %s32, 1
        %s606 = scalar_lea.vmem %s1, %s605
        %p607 = scmp.lt.s32.totalorder %s32, 1
        %s608 = scalar_select %p607, %s32, 1
        %s609 = scalar_lea.vmem %s2, %s608
        %p610 = scmp.lt.s32.totalorder %s32, 1
        %s611 = scalar_select %p610, %s32, 1
        %s612 = smul.addr %s611, 48
        %s613 = smul.addr %s612, 4
        %s614 = scalar_lea.vmem %s3, %s613
        %p615 = scmp.lt.s32.totalorder %s32, 1
        %s616 = scalar_select %p615, %s32, 1
        %s617 = smul.addr %s616, 3
        %s618 = scalar_lea.vmem %s4, %s617
        %p619 = scmp.lt.s32.totalorder %s32, 1
        %s620 = scalar_select %p619, %s32, 1
        %s621 = smul.addr %s620, 16
        %s622 = smul.addr %s621, 4
        %s623 = scalar_lea.vmem %s5, %s622
        %p624 = scmp.lt.s32.totalorder %s32, 1
        %s625 = scalar_select %p624, %s32, 1
        %s626 = scalar_lea.vmem %s6, %s625
        %p627 = scmp.lt.s32.totalorder %s32, 1
        %s628 = scalar_select %p627, %s32, 1
        %s629 = scalar_lea.vmem %s7, %s628
        %p630 = scmp.lt.s32.totalorder %s32, 1
        %s631 = scalar_select %p630, %s32, 1
        %s632 = scalar_lea.vmem %s8, %s631
        %p633 = scmp.lt.s32.totalorder %s32, 1
        %s634 = scalar_select %p633, %s32, 1
        %s635 = smul.addr %s634, 64
        %s636 = smul.addr %s635, 4
        %s637 = scalar_lea.vmem %s9, %s636
        %p638 = scmp.lt.s32.totalorder %s32, 1
        %s639 = scalar_select %p638, %s32, 1
        %s640 = smul.addr %s639, 4
        %s641 = scalar_lea.vmem %s10, %s640
        %p642 = scmp.lt.s32.totalorder %s32, 1
        %s643 = scalar_select %p642, %s32, 1
        %s644 = smul.addr %s643, 64
        %s645 = smul.addr %s644, 4
        %s646 = scalar_lea.vmem %s11, %s645
        %p647 = scmp.lt.s32.totalorder %s32, 1
        %s648 = scalar_select %p647, %s32, 1
        %s649 = scalar_lea.vmem %s12, %s648
        %s650 = smul.u32 4, %s31
        %p652 = scmp.eq.s32.totalorder %s32, 0
        // Predicated region
        $region77: #{_lambda_.3} parent=75 // pred_check
          %p653 = pneg %p652
        $region78: #{_lambda_.3} parent=75 // pred_check_branch
          %655 = sbr.rel (%p653) target = $region80
        $region79: #{_lambda_.3} parent=75 // pred_region
          %s656 = smul.u32 %s31, 32
          %s657 = scalar_lea.vmem %s0, %s656
          %p659 = scmp.lt.u32.totalorder 32, 8
          %p660 = pneg %p659
          // Predicated region
          $region81: #{_lambda_.3} parent=79 // pred_check
            _
          $region82: #{_lambda_.3} parent=79 // pred_check_branch
            %662 = sbr.rel (%p659) target = $region84
          $region83: #{_lambda_.3} parent=79 // pred_region
            %s677 = sand.u32 32, 7
            %p678 = scmp.eq.s32.totalorder %s677, 0
            // Predicated region
            $region96: #{_lambda_.3} parent=83 // pred_check
              %p679 = pneg %p678
            $region97: #{_lambda_.3} parent=83 // pred_check_branch
              %681 = sbr.rel (%p679) target = $region99
            $region98: #{_lambda_.3} parent=83 // pred_region
              loop: start=0, step=1, limit=1
              $region100: #{_lambda_.3} parent=98 // loop_pre_header
                _
              $region101: #{_lambda_.3} parent=98 // loop_header
                %s683 = sphi 0, %s687
                %p684 = scmp.ge.s32.totalorder %s683, 1
                %s688 = sphi %s657, %s657
                %s689 = sphi [#allocation2], [#allocation2]
              $region102: #{_lambda_.3} parent=98 // loop_header_branch
                %686 = sbr.rel (%p684) target = $region106
              $region103: #{_lambda_.3} parent=98 // loop_body
                %v690 = vld [vmem:[%s688] sm:$0xff]
                %691 = vst [vmem:[%s689] sm:$0xff] %v690
                %v692 = vld [vmem:[%s688 + $0x8] sm:$0xff]
                %693 = vst [vmem:[%s689 + $0x8] sm:$0xff] %v692
                %v694 = vld [vmem:[%s688 + $0x10] sm:$0xff]
                %695 = vst [vmem:[%s689 + $0x10] sm:$0xff] %v694
                %v696 = vld [vmem:[%s688 + $0x18] sm:$0xff]
                %697 = vst [vmem:[%s689 + $0x18] sm:$0xff] %v696
              $region104: #{_lambda_.3} parent=98 // loop_footer
                %s687 = sadd.s32 1, %s683
              $region105: #{_lambda_.3} parent=98 // loop_footer_branch
                %682 = sbr.rel target = $region101
              $region106: #{_lambda_.3} parent=98 // loop_exit
                _
            $region99: #{_lambda_.3} parent=83 // pred_fallthru
              _
            %p698 = pneg %p678
            // Predicated region
            $region107: #{_lambda_.3} parent=83 // pred_check
              _
            $region108: #{_lambda_.3} parent=83 // pred_check_branch
              %700 = sbr.rel (%p678) target = $region110
            $region109: #{_lambda_.3} parent=83 // pred_region
              %s701 = sand.u32 32, 7
            $region110: #{_lambda_.3} parent=83 // pred_fallthru
              _
          $region84: #{_lambda_.3} parent=79 // pred_fallthru
            _
          // Predicated region
          $region85: #{_lambda_.3} parent=79 // pred_check
            %p663 = pneg %p659
          $region86: #{_lambda_.3} parent=79 // pred_check_branch
            %665 = sbr.rel (%p663) target = $region88
          $region87: #{_lambda_.3} parent=79 // pred_region
            %s666 = sshllo.u32 0, 32
            loop: start=0, step=1, limit=1
            $region89: #{_lambda_.3} parent=87 // loop_pre_header
              _
            $region90: #{_lambda_.3} parent=87 // loop_header
              %s668 = sphi 0, %s672
              %p669 = scmp.ge.s32.totalorder %s668, 1
              %s673 = sphi %s657, %s657
              %s674 = sphi [#allocation2], [#allocation2]
            $region91: #{_lambda_.3} parent=87 // loop_header_branch
              %671 = sbr.rel (%p669) target = $region95
            $region92: #{_lambda_.3} parent=87 // loop_body
              %v675 = vld [vmem:[%s673] sm:%s666]
              %676 = vst [vmem:[%s674] sm:%s666] %v675
            $region93: #{_lambda_.3} parent=87 // loop_footer
              %s672 = sadd.s32 1, %s668
            $region94: #{_lambda_.3} parent=87 // loop_footer_branch
              %667 = sbr.rel target = $region90
            $region95: #{_lambda_.3} parent=87 // loop_exit
              _
          $region88: #{_lambda_.3} parent=79 // pred_fallthru
            _
          // Predicated region
          $region111: #{_lambda_.3} parent=79 // pred_check
            _
          $region112: #{_lambda_.3} parent=79 // pred_check_branch
            %704 = sbr.rel (0) target = $region114
          $region113: #{_lambda_.3} parent=79 // pred_region
            %705 = vsyncadd [#allocation3], 512
          $region114: #{_lambda_.3} parent=79 // pred_fallthru
            _
          %s706 = smul.u32 32, 1
          %s707 = sshll.u32 %s706, 4
          %708 = dma.done [#allocation3], %s707
        $region80: #{_lambda_.3} parent=75 // pred_fallthru
          _
        %v709 = vld [vmem:[#allocation2] sm:$0xff]
        %v710 = vld [vmem:[#allocation2 + $0x8] sm:$0xff]
        %v711 = vld [vmem:[#allocation2 + $0x10] sm:$0xff]
        %v712 = vld [vmem:[#allocation2 + $0x18] sm:$0xff]
        %v713 = vld [vmem:[%s606] sm:$0x1]
        %v714 = vld [vmem:[%s609] sm:$0x1]
        %v715 = vld [vmem:[%s614] sm:$0xff]
        %v716 = vld [vmem:[%s614 + $0x8] sm:$0xf]
        %v717 = vld [vmem:[%s614 + $0xc] sm:$0xff]
        %v718 = vld [vmem:[%s614 + $0x14] sm:$0xf]
        %v719 = vld [vmem:[%s614 + $0x18] sm:$0xff]
        %v720 = vld [vmem:[%s614 + $0x20] sm:$0xf]
        %v721 = vld [vmem:[%s614 + $0x24] sm:$0xff]
        %v722 = vld [vmem:[%s614 + $0x2c] sm:$0xf]
        %v723 = vld [vmem:[%s614 + $0x30] sm:$0xff]
        %v724 = vld [vmem:[%s614 + $0x38] sm:$0xf]
        %v725 = vld [vmem:[%s614 + $0x3c] sm:$0xff]
        %v726 = vld [vmem:[%s614 + $0x44] sm:$0xf]
        %v727 = vld [vmem:[%s614 + $0x48] sm:$0xff]
        %v728 = vld [vmem:[%s614 + $0x50] sm:$0xf]
        %v729 = vld [vmem:[%s614 + $0x54] sm:$0xff]
        %v730 = vld [vmem:[%s614 + $0x5c] sm:$0xf]
        %v731 = vld [vmem:[%s614 + $0x60] sm:$0xff]
        %v732 = vld [vmem:[%s614 + $0x68] sm:$0xf]
        %v733 = vld [vmem:[%s614 + $0x6c] sm:$0xff]
        %v734 = vld [vmem:[%s614 + $0x74] sm:$0xf]
        %v735 = vld [vmem:[%s614 + $0x78] sm:$0xff]
        %v736 = vld [vmem:[%s614 + $0x80] sm:$0xf]
        %v737 = vld [vmem:[%s614 + $0x84] sm:$0xff]
        %v738 = vld [vmem:[%s614 + $0x8c] sm:$0xf]
        %v739 = vld [vmem:[%s614 + $0x90] sm:$0xff]
        %v740 = vld [vmem:[%s614 + $0x98] sm:$0xf]
        %v741 = vld [vmem:[%s614 + $0x9c] sm:$0xff]
        %v742 = vld [vmem:[%s614 + $0xa4] sm:$0xf]
        %v743 = vld [vmem:[%s614 + $0xa8] sm:$0xff]
        %v744 = vld [vmem:[%s614 + $0xb0] sm:$0xf]
        %v745 = vld [vmem:[%s614 + $0xb4] sm:$0xff]
        %v746 = vld [vmem:[%s614 + $0xbc] sm:$0xf]
        %v747 = vld [vmem:[%s618] sm:$0x7]
        %v748 = vld [vmem:[%s623] sm:$0xf]
        %v749 = vld [vmem:[%s623 + $0x4] sm:$0xf]
        %v750 = vld [vmem:[%s623 + $0x8] sm:$0xf]
        %v751 = vld [vmem:[%s623 + $0xc] sm:$0xf]
        %v752 = vld [vmem:[%s623 + $0x10] sm:$0xf]
        %v753 = vld [vmem:[%s623 + $0x14] sm:$0xf]
        %v754 = vld [vmem:[%s623 + $0x18] sm:$0xf]
        %v755 = vld [vmem:[%s623 + $0x1c] sm:$0xf]
        %v756 = vld [vmem:[%s623 + $0x20] sm:$0xf]
        %v757 = vld [vmem:[%s623 + $0x24] sm:$0xf]
        %v758 = vld [vmem:[%s623 + $0x28] sm:$0xf]
        %v759 = vld [vmem:[%s623 + $0x2c] sm:$0xf]
        %v760 = vld [vmem:[%s623 + $0x30] sm:$0xf]
        %v761 = vld [vmem:[%s623 + $0x34] sm:$0xf]
        %v762 = vld [vmem:[%s623 + $0x38] sm:$0xf]
        %v763 = vld [vmem:[%s623 + $0x3c] sm:$0xf]
        %v764 = vld [vmem:[%s626] sm:$0x1]
        %v765 = vld [vmem:[%s629] sm:$0x1]
        %v766 = vld [vmem:[%s632] sm:$0x1]
        %v767 = vld [vmem:[%s637] sm:$0xff]
        %v768 = vld [vmem:[%s637 + $0x8] sm:$0xff]
        %v769 = vld [vmem:[%s637 + $0x10] sm:$0xff]
        %v770 = vld [vmem:[%s637 + $0x18] sm:$0xff]
        %v771 = vld [vmem:[%s637 + $0x20] sm:$0xff]
        %v772 = vld [vmem:[%s637 + $0x28] sm:$0xff]
        %v773 = vld [vmem:[%s637 + $0x30] sm:$0xff]
        %v774 = vld [vmem:[%s637 + $0x38] sm:$0xff]
        %v775 = vld [vmem:[%s637 + $0x40] sm:$0xff]
        %v776 = vld [vmem:[%s637 + $0x48] sm:$0xff]
        %v777 = vld [vmem:[%s637 + $0x50] sm:$0xff]
        %v778 = vld [vmem:[%s637 + $0x58] sm:$0xff]
        %v779 = vld [vmem:[%s637 + $0x60] sm:$0xff]
        %v780 = vld [vmem:[%s637 + $0x68] sm:$0xff]
        %v781 = vld [vmem:[%s637 + $0x70] sm:$0xff]
        %v782 = vld [vmem:[%s637 + $0x78] sm:$0xff]
        %v783 = vld [vmem:[%s637 + $0x80] sm:$0xff]
        %v784 = vld [vmem:[%s637 + $0x88] sm:$0xff]
        %v785 = vld [vmem:[%s637 + $0x90] sm:$0xff]
        %v786 = vld [vmem:[%s637 + $0x98] sm:$0xff]
        %v787 = vld [vmem:[%s637 + $0xa0] sm:$0xff]
        %v788 = vld [vmem:[%s637 + $0xa8] sm:$0xff]
        %v789 = vld [vmem:[%s637 + $0xb0] sm:$0xff]
        %v790 = vld [vmem:[%s637 + $0xb8] sm:$0xff]
        %v791 = vld [vmem:[%s637 + $0xc0] sm:$0xff]
        %v792 = vld [vmem:[%s637 + $0xc8] sm:$0xff]
        %v793 = vld [vmem:[%s637 + $0xd0] sm:$0xff]
        %v794 = vld [vmem:[%s637 + $0xd8] sm:$0xff]
        %v795 = vld [vmem:[%s637 + $0xe0] sm:$0xff]
        %v796 = vld [vmem:[%s637 + $0xe8] sm:$0xff]
        %v797 = vld [vmem:[%s637 + $0xf0] sm:$0xff]
        %v798 = vld [vmem:[%s637 + $0xf8] sm:$0xff]
        %v799 = vld [vmem:[%s641] sm:$0xf]
        %v800 = vld [vmem:[%s646] sm:$0xf]
        %v801 = vld [vmem:[%s646 + $0x4] sm:$0xf]
        %v802 = vld [vmem:[%s646 + $0x8] sm:$0xf]
        %v803 = vld [vmem:[%s646 + $0xc] sm:$0xf]
        %v804 = vld [vmem:[%s646 + $0x10] sm:$0xf]
        %v805 = vld [vmem:[%s646 + $0x14] sm:$0xf]
        %v806 = vld [vmem:[%s646 + $0x18] sm:$0xf]
        %v807 = vld [vmem:[%s646 + $0x1c] sm:$0xf]
        %v808 = vld [vmem:[%s646 + $0x20] sm:$0xf]
        %v809 = vld [vmem:[%s646 + $0x24] sm:$0xf]
        %v810 = vld [vmem:[%s646 + $0x28] sm:$0xf]
        %v811 = vld [vmem:[%s646 + $0x2c] sm:$0xf]
        %v812 = vld [vmem:[%s646 + $0x30] sm:$0xf]
        %v813 = vld [vmem:[%s646 + $0x34] sm:$0xf]
        %v814 = vld [vmem:[%s646 + $0x38] sm:$0xf]
        %v815 = vld [vmem:[%s646 + $0x3c] sm:$0xf]
        %v816 = vld [vmem:[%s646 + $0x40] sm:$0xf]
        %v817 = vld [vmem:[%s646 + $0x44] sm:$0xf]
        %v818 = vld [vmem:[%s646 + $0x48] sm:$0xf]
        %v819 = vld [vmem:[%s646 + $0x4c] sm:$0xf]
        %v820 = vld [vmem:[%s646 + $0x50] sm:$0xf]
        %v821 = vld [vmem:[%s646 + $0x54] sm:$0xf]
        %v822 = vld [vmem:[%s646 + $0x58] sm:$0xf]
        %v823 = vld [vmem:[%s646 + $0x5c] sm:$0xf]
        %v824 = vld [vmem:[%s646 + $0x60] sm:$0xf]
        %v825 = vld [vmem:[%s646 + $0x64] sm:$0xf]
        %v826 = vld [vmem:[%s646 + $0x68] sm:$0xf]
        %v827 = vld [vmem:[%s646 + $0x6c] sm:$0xf]
        %v828 = vld [vmem:[%s646 + $0x70] sm:$0xf]
        %v829 = vld [vmem:[%s646 + $0x74] sm:$0xf]
        %v830 = vld [vmem:[%s646 + $0x78] sm:$0xf]
        %v831 = vld [vmem:[%s646 + $0x7c] sm:$0xf]
        %v832 = vld [vmem:[%s646 + $0x80] sm:$0xf]
        %v833 = vld [vmem:[%s646 + $0x84] sm:$0xf]
        %v834 = vld [vmem:[%s646 + $0x88] sm:$0xf]
        %v835 = vld [vmem:[%s646 + $0x8c] sm:$0xf]
        %v836 = vld [vmem:[%s646 + $0x90] sm:$0xf]
        %v837 = vld [vmem:[%s646 + $0x94] sm:$0xf]
        %v838 = vld [vmem:[%s646 + $0x98] sm:$0xf]
        %v839 = vld [vmem:[%s646 + $0x9c] sm:$0xf]
        %v840 = vld [vmem:[%s646 + $0xa0] sm:$0xf]
        %v841 = vld [vmem:[%s646 + $0xa4] sm:$0xf]
        %v842 = vld [vmem:[%s646 + $0xa8] sm:$0xf]
        %v843 = vld [vmem:[%s646 + $0xac] sm:$0xf]
        %v844 = vld [vmem:[%s646 + $0xb0] sm:$0xf]
        %v845 = vld [vmem:[%s646 + $0xb4] sm:$0xf]
        %v846 = vld [vmem:[%s646 + $0xb8] sm:$0xf]
        %v847 = vld [vmem:[%s646 + $0xbc] sm:$0xf]
        %v848 = vld [vmem:[%s646 + $0xc0] sm:$0xf]
        %v849 = vld [vmem:[%s646 + $0xc4] sm:$0xf]
        %v850 = vld [vmem:[%s646 + $0xc8] sm:$0xf]
        %v851 = vld [vmem:[%s646 + $0xcc] sm:$0xf]
        %v852 = vld [vmem:[%s646 + $0xd0] sm:$0xf]
        %v853 = vld [vmem:[%s646 + $0xd4] sm:$0xf]
        %v854 = vld [vmem:[%s646 + $0xd8] sm:$0xf]
        %v855 = vld [vmem:[%s646 + $0xdc] sm:$0xf]
        %v856 = vld [vmem:[%s646 + $0xe0] sm:$0xf]
        %v857 = vld [vmem:[%s646 + $0xe4] sm:$0xf]
        %v858 = vld [vmem:[%s646 + $0xe8] sm:$0xf]
        %v859 = vld [vmem:[%s646 + $0xec] sm:$0xf]
        %v860 = vld [vmem:[%s646 + $0xf0] sm:$0xf]
        %v861 = vld [vmem:[%s646 + $0xf4] sm:$0xf]
        %v862 = vld [vmem:[%s646 + $0xf8] sm:$0xf]
        %v863 = vld [vmem:[%s646 + $0xfc] sm:$0xf]
        %v864 = vld [vmem:[%s649] sm:$0x1]
        %865 = vadd.xlane.f32.xlu0 %v709
        %v866 = vpop.xlane.xlu0 %865
        %867 = vadd.xlane.f32.xlu0 %v710
        %v868 = vpop.xlane.xlu0 %867
        %869 = vadd.xlane.f32.xlu0 %v711
        %v870 = vpop.xlane.xlu0 %869
        %871 = vadd.xlane.f32.xlu0 %v712
        %v872 = vpop.xlane.xlu0 %871
        %v873 = vrcp.pop 128.0
        %v874 = vmul.f32 %v866, %v873
        %v875 = vmul.f32 %v868, %v873
        %v876 = vmul.f32 %v870, %v873
        %v877 = vmul.f32 %v872, %v873
        %v878 = vsub.f32 %v709, %v874
        %v879 = vsub.f32 %v710, %v875
        %v880 = vsub.f32 %v711, %v876
        %v881 = vsub.f32 %v712, %v877
        %v882 = vmul.f32 %v878, %v878
        %v883 = vmul.f32 %v879, %v879
        %v884 = vmul.f32 %v880, %v880
        %v885 = vmul.f32 %v881, %v881
        %886 = vadd.xlane.f32.xlu0 %v882
        %v887 = vpop.xlane.xlu0 %886
        %888 = vadd.xlane.f32.xlu0 %v883
        %v889 = vpop.xlane.xlu0 %888
        %890 = vadd.xlane.f32.xlu0 %v884
        %v891 = vpop.xlane.xlu0 %890
        %892 = vadd.xlane.f32.xlu0 %v885
        %v893 = vpop.xlane.xlu0 %892
        %v894 = vmul.f32 %v887, %v873
        %v895 = vmul.f32 %v889, %v873
        %v896 = vmul.f32 %v891, %v873
        %v897 = vmul.f32 %v893, %v873
        %v898 = vadd.f32 %v894, 1e-06
        %v899 = vadd.f32 %v895, 1e-06
        %v900 = vadd.f32 %v896, 1e-06
        %v901 = vadd.f32 %v897, 1e-06
        %v902 = vrsqrt.pop %v898
        %v903 = vrsqrt.pop %v899
        %v904 = vrsqrt.pop %v900
        %v905 = vrsqrt.pop %v901
        %v906 = vmul.f32 %v878, %v902
        %v907 = vmul.f32 %v879, %v903
        %v908 = vmul.f32 %v880, %v904
        %v909 = vmul.f32 %v881, %v905
        %v911 = vlaneseq
        %v912 = vshrl.u32 %v911, 7
        %v913 = vsub.s32 0, %v912
        %v914 = vrot.slane %v713, %v913
        %v916 = vmul.f32 %v906, %v914
        %v917 = vmul.f32 %v907, %v914
        %v918 = vmul.f32 %v908, %v914
        %v919 = vmul.f32 %v909, %v914
        %v921 = vlaneseq
        %v922 = vshrl.u32 %v921, 7
        %v923 = vsub.s32 0, %v922
        %v924 = vrot.slane %v714, %v923
        %v926 = vadd.f32 %v916, %v924
        %v927 = vadd.f32 %v917, %v924
        %v928 = vadd.f32 %v918, %v924
        %v929 = vadd.f32 %v919, %v924
        %v930 = vpack.c.bf16 %v927, %v926
        %v931 = vpack.c.bf16 %v929, %v928
        %v933 = vlaneseq
        %v934 = vshrl.u32 %v933, 7
        %v935 = vsub.s32 0, %v934
        %v936 = vrot.slane %v747, %v935
        %v937 = vlaneseq
        %v938 = vshrl.u32 %v937, 7
        %v939 = vsub.s32 1, %v938
        %v940 = vrot.slane %v747, %v939
        %v941 = vlaneseq
        %v942 = vshrl.u32 %v941, 7
        %v943 = vsub.s32 2, %v942
        %v944 = vrot.slane %v747, %v943
        %v980 = vunpack.c.l.b16 %v715
        %v981 = vunpack.c.h.b16 %v715
        %v982 = vunpack.c.l.b16 %v716
        %v983 = vunpack.c.l.b16 %v717
        %v984 = vunpack.c.h.b16 %v717
        %v985 = vunpack.c.l.b16 %v718
        %v986 = vunpack.c.l.b16 %v719
        %v987 = vunpack.c.h.b16 %v719
        %v988 = vunpack.c.l.b16 %v720
        %v989 = vunpack.c.l.b16 %v721
        %v990 = vunpack.c.h.b16 %v721
        %v991 = vunpack.c.l.b16 %v722
        %v992 = vunpack.c.l.b16 %v723
        %v993 = vunpack.c.h.b16 %v723
        %v994 = vunpack.c.l.b16 %v724
        %v995 = vunpack.c.l.b16 %v725
        %v996 = vunpack.c.h.b16 %v725
        %v997 = vunpack.c.l.b16 %v726
        %v998 = vunpack.c.l.b16 %v727
        %v999 = vunpack.c.h.b16 %v727
        %v1000 = vunpack.c.l.b16 %v728
        %v1001 = vunpack.c.l.b16 %v729
        %v1002 = vunpack.c.h.b16 %v729
        %v1003 = vunpack.c.l.b16 %v730
        %v1004 = vunpack.c.l.b16 %v731
        %v1005 = vunpack.c.h.b16 %v731
        %v1006 = vunpack.c.l.b16 %v732
        %v1007 = vunpack.c.l.b16 %v733
        %v1008 = vunpack.c.h.b16 %v733
        %v1009 = vunpack.c.l.b16 %v734
        %v1010 = vunpack.c.l.b16 %v735
        %v1011 = vunpack.c.h.b16 %v735
        %v1012 = vunpack.c.l.b16 %v736
        %v1013 = vunpack.c.l.b16 %v737
        %v1014 = vunpack.c.h.b16 %v737
        %v1015 = vunpack.c.l.b16 %v738
        %v1016 = vunpack.c.l.b16 %v739
        %v1017 = vunpack.c.h.b16 %v739
        %v1018 = vunpack.c.l.b16 %v740
        %v1019 = vunpack.c.l.b16 %v741
        %v1020 = vunpack.c.h.b16 %v741
        %v1021 = vunpack.c.l.b16 %v742
        %v1022 = vunpack.c.l.b16 %v743
        %v1023 = vunpack.c.h.b16 %v743
        %v1024 = vunpack.c.l.b16 %v744
        %v1025 = vunpack.c.l.b16 %v745
        %v1026 = vunpack.c.h.b16 %v745
        %v1027 = vunpack.c.l.b16 %v746
        %v1028 = vpack.c.b16 %v983, %v980
        %v1029 = vpack.c.b16 %v984, %v981
        %v1030 = vpack.c.b16 %v985, %v982
        %v1031 = vpack.c.b16 %v989, %v986
        %v1032 = vpack.c.b16 %v990, %v987
        %v1033 = vpack.c.b16 %v991, %v988
        %v1034 = vpack.c.b16 %v995, %v992
        %v1035 = vpack.c.b16 %v996, %v993
        %v1036 = vpack.c.b16 %v997, %v994
        %v1037 = vpack.c.b16 %v1001, %v998
        %v1038 = vpack.c.b16 %v1002, %v999
        %v1039 = vpack.c.b16 %v1003, %v1000
        %v1040 = vpack.c.b16 %v1007, %v1004
        %v1041 = vpack.c.b16 %v1008, %v1005
        %v1042 = vpack.c.b16 %v1009, %v1006
        %v1043 = vpack.c.b16 %v1013, %v1010
        %v1044 = vpack.c.b16 %v1014, %v1011
        %v1045 = vpack.c.b16 %v1015, %v1012
        %v1046 = vpack.c.b16 %v1019, %v1016
        %v1047 = vpack.c.b16 %v1020, %v1017
        %v1048 = vpack.c.b16 %v1021, %v1018
        %v1049 = vpack.c.b16 %v1025, %v1022
        %v1050 = vpack.c.b16 %v1026, %v1023
        %v1051 = vpack.c.b16 %v1027, %v1024
        %1076 = vmatprep.subr.bf16.mxu0 %v1029
        %1077 = vmatpush1.bf16.msra.mxu0 %v1028
        %1078 = vmatprep.subr.bf16.mxu0 %v1032
        %1079 = vmatpush1.bf16.msra.mxu0 %v1031
        %1080 = vmatprep.subr.bf16.mxu0 %v1035
        %1081 = vmatpush1.bf16.msra.mxu0 %v1034
        %1082 = vmatprep.subr.bf16.mxu0 %v1038
        %1083 = vmatpush1.bf16.msra.mxu0 %v1037
        %1084 = vmatprep.subr.bf16.mxu0 %v1041
        %1085 = vmatpush1.bf16.msra.mxu0 %v1040
        %1086 = vmatprep.subr.bf16.mxu0 %v1044
        %1087 = vmatpush1.bf16.msra.mxu0 %v1043
        %1088 = vmatprep.subr.bf16.mxu0 %v1047
        %1089 = vmatpush1.bf16.msra.mxu0 %v1046
        %1090 = vmatprep.subr.bf16.mxu0 %v1050
        %1091 = vmatpush1.bf16.msra.mxu0 %v1049
        %1092 = vmatprep.subr.bf16.mxu0 0
        %1093 = vmatpush1.bf16.msra.mxu0 0
        %1094 = vmatprep.subr.bf16.mxu0 0
        %1095 = vmatpush1.bf16.msra.mxu0 0
        %1096 = vmatprep.subr.bf16.mxu0 0
        %1097 = vmatpush1.bf16.msra.mxu0 0
        %1098 = vmatprep.subr.bf16.mxu0 0
        %1099 = vmatpush1.bf16.msra.mxu0 0
        %1100 = vmatprep.subr.bf16.mxu0 0
        %1101 = vmatpush1.bf16.msra.mxu0 0
        %1102 = vmatprep.subr.bf16.mxu0 0
        %1103 = vmatpush1.bf16.msra.mxu0 0
        %1104 = vmatprep.subr.bf16.mxu0 0
        %1105 = vmatpush1.bf16.msra.mxu0 0
        %1106 = vmatprep.subr.bf16.mxu0 0
        %1107 = vmatpush1.bf16.msra.mxu0 0
        %1108 = vmatprep.mubr.bf16.mxu0 0
        %1109 = vmatmul.mubr.bf16.gmra.mrb[0].mxu0 %v930
        %v1110 = vpop.f32.mrb[0].mxu0
        %v1111 = vadd.f32 %v936, %v1110
        %v1112 = vpop.f32.mrb[0].mxu0
        %v1113 = vadd.f32 %v940, %v1112
        %v1114 = vpop.f32.mrb[0].mxu0
        %v1115 = vadd.f32 %v936, %v1114
        %v1116 = vpop.f32.mrb[0].mxu0
        %v1117 = vadd.f32 %v940, %v1116
        %1118 = vmatprep.mubr.bf16.mxu0 0
        %1119 = vmatmul.mubr.bf16.gmra.mrb[0].mxu0 %v931
        %v1120 = vpop.f32.mrb[0].mxu0
        %v1121 = vadd.f32 %v936, %v1120
        %v1122 = vpop.f32.mrb[0].mxu0
        %v1123 = vadd.f32 %v940, %v1122
        %v1124 = vpop.f32.mrb[0].mxu0
        %v1125 = vadd.f32 %v936, %v1124
        %v1126 = vpop.f32.mrb[0].mxu0
        %v1127 = vadd.f32 %v940, %v1126
        %1128 = vdwg.mxu0
        %1129 = vmatprep.subr.bf16.mxu0 0
        %1130 = vmatpush1.bf16.msra.mxu0 %v1030
        %1131 = vmatprep.subr.bf16.mxu0 0
        %1132 = vmatpush1.bf16.msra.mxu0 %v1033
        %1133 = vmatprep.subr.bf16.mxu0 0
        %1134 = vmatpush1.bf16.msra.mxu0 %v1036
        %1135 = vmatprep.subr.bf16.mxu0 0
        %1136 = vmatpush1.bf16.msra.mxu0 %v1039
        %1137 = vmatprep.subr.bf16.mxu0 0
        %1138 = vmatpush1.bf16.msra.mxu0 %v1042
        %1139 = vmatprep.subr.bf16.mxu0 0
        %1140 = vmatpush1.bf16.msra.mxu0 %v1045
        %1141 = vmatprep.subr.bf16.mxu0 0
        %1142 = vmatpush1.bf16.msra.mxu0 %v1048
        %1143 = vmatprep.subr.bf16.mxu0 0
        %1144 = vmatpush1.bf16.msra.mxu0 %v1051
        %1145 = vmatprep.subr.bf16.mxu0 0
        %1146 = vmatpush1.bf16.msra.mxu0 0
        %1147 = vmatprep.subr.bf16.mxu0 0
        %1148 = vmatpush1.bf16.msra.mxu0 0
        %1149 = vmatprep.subr.bf16.mxu0 0
        %1150 = vmatpush1.bf16.msra.mxu0 0
        %1151 = vmatprep.subr.bf16.mxu0 0
        %1152 = vmatpush1.bf16.msra.mxu0 0
        %1153 = vmatprep.subr.bf16.mxu0 0
        %1154 = vmatpush1.bf16.msra.mxu0 0
        %1155 = vmatprep.subr.bf16.mxu0 0
        %1156 = vmatpush1.bf16.msra.mxu0 0
        %1157 = vmatprep.subr.bf16.mxu0 0
        %1158 = vmatpush1.bf16.msra.mxu0 0
        %1159 = vmatprep.subr.bf16.mxu0 0
        %1160 = vmatpush1.bf16.msra.mxu0 0
        %1161 = vmatprep.mubr.bf16.mxu0 0
        %1162 = vmatmul.mubr.bf16.gmra.mrb[0].mxu0 %v930
        %v1163 = vpop.f32.mrb[0].mxu0
        %v1164 = vadd.f32 %v944, %v1163
        %v1165 = vpop.f32.mrb[0].mxu0
        %v1166 = vpop.f32.mrb[0].mxu0
        %v1167 = vadd.f32 %v944, %v1166
        %v1168 = vpop.f32.mrb[0].mxu0
        %1169 = vmatprep.mubr.bf16.mxu0 0
        %1170 = vmatmul.mubr.bf16.gmra.mrb[0].mxu0 %v931
        %v1171 = vpop.f32.mrb[0].mxu0
        %v1172 = vadd.f32 %v944, %v1171
        %v1173 = vpop.f32.mrb[0].mxu0
        %v1174 = vpop.f32.mrb[0].mxu0
        %v1175 = vadd.f32 %v944, %v1174
        %v1176 = vpop.f32.mrb[0].mxu0
        %1177 = vdwg.mxu0
        %v1178 = vpack.c.bf16 %v1115, %v1111
        %v1179 = vpack.c.bf16 %v1125, %v1121
        %v1180 = vpack.c.bf16 %v1117, %v1113
        %v1181 = vpack.c.bf16 %v1127, %v1123
        %v1182 = vpack.c.bf16 %v1167, %v1164
        %v1183 = vpack.c.bf16 %v1175, %v1172
        %vm1184 = vcmask 261120
        %v1186 = vsel %vm1184, %v1178, 0
        %v1189 = vsel %vm1184, %v1180, 0
        %1191 = vmatprep.subr.bf16.mxu0 0
        %1192 = vmatpush1.bf16.xpose.msra.mxu0 %v1189
        %1193 = vmatprep.subr.bf16.mxu0 0
        %1194 = vmatpush1.bf16.xpose.msra.mxu0 0
        %1195 = vmatprep.subr.bf16.mxu0 0
        %1196 = vmatpush1.bf16.xpose.msra.mxu0 0
        %1197 = vmatprep.subr.bf16.mxu0 0
        %1198 = vmatpush1.bf16.xpose.msra.mxu0 0
        %1199 = vmatprep.subr.bf16.mxu0 0
        %1200 = vmatpush1.bf16.xpose.msra.mxu0 0
        %1201 = vmatprep.subr.bf16.mxu0 0
        %1202 = vmatpush1.bf16.xpose.msra.mxu0 0
        %1203 = vmatprep.subr.bf16.mxu0 0
        %1204 = vmatpush1.bf16.xpose.msra.mxu0 0
        %1205 = vmatprep.subr.bf16.mxu0 0
        %1206 = vmatpush1.bf16.xpose.msra.mxu0 0
        %1207 = vmatprep.subr.bf16.mxu0 0
        %1208 = vmatpush1.bf16.xpose.msra.mxu0 0
        %1209 = vmatprep.subr.bf16.mxu0 0
        %1210 = vmatpush1.bf16.xpose.msra.mxu0 0
        %1211 = vmatprep.subr.bf16.mxu0 0
        %1212 = vmatpush1.bf16.xpose.msra.mxu0 0
        %1213 = vmatprep.subr.bf16.mxu0 0
        %1214 = vmatpush1.bf16.xpose.msra.mxu0 0
        %1215 = vmatprep.subr.bf16.mxu0 0
        %1216 = vmatpush1.bf16.xpose.msra.mxu0 0
        %1217 = vmatprep.subr.bf16.mxu0 0
        %1218 = vmatpush1.bf16.xpose.msra.mxu0 0
        %1219 = vmatprep.subr.bf16.mxu0 0
        %1220 = vmatpush1.bf16.xpose.msra.mxu0 0
        %1221 = vmatprep.subr.bf16.mxu0 0
        %1222 = vmatpush1.bf16.xpose.msra.mxu0 0
        %1223 = vmatprep.mubr.bf16.mxu0 0
        %1224 = vmatmul.mubr.bf16.gmra.mrb[0].mxu0 %v1186
        %v1225 = vpop.f32.mrb[0].mxu0
        %v1226 = vadd.f32 0.0, %v1225
        %v1227 = vpop.f32.mrb[0].mxu0
        %v1228 = vpop.f32.mrb[0].mxu0
        %v1229 = vadd.f32 0.0, %v1228
        %v1230 = vpop.f32.mrb[0].mxu0
        %1231 = vdwg.mxu0
        %v1233 = vsel %vm1184, %v1179, 0
        %v1236 = vsel %vm1184, %v1181, 0
        %1238 = vmatprep.subr.bf16.mxu0 0
        %1239 = vmatpush1.bf16.xpose.msra.mxu0 %v1236
        %1240 = vmatprep.subr.bf16.mxu0 0
        %1241 = vmatpush1.bf16.xpose.msra.mxu0 0
        %1242 = vmatprep.subr.bf16.mxu0 0
        %1243 = vmatpush1.bf16.xpose.msra.mxu0 0
        %1244 = vmatprep.subr.bf16.mxu0 0
        %1245 = vmatpush1.bf16.xpose.msra.mxu0 0
        %1246 = vmatprep.subr.bf16.mxu0 0
        %1247 = vmatpush1.bf16.xpose.msra.mxu0 0
        %1248 = vmatprep.subr.bf16.mxu0 0
        %1249 = vmatpush1.bf16.xpose.msra.mxu0 0
        %1250 = vmatprep.subr.bf16.mxu0 0
        %1251 = vmatpush1.bf16.xpose.msra.mxu0 0
        %1252 = vmatprep.subr.bf16.mxu0 0
        %1253 = vmatpush1.bf16.xpose.msra.mxu0 0
        %1254 = vmatprep.subr.bf16.mxu0 0
        %1255 = vmatpush1.bf16.xpose.msra.mxu0 0
        %1256 = vmatprep.subr.bf16.mxu0 0
        %1257 = vmatpush1.bf16.xpose.msra.mxu0 0
        %1258 = vmatprep.subr.bf16.mxu0 0
        %1259 = vmatpush1.bf16.xpose.msra.mxu0 0
        %1260 = vmatprep.subr.bf16.mxu0 0
        %1261 = vmatpush1.bf16.xpose.msra.mxu0 0
        %1262 = vmatprep.subr.bf16.mxu0 0
        %1263 = vmatpush1.bf16.xpose.msra.mxu0 0
        %1264 = vmatprep.subr.bf16.mxu0 0
        %1265 = vmatpush1.bf16.xpose.msra.mxu0 0
        %1266 = vmatprep.subr.bf16.mxu0 0
        %1267 = vmatpush1.bf16.xpose.msra.mxu0 0
        %1268 = vmatprep.subr.bf16.mxu0 0
        %1269 = vmatpush1.bf16.xpose.msra.mxu0 0
        %1270 = vmatprep.mubr.bf16.mxu0 0
        %1271 = vmatmul.mubr.bf16.gmra.mrb[0].mxu0 %v1233
        %v1272 = vpop.f32.mrb[0].mxu0
        %v1273 = vadd.f32 0.0, %v1272
        %v1274 = vpop.f32.mrb[0].mxu0
        %v1275 = vpop.f32.mrb[0].mxu0
        %v1276 = vadd.f32 0.0, %v1275
        %v1277 = vpop.f32.mrb[0].mxu0
        %1278 = vdwg.mxu0
        %vm1279 = vcmask 130048
        %v1280 = vsel %vm1279, %v1226, -inf
        %1281 = vmax.xlane.f32.xlu0 %v1280
        %v1282 = vpop.xlane.xlu0 %1281
        %v1283 = vsel %vm1279, %v1229, -inf
        %1284 = vmax.xlane.f32.xlu0 %v1283
        %v1285 = vpop.xlane.xlu0 %1284
        %v1286 = vsel %vm1279, %v1273, -inf
        %1287 = vmax.xlane.f32.xlu0 %v1286
        %v1288 = vpop.xlane.xlu0 %1287
        %v1289 = vsel %vm1279, %v1276, -inf
        %1290 = vmax.xlane.f32.xlu0 %v1289
        %v1291 = vpop.xlane.xlu0 %1290
        %v1292 = vsub.f32 %v1226, %v1282
        %v1293 = vsub.f32 %v1229, %v1285
        %v1294 = vsub.f32 %v1273, %v1288
        %v1295 = vsub.f32 %v1276, %v1291
        %v1296 = vmul.f32 %v1292, 1.442695
        %v1297 = vpow.pop %v1296
        %v1298 = vmul.f32 %v1293, 1.442695
        %v1299 = vpow.pop %v1298
        %v1300 = vmul.f32 %v1294, 1.442695
        %v1301 = vpow.pop %v1300
        %v1302 = vmul.f32 %v1295, 1.442695
        %v1303 = vpow.pop %v1302
        %v1304 = vsel %vm1279, %v1297, 0.0
        %1305 = vadd.xlane.f32.xlu0 %v1304
        %v1306 = vpop.xlane.xlu0 %1305
        %v1307 = vsel %vm1279, %v1299, 0.0
        %1308 = vadd.xlane.f32.xlu0 %v1307
        %v1309 = vpop.xlane.xlu0 %1308
        %v1310 = vsel %vm1279, %v1301, 0.0
        %1311 = vadd.xlane.f32.xlu0 %v1310
        %v1312 = vpop.xlane.xlu0 %1311
        %v1313 = vsel %vm1279, %v1303, 0.0
        %1314 = vadd.xlane.f32.xlu0 %v1313
        %v1315 = vpop.xlane.xlu0 %1314
        %v1316 = vrcp.pop %v1306
        %v1317 = vrcp.pop %v1309
        %v1318 = vrcp.pop %v1312
        %v1319 = vrcp.pop %v1315
        %v1320 = vmul.f32 %v1297, %v1316
        %v1321 = vmul.f32 %v1299, %v1317
        %v1322 = vmul.f32 %v1301, %v1318
        %v1323 = vmul.f32 %v1303, %v1319
        %v1324 = vpack.c.bf16 %v1321, %v1320
        %v1325 = vpack.c.bf16 %v1323, %v1322
        %v1327 = vsel %vm1279, %v1324, 0
        %1329 = vmatprep.subr.bf16.mxu0 0
        %1330 = vmatpush1.bf16.msra.mxu0 %v1182
        %1331 = vmatprep.subr.bf16.mxu0 0
        %1332 = vmatpush1.bf16.msra.mxu0 0
        %1333 = vmatprep.subr.bf16.mxu0 0
        %1334 = vmatpush1.bf16.msra.mxu0 0
        %1335 = vmatprep.subr.bf16.mxu0 0
        %1336 = vmatpush1.bf16.msra.mxu0 0
        %1337 = vmatprep.subr.bf16.mxu0 0
        %1338 = vmatpush1.bf16.msra.mxu0 0
        %1339 = vmatprep.subr.bf16.mxu0 0
        %1340 = vmatpush1.bf16.msra.mxu0 0
        %1341 = vmatprep.subr.bf16.mxu0 0
        %1342 = vmatpush1.bf16.msra.mxu0 0
        %1343 = vmatprep.subr.bf16.mxu0 0
        %1344 = vmatpush1.bf16.msra.mxu0 0
        %1345 = vmatprep.subr.bf16.mxu0 0
        %1346 = vmatpush1.bf16.msra.mxu0 0
        %1347 = vmatprep.subr.bf16.mxu0 0
        %1348 = vmatpush1.bf16.msra.mxu0 0
        %1349 = vmatprep.subr.bf16.mxu0 0
        %1350 = vmatpush1.bf16.msra.mxu0 0
        %1351 = vmatprep.subr.bf16.mxu0 0
        %1352 = vmatpush1.bf16.msra.mxu0 0
        %1353 = vmatprep.subr.bf16.mxu0 0
        %1354 = vmatpush1.bf16.msra.mxu0 0
        %1355 = vmatprep.subr.bf16.mxu0 0
        %1356 = vmatpush1.bf16.msra.mxu0 0
        %1357 = vmatprep.subr.bf16.mxu0 0
        %1358 = vmatpush1.bf16.msra.mxu0 0
        %1359 = vmatprep.subr.bf16.mxu0 0
        %1360 = vmatpush1.bf16.msra.mxu0 0
        %1361 = vmatprep.mubr.bf16.mxu0 0
        %1362 = vmatmul.mubr.bf16.gmra.mrb[0].mxu0 %v1327
        %v1363 = vpop.f32.mrb[0].mxu0
        %v1364 = vadd.f32 0.0, %v1363
        %v1365 = vpop.f32.mrb[0].mxu0
        %v1366 = vpop.f32.mrb[0].mxu0
        %v1367 = vadd.f32 0.0, %v1366
        %v1368 = vpop.f32.mrb[0].mxu0
        %1369 = vdwg.mxu0
        %v1371 = vsel %vm1279, %v1325, 0
        %1373 = vmatprep.subr.bf16.mxu0 0
        %1374 = vmatpush1.bf16.msra.mxu0 %v1183
        %1375 = vmatprep.subr.bf16.mxu0 0
        %1376 = vmatpush1.bf16.msra.mxu0 0
        %1377 = vmatprep.subr.bf16.mxu0 0
        %1378 = vmatpush1.bf16.msra.mxu0 0
        %1379 = vmatprep.subr.bf16.mxu0 0
        %1380 = vmatpush1.bf16.msra.mxu0 0
        %1381 = vmatprep.subr.bf16.mxu0 0
        %1382 = vmatpush1.bf16.msra.mxu0 0
        %1383 = vmatprep.subr.bf16.mxu0 0
        %1384 = vmatpush1.bf16.msra.mxu0 0
        %1385 = vmatprep.subr.bf16.mxu0 0
        %1386 = vmatpush1.bf16.msra.mxu0 0
        %1387 = vmatprep.subr.bf16.mxu0 0
        %1388 = vmatpush1.bf16.msra.mxu0 0
        %1389 = vmatprep.subr.bf16.mxu0 0
        %1390 = vmatpush1.bf16.msra.mxu0 0
        %1391 = vmatprep.subr.bf16.mxu0 0
        %1392 = vmatpush1.bf16.msra.mxu0 0
        %1393 = vmatprep.subr.bf16.mxu0 0
        %1394 = vmatpush1.bf16.msra.mxu0 0
        %1395 = vmatprep.subr.bf16.mxu0 0
        %1396 = vmatpush1.bf16.msra.mxu0 0
        %1397 = vmatprep.subr.bf16.mxu0 0
        %1398 = vmatpush1.bf16.msra.mxu0 0
        %1399 = vmatprep.subr.bf16.mxu0 0
        %1400 = vmatpush1.bf16.msra.mxu0 0
        %1401 = vmatprep.subr.bf16.mxu0 0
        %1402 = vmatpush1.bf16.msra.mxu0 0
        %1403 = vmatprep.subr.bf16.mxu0 0
        %1404 = vmatpush1.bf16.msra.mxu0 0
        %1405 = vmatprep.mubr.bf16.mxu0 0
        %1406 = vmatmul.mubr.bf16.gmra.mrb[0].mxu0 %v1371
        %v1407 = vpop.f32.mrb[0].mxu0
        %v1408 = vadd.f32 0.0, %v1407
        %v1409 = vpop.f32.mrb[0].mxu0
        %v1410 = vpop.f32.mrb[0].mxu0
        %v1411 = vadd.f32 0.0, %v1410
        %v1412 = vpop.f32.mrb[0].mxu0
        %1413 = vdwg.mxu0
        %1415 = vrot.lane.b32.xlu0 %v1178, 96
        %v1416 = vpop.permute.xlu0 %1415
        %1418 = vrot.lane.b32.xlu0 %v1180, 96
        %v1419 = vpop.permute.xlu0 %1418
        %v1421 = vsel %vm1184, %v1416, 0
        %v1424 = vsel %vm1184, %v1419, 0
        %1426 = vmatprep.subr.bf16.mxu0 0
        %1427 = vmatpush1.bf16.xpose.msra.mxu0 %v1424
        %1428 = vmatprep.subr.bf16.mxu0 0
        %1429 = vmatpush1.bf16.xpose.msra.mxu0 0
        %1430 = vmatprep.subr.bf16.mxu0 0
        %1431 = vmatpush1.bf16.xpose.msra.mxu0 0
        %1432 = vmatprep.subr.bf16.mxu0 0
        %1433 = vmatpush1.bf16.xpose.msra.mxu0 0
        %1434 = vmatprep.subr.bf16.mxu0 0
        %1435 = vmatpush1.bf16.xpose.msra.mxu0 0
        %1436 = vmatprep.subr.bf16.mxu0 0
        %1437 = vmatpush1.bf16.xpose.msra.mxu0 0
        %1438 = vmatprep.subr.bf16.mxu0 0
        %1439 = vmatpush1.bf16.xpose.msra.mxu0 0
        %1440 = vmatprep.subr.bf16.mxu0 0
        %1441 = vmatpush1.bf16.xpose.msra.mxu0 0
        %1442 = vmatprep.subr.bf16.mxu0 0
        %1443 = vmatpush1.bf16.xpose.msra.mxu0 0
        %1444 = vmatprep.subr.bf16.mxu0 0
        %1445 = vmatpush1.bf16.xpose.msra.mxu0 0
        %1446 = vmatprep.subr.bf16.mxu0 0
        %1447 = vmatpush1.bf16.xpose.msra.mxu0 0
        %1448 = vmatprep.subr.bf16.mxu0 0
        %1449 = vmatpush1.bf16.xpose.msra.mxu0 0
        %1450 = vmatprep.subr.bf16.mxu0 0
        %1451 = vmatpush1.bf16.xpose.msra.mxu0 0
        %1452 = vmatprep.subr.bf16.mxu0 0
        %1453 = vmatpush1.bf16.xpose.msra.mxu0 0
        %1454 = vmatprep.subr.bf16.mxu0 0
        %1455 = vmatpush1.bf16.xpose.msra.mxu0 0
        %1456 = vmatprep.subr.bf16.mxu0 0
        %1457 = vmatpush1.bf16.xpose.msra.mxu0 0
        %1458 = vmatprep.mubr.bf16.mxu0 0
        %1459 = vmatmul.mubr.bf16.gmra.mrb[0].mxu0 %v1421
        %v1460 = vpop.f32.mrb[0].mxu0
        %v1461 = vadd.f32 0.0, %v1460
        %v1462 = vpop.f32.mrb[0].mxu0
        %v1463 = vpop.f32.mrb[0].mxu0
        %v1464 = vadd.f32 0.0, %v1463
        %v1465 = vpop.f32.mrb[0].mxu0
        %1466 = vdwg.mxu0
        %1468 = vrot.lane.b32.xlu0 %v1179, 96
        %v1469 = vpop.permute.xlu0 %1468
        %1471 = vrot.lane.b32.xlu0 %v1181, 96
        %v1472 = vpop.permute.xlu0 %1471
        %v1474 = vsel %vm1184, %v1469, 0
        %v1477 = vsel %vm1184, %v1472, 0
        %1479 = vmatprep.subr.bf16.mxu0 0
        %1480 = vmatpush1.bf16.xpose.msra.mxu0 %v1477
        %1481 = vmatprep.subr.bf16.mxu0 0
        %1482 = vmatpush1.bf16.xpose.msra.mxu0 0
        %1483 = vmatprep.subr.bf16.mxu0 0
        %1484 = vmatpush1.bf16.xpose.msra.mxu0 0
        %1485 = vmatprep.subr.bf16.mxu0 0
        %1486 = vmatpush1.bf16.xpose.msra.mxu0 0
        %1487 = vmatprep.subr.bf16.mxu0 0
        %1488 = vmatpush1.bf16.xpose.msra.mxu0 0
        %1489 = vmatprep.subr.bf16.mxu0 0
        %1490 = vmatpush1.bf16.xpose.msra.mxu0 0
        %1491 = vmatprep.subr.bf16.mxu0 0
        %1492 = vmatpush1.bf16.xpose.msra.mxu0 0
        %1493 = vmatprep.subr.bf16.mxu0 0
        %1494 = vmatpush1.bf16.xpose.msra.mxu0 0
        %1495 = vmatprep.subr.bf16.mxu0 0
        %1496 = vmatpush1.bf16.xpose.msra.mxu0 0
        %1497 = vmatprep.subr.bf16.mxu0 0
        %1498 = vmatpush1.bf16.xpose.msra.mxu0 0
        %1499 = vmatprep.subr.bf16.mxu0 0
        %1500 = vmatpush1.bf16.xpose.msra.mxu0 0
        %1501 = vmatprep.subr.bf16.mxu0 0
        %1502 = vmatpush1.bf16.xpose.msra.mxu0 0
        %1503 = vmatprep.subr.bf16.mxu0 0
        %1504 = vmatpush1.bf16.xpose.msra.mxu0 0
        %1505 = vmatprep.subr.bf16.mxu0 0
        %1506 = vmatpush1.bf16.xpose.msra.mxu0 0
        %1507 = vmatprep.subr.bf16.mxu0 0
        %1508 = vmatpush1.bf16.xpose.msra.mxu0 0
        %1509 = vmatprep.subr.bf16.mxu0 0
        %1510 = vmatpush1.bf16.xpose.msra.mxu0 0
        %1511 = vmatprep.mubr.bf16.mxu0 0
        %1512 = vmatmul.mubr.bf16.gmra.mrb[0].mxu0 %v1474
        %v1513 = vpop.f32.mrb[0].mxu0
        %v1514 = vadd.f32 0.0, %v1513
        %v1515 = vpop.f32.mrb[0].mxu0
        %v1516 = vpop.f32.mrb[0].mxu0
        %v1517 = vadd.f32 0.0, %v1516
        %v1518 = vpop.f32.mrb[0].mxu0
        %1519 = vdwg.mxu0
        %v1520 = vsel %vm1279, %v1461, -inf
        %1521 = vmax.xlane.f32.xlu0 %v1520
        %v1522 = vpop.xlane.xlu0 %1521
        %v1523 = vsel %vm1279, %v1464, -inf
        %1524 = vmax.xlane.f32.xlu0 %v1523
        %v1525 = vpop.xlane.xlu0 %1524
        %v1526 = vsel %vm1279, %v1514, -inf
        %1527 = vmax.xlane.f32.xlu0 %v1526
        %v1528 = vpop.xlane.xlu0 %1527
        %v1529 = vsel %vm1279, %v1517, -inf
        %1530 = vmax.xlane.f32.xlu0 %v1529
        %v1531 = vpop.xlane.xlu0 %1530
        %v1532 = vsub.f32 %v1461, %v1522
        %v1533 = vsub.f32 %v1464, %v1525
        %v1534 = vsub.f32 %v1514, %v1528
        %v1535 = vsub.f32 %v1517, %v1531
        %v1536 = vmul.f32 %v1532, 1.442695
        %v1537 = vpow.pop %v1536
        %v1538 = vmul.f32 %v1533, 1.442695
        %v1539 = vpow.pop %v1538
        %v1540 = vmul.f32 %v1534, 1.442695
        %v1541 = vpow.pop %v1540
        %v1542 = vmul.f32 %v1535, 1.442695
        %v1543 = vpow.pop %v1542
        %v1544 = vsel %vm1279, %v1537, 0.0
        %1545 = vadd.xlane.f32.xlu0 %v1544
        %v1546 = vpop.xlane.xlu0 %1545
        %v1547 = vsel %vm1279, %v1539, 0.0
        %1548 = vadd.xlane.f32.xlu0 %v1547
        %v1549 = vpop.xlane.xlu0 %1548
        %v1550 = vsel %vm1279, %v1541, 0.0
        %1551 = vadd.xlane.f32.xlu0 %v1550
        %v1552 = vpop.xlane.xlu0 %1551
        %v1553 = vsel %vm1279, %v1543, 0.0
        %1554 = vadd.xlane.f32.xlu0 %v1553
        %v1555 = vpop.xlane.xlu0 %1554
        %v1556 = vrcp.pop %v1546
        %v1557 = vrcp.pop %v1549
        %v1558 = vrcp.pop %v1552
        %v1559 = vrcp.pop %v1555
        %v1560 = vmul.f32 %v1537, %v1556
        %v1561 = vmul.f32 %v1539, %v1557
        %v1562 = vmul.f32 %v1541, %v1558
        %v1563 = vmul.f32 %v1543, %v1559
        %v1564 = vpack.c.bf16 %v1561, %v1560
        %v1565 = vpack.c.bf16 %v1563, %v1562
        %1567 = vrot.lane.b32.xlu0 %v1182, 96
        %v1568 = vpop.permute.xlu0 %1567
        %v1571 = vsel %vm1279, %v1564, 0
        %1573 = vmatprep.subr.bf16.mxu0 0
        %1574 = vmatpush1.bf16.msra.mxu0 %v1568
        %1575 = vmatprep.subr.bf16.mxu0 0
        %1576 = vmatpush1.bf16.msra.mxu0 0
        %1577 = vmatprep.subr.bf16.mxu0 0
        %1578 = vmatpush1.bf16.msra.mxu0 0
        %1579 = vmatprep.subr.bf16.mxu0 0
        %1580 = vmatpush1.bf16.msra.mxu0 0
        %1581 = vmatprep.subr.bf16.mxu0 0
        %1582 = vmatpush1.bf16.msra.mxu0 0
        %1583 = vmatprep.subr.bf16.mxu0 0
        %1584 = vmatpush1.bf16.msra.mxu0 0
        %1585 = vmatprep.subr.bf16.mxu0 0
        %1586 = vmatpush1.bf16.msra.mxu0 0
        %1587 = vmatprep.subr.bf16.mxu0 0
        %1588 = vmatpush1.bf16.msra.mxu0 0
        %1589 = vmatprep.subr.bf16.mxu0 0
        %1590 = vmatpush1.bf16.msra.mxu0 0
        %1591 = vmatprep.subr.bf16.mxu0 0
        %1592 = vmatpush1.bf16.msra.mxu0 0
        %1593 = vmatprep.subr.bf16.mxu0 0
        %1594 = vmatpush1.bf16.msra.mxu0 0
        %1595 = vmatprep.subr.bf16.mxu0 0
        %1596 = vmatpush1.bf16.msra.mxu0 0
        %1597 = vmatprep.subr.bf16.mxu0 0
        %1598 = vmatpush1.bf16.msra.mxu0 0
        %1599 = vmatprep.subr.bf16.mxu0 0
        %1600 = vmatpush1.bf16.msra.mxu0 0
        %1601 = vmatprep.subr.bf16.mxu0 0
        %1602 = vmatpush1.bf16.msra.mxu0 0
        %1603 = vmatprep.subr.bf16.mxu0 0
        %1604 = vmatpush1.bf16.msra.mxu0 0
        %1605 = vmatprep.mubr.bf16.mxu0 0
        %1606 = vmatmul.mubr.bf16.gmra.mrb[0].mxu0 %v1571
        %v1607 = vpop.f32.mrb[0].mxu0
        %v1608 = vadd.f32 0.0, %v1607
        %v1609 = vpop.f32.mrb[0].mxu0
        %v1610 = vpop.f32.mrb[0].mxu0
        %v1611 = vadd.f32 0.0, %v1610
        %v1612 = vpop.f32.mrb[0].mxu0
        %1613 = vdwg.mxu0
        %1615 = vrot.lane.b32.xlu0 %v1183, 96
        %v1616 = vpop.permute.xlu0 %1615
        %v1619 = vsel %vm1279, %v1565, 0
        %1621 = vmatprep.subr.bf16.mxu0 0
        %1622 = vmatpush1.bf16.msra.mxu0 %v1616
        %1623 = vmatprep.subr.bf16.mxu0 0
        %1624 = vmatpush1.bf16.msra.mxu0 0
        %1625 = vmatprep.subr.bf16.mxu0 0
        %1626 = vmatpush1.bf16.msra.mxu0 0
        %1627 = vmatprep.subr.bf16.mxu0 0
        %1628 = vmatpush1.bf16.msra.mxu0 0
        %1629 = vmatprep.subr.bf16.mxu0 0
        %1630 = vmatpush1.bf16.msra.mxu0 0
        %1631 = vmatprep.subr.bf16.mxu0 0
        %1632 = vmatpush1.bf16.msra.mxu0 0
        %1633 = vmatprep.subr.bf16.mxu0 0
        %1634 = vmatpush1.bf16.msra.mxu0 0
        %1635 = vmatprep.subr.bf16.mxu0 0
        %1636 = vmatpush1.bf16.msra.mxu0 0
        %1637 = vmatprep.subr.bf16.mxu0 0
        %1638 = vmatpush1.bf16.msra.mxu0 0
        %1639 = vmatprep.subr.bf16.mxu0 0
        %1640 = vmatpush1.bf16.msra.mxu0 0
        %1641 = vmatprep.subr.bf16.mxu0 0
        %1642 = vmatpush1.bf16.msra.mxu0 0
        %1643 = vmatprep.subr.bf16.mxu0 0
        %1644 = vmatpush1.bf16.msra.mxu0 0
        %1645 = vmatprep.subr.bf16.mxu0 0
        %1646 = vmatpush1.bf16.msra.mxu0 0
        %1647 = vmatprep.subr.bf16.mxu0 0
        %1648 = vmatpush1.bf16.msra.mxu0 0
        %1649 = vmatprep.subr.bf16.mxu0 0
        %1650 = vmatpush1.bf16.msra.mxu0 0
        %1651 = vmatprep.subr.bf16.mxu0 0
        %1652 = vmatpush1.bf16.msra.mxu0 0
        %1653 = vmatprep.mubr.bf16.mxu0 0
        %1654 = vmatmul.mubr.bf16.gmra.mrb[0].mxu0 %v1619
        %v1655 = vpop.f32.mrb[0].mxu0
        %v1656 = vadd.f32 0.0, %v1655
        %v1657 = vpop.f32.mrb[0].mxu0
        %v1658 = vpop.f32.mrb[0].mxu0
        %v1659 = vadd.f32 0.0, %v1658
        %v1660 = vpop.f32.mrb[0].mxu0
        %1661 = vdwg.mxu0
        %1662 = vrot.lane.b32.xlu0 %v1178, 64
        %v1663 = vpop.permute.xlu0 %1662
        %1664 = vrot.lane.b32.xlu0 %v1180, 64
        %v1665 = vpop.permute.xlu0 %1664
        %v1667 = vsel %vm1184, %v1663, 0
        %v1670 = vsel %vm1184, %v1665, 0
        %1672 = vmatprep.subr.bf16.mxu0 0
        %1673 = vmatpush1.bf16.xpose.msra.mxu0 %v1670
        %1674 = vmatprep.subr.bf16.mxu0 0
        %1675 = vmatpush1.bf16.xpose.msra.mxu0 0
        %1676 = vmatprep.subr.bf16.mxu0 0
        %1677 = vmatpush1.bf16.xpose.msra.mxu0 0
        %1678 = vmatprep.subr.bf16.mxu0 0
        %1679 = vmatpush1.bf16.xpose.msra.mxu0 0
        %1680 = vmatprep.subr.bf16.mxu0 0
        %1681 = vmatpush1.bf16.xpose.msra.mxu0 0
        %1682 = vmatprep.subr.bf16.mxu0 0
        %1683 = vmatpush1.bf16.xpose.msra.mxu0 0
        %1684 = vmatprep.subr.bf16.mxu0 0
        %1685 = vmatpush1.bf16.xpose.msra.mxu0 0
        %1686 = vmatprep.subr.bf16.mxu0 0
        %1687 = vmatpush1.bf16.xpose.msra.mxu0 0
        %1688 = vmatprep.subr.bf16.mxu0 0
        %1689 = vmatpush1.bf16.xpose.msra.mxu0 0
        %1690 = vmatprep.subr.bf16.mxu0 0
        %1691 = vmatpush1.bf16.xpose.msra.mxu0 0
        %1692 = vmatprep.subr.bf16.mxu0 0
        %1693 = vmatpush1.bf16.xpose.msra.mxu0 0
        %1694 = vmatprep.subr.bf16.mxu0 0
        %1695 = vmatpush1.bf16.xpose.msra.mxu0 0
        %1696 = vmatprep.subr.bf16.mxu0 0
        %1697 = vmatpush1.bf16.xpose.msra.mxu0 0
        %1698 = vmatprep.subr.bf16.mxu0 0
        %1699 = vmatpush1.bf16.xpose.msra.mxu0 0
        %1700 = vmatprep.subr.bf16.mxu0 0
        %1701 = vmatpush1.bf16.xpose.msra.mxu0 0
        %1702 = vmatprep.subr.bf16.mxu0 0
        %1703 = vmatpush1.bf16.xpose.msra.mxu0 0
        %1704 = vmatprep.mubr.bf16.mxu0 0
        %1705 = vmatmul.mubr.bf16.gmra.mrb[0].mxu0 %v1667
        %v1706 = vpop.f32.mrb[0].mxu0
        %v1707 = vadd.f32 0.0, %v1706
        %v1708 = vpop.f32.mrb[0].mxu0
        %v1709 = vpop.f32.mrb[0].mxu0
        %v1710 = vadd.f32 0.0, %v1709
        %v1711 = vpop.f32.mrb[0].mxu0
        %1712 = vdwg.mxu0
        %1713 = vrot.lane.b32.xlu0 %v1179, 64
        %v1714 = vpop.permute.xlu0 %1713
        %1715 = vrot.lane.b32.xlu0 %v1181, 64
        %v1716 = vpop.permute.xlu0 %1715
        %v1718 = vsel %vm1184, %v1714, 0
        %v1721 = vsel %vm1184, %v1716, 0
        %1723 = vmatprep.subr.bf16.mxu0 0
        %1724 = vmatpush1.bf16.xpose.msra.mxu0 %v1721
        %1725 = vmatprep.subr.bf16.mxu0 0
        %1726 = vmatpush1.bf16.xpose.msra.mxu0 0
        %1727 = vmatprep.subr.bf16.mxu0 0
        %1728 = vmatpush1.bf16.xpose.msra.mxu0 0
        %1729 = vmatprep.subr.bf16.mxu0 0
        %1730 = vmatpush1.bf16.xpose.msra.mxu0 0
        %1731 = vmatprep.subr.bf16.mxu0 0
        %1732 = vmatpush1.bf16.xpose.msra.mxu0 0
        %1733 = vmatprep.subr.bf16.mxu0 0
        %1734 = vmatpush1.bf16.xpose.msra.mxu0 0
        %1735 = vmatprep.subr.bf16.mxu0 0
        %1736 = vmatpush1.bf16.xpose.msra.mxu0 0
        %1737 = vmatprep.subr.bf16.mxu0 0
        %1738 = vmatpush1.bf16.xpose.msra.mxu0 0
        %1739 = vmatprep.subr.bf16.mxu0 0
        %1740 = vmatpush1.bf16.xpose.msra.mxu0 0
        %1741 = vmatprep.subr.bf16.mxu0 0
        %1742 = vmatpush1.bf16.xpose.msra.mxu0 0
        %1743 = vmatprep.subr.bf16.mxu0 0
        %1744 = vmatpush1.bf16.xpose.msra.mxu0 0
        %1745 = vmatprep.subr.bf16.mxu0 0
        %1746 = vmatpush1.bf16.xpose.msra.mxu0 0
        %1747 = vmatprep.subr.bf16.mxu0 0
        %1748 = vmatpush1.bf16.xpose.msra.mxu0 0
        %1749 = vmatprep.subr.bf16.mxu0 0
        %1750 = vmatpush1.bf16.xpose.msra.mxu0 0
        %1751 = vmatprep.subr.bf16.mxu0 0
        %1752 = vmatpush1.bf16.xpose.msra.mxu0 0
        %1753 = vmatprep.subr.bf16.mxu0 0
        %1754 = vmatpush1.bf16.xpose.msra.mxu0 0
        %1755 = vmatprep.mubr.bf16.mxu0 0
        %1756 = vmatmul.mubr.bf16.gmra.mrb[0].mxu0 %v1718
        %v1757 = vpop.f32.mrb[0].mxu0
        %v1758 = vadd.f32 0.0, %v1757
        %v1759 = vpop.f32.mrb[0].mxu0
        %v1760 = vpop.f32.mrb[0].mxu0
        %v1761 = vadd.f32 0.0, %v1760
        %v1762 = vpop.f32.mrb[0].mxu0
        %1763 = vdwg.mxu0
        %v1764 = vsel %vm1279, %v1707, -inf
        %1765 = vmax.xlane.f32.xlu0 %v1764
        %v1766 = vpop.xlane.xlu0 %1765
        %v1767 = vsel %vm1279, %v1710, -inf
        %1768 = vmax.xlane.f32.xlu0 %v1767
        %v1769 = vpop.xlane.xlu0 %1768
        %v1770 = vsel %vm1279, %v1758, -inf
        %1771 = vmax.xlane.f32.xlu0 %v1770
        %v1772 = vpop.xlane.xlu0 %1771
        %v1773 = vsel %vm1279, %v1761, -inf
        %1774 = vmax.xlane.f32.xlu0 %v1773
        %v1775 = vpop.xlane.xlu0 %1774
        %v1776 = vsub.f32 %v1707, %v1766
        %v1777 = vsub.f32 %v1710, %v1769
        %v1778 = vsub.f32 %v1758, %v1772
        %v1779 = vsub.f32 %v1761, %v1775
        %v1780 = vmul.f32 %v1776, 1.442695
        %v1781 = vpow.pop %v1780
        %v1782 = vmul.f32 %v1777, 1.442695
        %v1783 = vpow.pop %v1782
        %v1784 = vmul.f32 %v1778, 1.442695
        %v1785 = vpow.pop %v1784
        %v1786 = vmul.f32 %v1779, 1.442695
        %v1787 = vpow.pop %v1786
        %v1788 = vsel %vm1279, %v1781, 0.0
        %1789 = vadd.xlane.f32.xlu0 %v1788
        %v1790 = vpop.xlane.xlu0 %1789
        %v1791 = vsel %vm1279, %v1783, 0.0
        %1792 = vadd.xlane.f32.xlu0 %v1791
        %v1793 = vpop.xlane.xlu0 %1792
        %v1794 = vsel %vm1279, %v1785, 0.0
        %1795 = vadd.xlane.f32.xlu0 %v1794
        %v1796 = vpop.xlane.xlu0 %1795
        %v1797 = vsel %vm1279, %v1787, 0.0
        %1798 = vadd.xlane.f32.xlu0 %v1797
        %v1799 = vpop.xlane.xlu0 %1798
        %v1800 = vrcp.pop %v1790
        %v1801 = vrcp.pop %v1793
        %v1802 = vrcp.pop %v1796
        %v1803 = vrcp.pop %v1799
        %v1804 = vmul.f32 %v1781, %v1800
        %v1805 = vmul.f32 %v1783, %v1801
        %v1806 = vmul.f32 %v1785, %v1802
        %v1807 = vmul.f32 %v1787, %v1803
        %v1808 = vpack.c.bf16 %v1805, %v1804
        %v1809 = vpack.c.bf16 %v1807, %v1806
        %1810 = vrot.lane.b32.xlu0 %v1182, 64
        %v1811 = vpop.permute.xlu0 %1810
        %v1814 = vsel %vm1279, %v1808, 0
        %1816 = vmatprep.subr.bf16.mxu0 0
        %1817 = vmatpush1.bf16.msra.mxu0 %v1811
        %1818 = vmatprep.subr.bf16.mxu0 0
        %1819 = vmatpush1.bf16.msra.mxu0 0
        %1820 = vmatprep.subr.bf16.mxu0 0
        %1821 = vmatpush1.bf16.msra.mxu0 0
        %1822 = vmatprep.subr.bf16.mxu0 0
        %1823 = vmatpush1.bf16.msra.mxu0 0
        %1824 = vmatprep.subr.bf16.mxu0 0
        %1825 = vmatpush1.bf16.msra.mxu0 0
        %1826 = vmatprep.subr.bf16.mxu0 0
        %1827 = vmatpush1.bf16.msra.mxu0 0
        %1828 = vmatprep.subr.bf16.mxu0 0
        %1829 = vmatpush1.bf16.msra.mxu0 0
        %1830 = vmatprep.subr.bf16.mxu0 0
        %1831 = vmatpush1.bf16.msra.mxu0 0
        %1832 = vmatprep.subr.bf16.mxu0 0
        %1833 = vmatpush1.bf16.msra.mxu0 0
        %1834 = vmatprep.subr.bf16.mxu0 0
        %1835 = vmatpush1.bf16.msra.mxu0 0
        %1836 = vmatprep.subr.bf16.mxu0 0
        %1837 = vmatpush1.bf16.msra.mxu0 0
        %1838 = vmatprep.subr.bf16.mxu0 0
        %1839 = vmatpush1.bf16.msra.mxu0 0
        %1840 = vmatprep.subr.bf16.mxu0 0
        %1841 = vmatpush1.bf16.msra.mxu0 0
        %1842 = vmatprep.subr.bf16.mxu0 0
        %1843 = vmatpush1.bf16.msra.mxu0 0
        %1844 = vmatprep.subr.bf16.mxu0 0
        %1845 = vmatpush1.bf16.msra.mxu0 0
        %1846 = vmatprep.subr.bf16.mxu0 0
        %1847 = vmatpush1.bf16.msra.mxu0 0
        %1848 = vmatprep.mubr.bf16.mxu0 0
        %1849 = vmatmul.mubr.bf16.gmra.mrb[0].mxu0 %v1814
        %v1850 = vpop.f32.mrb[0].mxu0
        %v1851 = vadd.f32 0.0, %v1850
        %v1852 = vpop.f32.mrb[0].mxu0
        %v1853 = vpop.f32.mrb[0].mxu0
        %v1854 = vadd.f32 0.0, %v1853
        %v1855 = vpop.f32.mrb[0].mxu0
        %1856 = vdwg.mxu0
        %1857 = vrot.lane.b32.xlu0 %v1183, 64
        %v1858 = vpop.permute.xlu0 %1857
        %v1861 = vsel %vm1279, %v1809, 0
        %1863 = vmatprep.subr.bf16.mxu0 0
        %1864 = vmatpush1.bf16.msra.mxu0 %v1858
        %1865 = vmatprep.subr.bf16.mxu0 0
        %1866 = vmatpush1.bf16.msra.mxu0 0
        %1867 = vmatprep.subr.bf16.mxu0 0
        %1868 = vmatpush1.bf16.msra.mxu0 0
        %1869 = vmatprep.subr.bf16.mxu0 0
        %1870 = vmatpush1.bf16.msra.mxu0 0
        %1871 = vmatprep.subr.bf16.mxu0 0
        %1872 = vmatpush1.bf16.msra.mxu0 0
        %1873 = vmatprep.subr.bf16.mxu0 0
        %1874 = vmatpush1.bf16.msra.mxu0 0
        %1875 = vmatprep.subr.bf16.mxu0 0
        %1876 = vmatpush1.bf16.msra.mxu0 0
        %1877 = vmatprep.subr.bf16.mxu0 0
        %1878 = vmatpush1.bf16.msra.mxu0 0
        %1879 = vmatprep.subr.bf16.mxu0 0
        %1880 = vmatpush1.bf16.msra.mxu0 0
        %1881 = vmatprep.subr.bf16.mxu0 0
        %1882 = vmatpush1.bf16.msra.mxu0 0
        %1883 = vmatprep.subr.bf16.mxu0 0
        %1884 = vmatpush1.bf16.msra.mxu0 0
        %1885 = vmatprep.subr.bf16.mxu0 0
        %1886 = vmatpush1.bf16.msra.mxu0 0
        %1887 = vmatprep.subr.bf16.mxu0 0
        %1888 = vmatpush1.bf16.msra.mxu0 0
        %1889 = vmatprep.subr.bf16.mxu0 0
        %1890 = vmatpush1.bf16.msra.mxu0 0
        %1891 = vmatprep.subr.bf16.mxu0 0
        %1892 = vmatpush1.bf16.msra.mxu0 0
        %1893 = vmatprep.subr.bf16.mxu0 0
        %1894 = vmatpush1.bf16.msra.mxu0 0
        %1895 = vmatprep.mubr.bf16.mxu0 0
        %1896 = vmatmul.mubr.bf16.gmra.mrb[0].mxu0 %v1861
        %v1897 = vpop.f32.mrb[0].mxu0
        %v1898 = vadd.f32 0.0, %v1897
        %v1899 = vpop.f32.mrb[0].mxu0
        %v1900 = vpop.f32.mrb[0].mxu0
        %v1901 = vadd.f32 0.0, %v1900
        %v1902 = vpop.f32.mrb[0].mxu0
        %1903 = vdwg.mxu0
        %1904 = vrot.lane.b32.xlu0 %v1178, 32
        %v1905 = vpop.permute.xlu0 %1904
        %1906 = vrot.lane.b32.xlu0 %v1180, 32
        %v1907 = vpop.permute.xlu0 %1906
        %v1909 = vsel %vm1184, %v1905, 0
        %v1912 = vsel %vm1184, %v1907, 0
        %1914 = vmatprep.subr.bf16.mxu0 0
        %1915 = vmatpush1.bf16.xpose.msra.mxu0 %v1912
        %1916 = vmatprep.subr.bf16.mxu0 0
        %1917 = vmatpush1.bf16.xpose.msra.mxu0 0
        %1918 = vmatprep.subr.bf16.mxu0 0
        %1919 = vmatpush1.bf16.xpose.msra.mxu0 0
        %1920 = vmatprep.subr.bf16.mxu0 0
        %1921 = vmatpush1.bf16.xpose.msra.mxu0 0
        %1922 = vmatprep.subr.bf16.mxu0 0
        %1923 = vmatpush1.bf16.xpose.msra.mxu0 0
        %1924 = vmatprep.subr.bf16.mxu0 0
        %1925 = vmatpush1.bf16.xpose.msra.mxu0 0
        %1926 = vmatprep.subr.bf16.mxu0 0
        %1927 = vmatpush1.bf16.xpose.msra.mxu0 0
        %1928 = vmatprep.subr.bf16.mxu0 0
        %1929 = vmatpush1.bf16.xpose.msra.mxu0 0
        %1930 = vmatprep.subr.bf16.mxu0 0
        %1931 = vmatpush1.bf16.xpose.msra.mxu0 0
        %1932 = vmatprep.subr.bf16.mxu0 0
        %1933 = vmatpush1.bf16.xpose.msra.mxu0 0
        %1934 = vmatprep.subr.bf16.mxu0 0
        %1935 = vmatpush1.bf16.xpose.msra.mxu0 0
        %1936 = vmatprep.subr.bf16.mxu0 0
        %1937 = vmatpush1.bf16.xpose.msra.mxu0 0
        %1938 = vmatprep.subr.bf16.mxu0 0
        %1939 = vmatpush1.bf16.xpose.msra.mxu0 0
        %1940 = vmatprep.subr.bf16.mxu0 0
        %1941 = vmatpush1.bf16.xpose.msra.mxu0 0
        %1942 = vmatprep.subr.bf16.mxu0 0
        %1943 = vmatpush1.bf16.xpose.msra.mxu0 0
        %1944 = vmatprep.subr.bf16.mxu0 0
        %1945 = vmatpush1.bf16.xpose.msra.mxu0 0
        %1946 = vmatprep.mubr.bf16.mxu0 0
        %1947 = vmatmul.mubr.bf16.gmra.mrb[0].mxu0 %v1909
        %v1948 = vpop.f32.mrb[0].mxu0
        %v1949 = vadd.f32 0.0, %v1948
        %v1950 = vpop.f32.mrb[0].mxu0
        %v1951 = vpop.f32.mrb[0].mxu0
        %v1952 = vadd.f32 0.0, %v1951
        %v1953 = vpop.f32.mrb[0].mxu0
        %1954 = vdwg.mxu0
        %1955 = vrot.lane.b32.xlu0 %v1179, 32
        %v1956 = vpop.permute.xlu0 %1955
        %1957 = vrot.lane.b32.xlu0 %v1181, 32
        %v1958 = vpop.permute.xlu0 %1957
        %v1960 = vsel %vm1184, %v1956, 0
        %v1963 = vsel %vm1184, %v1958, 0
        %1965 = vmatprep.subr.bf16.mxu0 0
        %1966 = vmatpush1.bf16.xpose.msra.mxu0 %v1963
        %1967 = vmatprep.subr.bf16.mxu0 0
        %1968 = vmatpush1.bf16.xpose.msra.mxu0 0
        %1969 = vmatprep.subr.bf16.mxu0 0
        %1970 = vmatpush1.bf16.xpose.msra.mxu0 0
        %1971 = vmatprep.subr.bf16.mxu0 0
        %1972 = vmatpush1.bf16.xpose.msra.mxu0 0
        %1973 = vmatprep.subr.bf16.mxu0 0
        %1974 = vmatpush1.bf16.xpose.msra.mxu0 0
        %1975 = vmatprep.subr.bf16.mxu0 0
        %1976 = vmatpush1.bf16.xpose.msra.mxu0 0
        %1977 = vmatprep.subr.bf16.mxu0 0
        %1978 = vmatpush1.bf16.xpose.msra.mxu0 0
        %1979 = vmatprep.subr.bf16.mxu0 0
        %1980 = vmatpush1.bf16.xpose.msra.mxu0 0
        %1981 = vmatprep.subr.bf16.mxu0 0
        %1982 = vmatpush1.bf16.xpose.msra.mxu0 0
        %1983 = vmatprep.subr.bf16.mxu0 0
        %1984 = vmatpush1.bf16.xpose.msra.mxu0 0
        %1985 = vmatprep.subr.bf16.mxu0 0
        %1986 = vmatpush1.bf16.xpose.msra.mxu0 0
        %1987 = vmatprep.subr.bf16.mxu0 0
        %1988 = vmatpush1.bf16.xpose.msra.mxu0 0
        %1989 = vmatprep.subr.bf16.mxu0 0
        %1990 = vmatpush1.bf16.xpose.msra.mxu0 0
        %1991 = vmatprep.subr.bf16.mxu0 0
        %1992 = vmatpush1.bf16.xpose.msra.mxu0 0
        %1993 = vmatprep.subr.bf16.mxu0 0
        %1994 = vmatpush1.bf16.xpose.msra.mxu0 0
        %1995 = vmatprep.subr.bf16.mxu0 0
        %1996 = vmatpush1.bf16.xpose.msra.mxu0 0
        %1997 = vmatprep.mubr.bf16.mxu0 0
        %1998 = vmatmul.mubr.bf16.gmra.mrb[0].mxu0 %v1960
        %v1999 = vpop.f32.mrb[0].mxu0
        %v2000 = vadd.f32 0.0, %v1999
        %v2001 = vpop.f32.mrb[0].mxu0
        %v2002 = vpop.f32.mrb[0].mxu0
        %v2003 = vadd.f32 0.0, %v2002
        %v2004 = vpop.f32.mrb[0].mxu0
        %2005 = vdwg.mxu0
        %v2006 = vsel %vm1279, %v1949, -inf
        %2007 = vmax.xlane.f32.xlu0 %v2006
        %v2008 = vpop.xlane.xlu0 %2007
        %v2009 = vsel %vm1279, %v1952, -inf
        %2010 = vmax.xlane.f32.xlu0 %v2009
        %v2011 = vpop.xlane.xlu0 %2010
        %v2012 = vsel %vm1279, %v2000, -inf
        %2013 = vmax.xlane.f32.xlu0 %v2012
        %v2014 = vpop.xlane.xlu0 %2013
        %v2015 = vsel %vm1279, %v2003, -inf
        %2016 = vmax.xlane.f32.xlu0 %v2015
        %v2017 = vpop.xlane.xlu0 %2016
        %v2018 = vsub.f32 %v1949, %v2008
        %v2019 = vsub.f32 %v1952, %v2011
        %v2020 = vsub.f32 %v2000, %v2014
        %v2021 = vsub.f32 %v2003, %v2017
        %v2022 = vmul.f32 %v2018, 1.442695
        %v2023 = vpow.pop %v2022
        %v2024 = vmul.f32 %v2019, 1.442695
        %v2025 = vpow.pop %v2024
        %v2026 = vmul.f32 %v2020, 1.442695
        %v2027 = vpow.pop %v2026
        %v2028 = vmul.f32 %v2021, 1.442695
        %v2029 = vpow.pop %v2028
        %v2030 = vsel %vm1279, %v2023, 0.0
        %2031 = vadd.xlane.f32.xlu0 %v2030
        %v2032 = vpop.xlane.xlu0 %2031
        %v2033 = vsel %vm1279, %v2025, 0.0
        %2034 = vadd.xlane.f32.xlu0 %v2033
        %v2035 = vpop.xlane.xlu0 %2034
        %v2036 = vsel %vm1279, %v2027, 0.0
        %2037 = vadd.xlane.f32.xlu0 %v2036
        %v2038 = vpop.xlane.xlu0 %2037
        %v2039 = vsel %vm1279, %v2029, 0.0
        %2040 = vadd.xlane.f32.xlu0 %v2039
        %v2041 = vpop.xlane.xlu0 %2040
        %v2042 = vrcp.pop %v2032
        %v2043 = vrcp.pop %v2035
        %v2044 = vrcp.pop %v2038
        %v2045 = vrcp.pop %v2041
        %v2046 = vmul.f32 %v2023, %v2042
        %v2047 = vmul.f32 %v2025, %v2043
        %v2048 = vmul.f32 %v2027, %v2044
        %v2049 = vmul.f32 %v2029, %v2045
        %v2050 = vpack.c.bf16 %v2047, %v2046
        %v2051 = vpack.c.bf16 %v2049, %v2048
        %2052 = vrot.lane.b32.xlu0 %v1182, 32
        %v2053 = vpop.permute.xlu0 %2052
        %v2056 = vsel %vm1279, %v2050, 0
        %2058 = vmatprep.subr.bf16.mxu0 0
        %2059 = vmatpush1.bf16.msra.mxu0 %v2053
        %2060 = vmatprep.subr.bf16.mxu0 0
        %2061 = vmatpush1.bf16.msra.mxu0 0
        %2062 = vmatprep.subr.bf16.mxu0 0
        %2063 = vmatpush1.bf16.msra.mxu0 0
        %2064 = vmatprep.subr.bf16.mxu0 0
        %2065 = vmatpush1.bf16.msra.mxu0 0
        %2066 = vmatprep.subr.bf16.mxu0 0
        %2067 = vmatpush1.bf16.msra.mxu0 0
        %2068 = vmatprep.subr.bf16.mxu0 0
        %2069 = vmatpush1.bf16.msra.mxu0 0
        %2070 = vmatprep.subr.bf16.mxu0 0
        %2071 = vmatpush1.bf16.msra.mxu0 0
        %2072 = vmatprep.subr.bf16.mxu0 0
        %2073 = vmatpush1.bf16.msra.mxu0 0
        %2074 = vmatprep.subr.bf16.mxu0 0
        %2075 = vmatpush1.bf16.msra.mxu0 0
        %2076 = vmatprep.subr.bf16.mxu0 0
        %2077 = vmatpush1.bf16.msra.mxu0 0
        %2078 = vmatprep.subr.bf16.mxu0 0
        %2079 = vmatpush1.bf16.msra.mxu0 0
        %2080 = vmatprep.subr.bf16.mxu0 0
        %2081 = vmatpush1.bf16.msra.mxu0 0
        %2082 = vmatprep.subr.bf16.mxu0 0
        %2083 = vmatpush1.bf16.msra.mxu0 0
        %2084 = vmatprep.subr.bf16.mxu0 0
        %2085 = vmatpush1.bf16.msra.mxu0 0
        %2086 = vmatprep.subr.bf16.mxu0 0
        %2087 = vmatpush1.bf16.msra.mxu0 0
        %2088 = vmatprep.subr.bf16.mxu0 0
        %2089 = vmatpush1.bf16.msra.mxu0 0
        %2090 = vmatprep.mubr.bf16.mxu0 0
        %2091 = vmatmul.mubr.bf16.gmra.mrb[0].mxu0 %v2056
        %v2092 = vpop.f32.mrb[0].mxu0
        %v2093 = vadd.f32 0.0, %v2092
        %v2094 = vpop.f32.mrb[0].mxu0
        %v2095 = vpop.f32.mrb[0].mxu0
        %v2096 = vadd.f32 0.0, %v2095
        %v2097 = vpop.f32.mrb[0].mxu0
        %2098 = vdwg.mxu0
        %2099 = vrot.lane.b32.xlu0 %v1183, 32
        %v2100 = vpop.permute.xlu0 %2099
        %v2103 = vsel %vm1279, %v2051, 0
        %2105 = vmatprep.subr.bf16.mxu0 0
        %2106 = vmatpush1.bf16.msra.mxu0 %v2100
        %2107 = vmatprep.subr.bf16.mxu0 0
        %2108 = vmatpush1.bf16.msra.mxu0 0
        %2109 = vmatprep.subr.bf16.mxu0 0
        %2110 = vmatpush1.bf16.msra.mxu0 0
        %2111 = vmatprep.subr.bf16.mxu0 0
        %2112 = vmatpush1.bf16.msra.mxu0 0
        %2113 = vmatprep.subr.bf16.mxu0 0
        %2114 = vmatpush1.bf16.msra.mxu0 0
        %2115 = vmatprep.subr.bf16.mxu0 0
        %2116 = vmatpush1.bf16.msra.mxu0 0
        %2117 = vmatprep.subr.bf16.mxu0 0
        %2118 = vmatpush1.bf16.msra.mxu0 0
        %2119 = vmatprep.subr.bf16.mxu0 0
        %2120 = vmatpush1.bf16.msra.mxu0 0
        %2121 = vmatprep.subr.bf16.mxu0 0
        %2122 = vmatpush1.bf16.msra.mxu0 0
        %2123 = vmatprep.subr.bf16.mxu0 0
        %2124 = vmatpush1.bf16.msra.mxu0 0
        %2125 = vmatprep.subr.bf16.mxu0 0
        %2126 = vmatpush1.bf16.msra.mxu0 0
        %2127 = vmatprep.subr.bf16.mxu0 0
        %2128 = vmatpush1.bf16.msra.mxu0 0
        %2129 = vmatprep.subr.bf16.mxu0 0
        %2130 = vmatpush1.bf16.msra.mxu0 0
        %2131 = vmatprep.subr.bf16.mxu0 0
        %2132 = vmatpush1.bf16.msra.mxu0 0
        %2133 = vmatprep.subr.bf16.mxu0 0
        %2134 = vmatpush1.bf16.msra.mxu0 0
        %2135 = vmatprep.subr.bf16.mxu0 0
        %2136 = vmatpush1.bf16.msra.mxu0 0
        %2137 = vmatprep.mubr.bf16.mxu0 0
        %2138 = vmatmul.mubr.bf16.gmra.mrb[0].mxu0 %v2103
        %v2139 = vpop.f32.mrb[0].mxu0
        %v2140 = vadd.f32 0.0, %v2139
        %v2141 = vpop.f32.mrb[0].mxu0
        %v2142 = vpop.f32.mrb[0].mxu0
        %v2143 = vadd.f32 0.0, %v2142
        %v2144 = vpop.f32.mrb[0].mxu0
        %2145 = vdwg.mxu0
        %2150 = vrot.lane.b32.xlu0 %v1608, 32
        %v2151 = vpop.permute.xlu0 %2150
        %2152 = vrot.lane.b32.xlu0 %v1611, 32
        %v2153 = vpop.permute.xlu0 %2152
        %2154 = vrot.lane.b32.xlu0 %v1656, 32
        %v2155 = vpop.permute.xlu0 %2154
        %2156 = vrot.lane.b32.xlu0 %v1659, 32
        %v2157 = vpop.permute.xlu0 %2156
        %2166 = vrot.lane.b32.xlu0 %v1851, 64
        %v2167 = vpop.permute.xlu0 %2166
        %2168 = vrot.lane.b32.xlu0 %v1854, 64
        %v2169 = vpop.permute.xlu0 %2168
        %2170 = vrot.lane.b32.xlu0 %v1898, 64
        %v2171 = vpop.permute.xlu0 %2170
        %2172 = vrot.lane.b32.xlu0 %v1901, 64
        %v2173 = vpop.permute.xlu0 %2172
        %2182 = vrot.lane.b32.xlu0 %v2093, 96
        %v2183 = vpop.permute.xlu0 %2182
        %2184 = vrot.lane.b32.xlu0 %v2096, 96
        %v2185 = vpop.permute.xlu0 %2184
        %2186 = vrot.lane.b32.xlu0 %v2140, 96
        %v2187 = vpop.permute.xlu0 %2186
        %2188 = vrot.lane.b32.xlu0 %v2143, 96
        %v2189 = vpop.permute.xlu0 %2188
        %v2194 = vsel %vm1184, %v1364, %v2151
        %v2195 = vsel %vm1184, %v1367, %v2153
        %v2196 = vsel %vm1184, %v1408, %v2155
        %v2197 = vsel %vm1184, %v1411, %v2157
        %vm2198 = vcmask 523264
        %v2199 = vsel %vm2198, %v2194, %v2167
        %v2200 = vsel %vm2198, %v2195, %v2169
        %v2201 = vsel %vm2198, %v2196, %v2171
        %v2202 = vsel %vm2198, %v2197, %v2173
        %vm2203 = vcmask 785408
        %v2204 = vsel %vm2203, %v2199, %v2183
        %v2205 = vsel %vm2203, %v2200, %v2185
        %v2206 = vsel %vm2203, %v2201, %v2187
        %v2207 = vsel %vm2203, %v2202, %v2189
        %v2208 = vpack.c.bf16 %v2205, %v2204
        %v2209 = vpack.c.bf16 %v2207, %v2206
        %v2211 = vlaneseq
        %v2212 = vshrl.u32 %v2211, 7
        %v2213 = vsub.s32 0, %v2212
        %v2214 = vrot.slane %v764, %v2213
        %v2232 = vunpack.c.l.b16 %v748
        %v2233 = vunpack.c.l.b16 %v749
        %v2234 = vunpack.c.l.b16 %v750
        %v2235 = vunpack.c.l.b16 %v751
        %v2236 = vunpack.c.l.b16 %v752
        %v2237 = vunpack.c.l.b16 %v753
        %v2238 = vunpack.c.l.b16 %v754
        %v2239 = vunpack.c.l.b16 %v755
        %v2240 = vunpack.c.l.b16 %v756
        %v2241 = vunpack.c.l.b16 %v757
        %v2242 = vunpack.c.l.b16 %v758
        %v2243 = vunpack.c.l.b16 %v759
        %v2244 = vunpack.c.l.b16 %v760
        %v2245 = vunpack.c.l.b16 %v761
        %v2246 = vunpack.c.l.b16 %v762
        %v2247 = vunpack.c.l.b16 %v763
        %v2248 = vpack.c.b16 %v2233, %v2232
        %v2249 = vpack.c.b16 %v2235, %v2234
        %v2250 = vpack.c.b16 %v2237, %v2236
        %v2251 = vpack.c.b16 %v2239, %v2238
        %v2252 = vpack.c.b16 %v2241, %v2240
        %v2253 = vpack.c.b16 %v2243, %v2242
        %v2254 = vpack.c.b16 %v2245, %v2244
        %v2255 = vpack.c.b16 %v2247, %v2246
        %2264 = vmatprep.subr.bf16.mxu0 0
        %2265 = vmatpush1.bf16.msra.mxu0 %v2248
        %2266 = vmatprep.subr.bf16.mxu0 0
        %2267 = vmatpush1.bf16.msra.mxu0 %v2249
        %2268 = vmatprep.subr.bf16.mxu0 0
        %2269 = vmatpush1.bf16.msra.mxu0 %v2250
        %2270 = vmatprep.subr.bf16.mxu0 0
        %2271 = vmatpush1.bf16.msra.mxu0 %v2251
        %2272 = vmatprep.subr.bf16.mxu0 0
        %2273 = vmatpush1.bf16.msra.mxu0 %v2252
        %2274 = vmatprep.subr.bf16.mxu0 0
        %2275 = vmatpush1.bf16.msra.mxu0 %v2253
        %2276 = vmatprep.subr.bf16.mxu0 0
        %2277 = vmatpush1.bf16.msra.mxu0 %v2254
        %2278 = vmatprep.subr.bf16.mxu0 0
        %2279 = vmatpush1.bf16.msra.mxu0 %v2255
        %2280 = vmatprep.subr.bf16.mxu0 0
        %2281 = vmatpush1.bf16.msra.mxu0 0
        %2282 = vmatprep.subr.bf16.mxu0 0
        %2283 = vmatpush1.bf16.msra.mxu0 0
        %2284 = vmatprep.subr.bf16.mxu0 0
        %2285 = vmatpush1.bf16.msra.mxu0 0
        %2286 = vmatprep.subr.bf16.mxu0 0
        %2287 = vmatpush1.bf16.msra.mxu0 0
        %2288 = vmatprep.subr.bf16.mxu0 0
        %2289 = vmatpush1.bf16.msra.mxu0 0
        %2290 = vmatprep.subr.bf16.mxu0 0
        %2291 = vmatpush1.bf16.msra.mxu0 0
        %2292 = vmatprep.subr.bf16.mxu0 0
        %2293 = vmatpush1.bf16.msra.mxu0 0
        %2294 = vmatprep.subr.bf16.mxu0 0
        %2295 = vmatpush1.bf16.msra.mxu0 0
        %2296 = vmatprep.mubr.bf16.mxu0 0
        %2297 = vmatmul.mubr.bf16.gmra.mrb[0].mxu0 %v2208
        %v2298 = vpop.f32.mrb[0].mxu0
        %v2299 = vadd.f32 %v2214, %v2298
        %v2300 = vpop.f32.mrb[0].mxu0
        %v2301 = vpop.f32.mrb[0].mxu0
        %v2302 = vadd.f32 %v2214, %v2301
        %v2303 = vpop.f32.mrb[0].mxu0
        %2304 = vmatprep.mubr.bf16.mxu0 0
        %2305 = vmatmul.mubr.bf16.gmra.mrb[0].mxu0 %v2209
        %v2306 = vpop.f32.mrb[0].mxu0
        %v2307 = vadd.f32 %v2214, %v2306
        %v2308 = vpop.f32.mrb[0].mxu0
        %v2309 = vpop.f32.mrb[0].mxu0
        %v2310 = vadd.f32 %v2214, %v2309
        %v2311 = vpop.f32.mrb[0].mxu0
        %2312 = vdwg.mxu0
        %v2313 = vadd.f32 %v709, %v2299
        %v2314 = vadd.f32 %v710, %v2302
        %v2315 = vadd.f32 %v711, %v2307
        %v2316 = vadd.f32 %v712, %v2310
        %2317 = vadd.xlane.f32.xlu0 %v2313
        %v2318 = vpop.xlane.xlu0 %2317
        %2319 = vadd.xlane.f32.xlu0 %v2314
        %v2320 = vpop.xlane.xlu0 %2319
        %2321 = vadd.xlane.f32.xlu0 %v2315
        %v2322 = vpop.xlane.xlu0 %2321
        %2323 = vadd.xlane.f32.xlu0 %v2316
        %v2324 = vpop.xlane.xlu0 %2323
        %v2325 = vmul.f32 %v2318, %v873
        %v2326 = vmul.f32 %v2320, %v873
        %v2327 = vmul.f32 %v2322, %v873
        %v2328 = vmul.f32 %v2324, %v873
        %v2329 = vsub.f32 %v2313, %v2325
        %v2330 = vsub.f32 %v2314, %v2326
        %v2331 = vsub.f32 %v2315, %v2327
        %v2332 = vsub.f32 %v2316, %v2328
        %v2333 = vmul.f32 %v2329, %v2329
        %v2334 = vmul.f32 %v2330, %v2330
        %v2335 = vmul.f32 %v2331, %v2331
        %v2336 = vmul.f32 %v2332, %v2332
        %2337 = vadd.xlane.f32.xlu0 %v2333
        %v2338 = vpop.xlane.xlu0 %2337
        %2339 = vadd.xlane.f32.xlu0 %v2334
        %v2340 = vpop.xlane.xlu0 %2339
        %2341 = vadd.xlane.f32.xlu0 %v2335
        %v2342 = vpop.xlane.xlu0 %2341
        %2343 = vadd.xlane.f32.xlu0 %v2336
        %v2344 = vpop.xlane.xlu0 %2343
        %v2345 = vmul.f32 %v2338, %v873
        %v2346 = vmul.f32 %v2340, %v873
        %v2347 = vmul.f32 %v2342, %v873
        %v2348 = vmul.f32 %v2344, %v873
        %v2349 = vadd.f32 %v2345, 1e-06
        %v2350 = vadd.f32 %v2346, 1e-06
        %v2351 = vadd.f32 %v2347, 1e-06
        %v2352 = vadd.f32 %v2348, 1e-06
        %v2353 = vrsqrt.pop %v2349
        %v2354 = vrsqrt.pop %v2350
        %v2355 = vrsqrt.pop %v2351
        %v2356 = vrsqrt.pop %v2352
        %v2357 = vmul.f32 %v2329, %v2353
        %v2358 = vmul.f32 %v2330, %v2354
        %v2359 = vmul.f32 %v2331, %v2355
        %v2360 = vmul.f32 %v2332, %v2356
        %v2362 = vlaneseq
        %v2363 = vshrl.u32 %v2362, 7
        %v2364 = vsub.s32 0, %v2363
        %v2365 = vrot.slane %v765, %v2364
        %v2367 = vmul.f32 %v2357, %v2365
        %v2368 = vmul.f32 %v2358, %v2365
        %v2369 = vmul.f32 %v2359, %v2365
        %v2370 = vmul.f32 %v2360, %v2365
        %v2372 = vlaneseq
        %v2373 = vshrl.u32 %v2372, 7
        %v2374 = vsub.s32 0, %v2373
        %v2375 = vrot.slane %v766, %v2374
        %v2377 = vadd.f32 %v2367, %v2375
        %v2378 = vadd.f32 %v2368, %v2375
        %v2379 = vadd.f32 %v2369, %v2375
        %v2380 = vadd.f32 %v2370, %v2375
        %v2381 = vpack.c.bf16 %v2378, %v2377
        %v2382 = vpack.c.bf16 %v2380, %v2379
        %v2384 = vlaneseq
        %v2385 = vshrl.u32 %v2384, 7
        %v2386 = vsub.s32 0, %v2385
        %v2387 = vrot.slane %v799, %v2386
        %v2388 = vlaneseq
        %v2389 = vshrl.u32 %v2388, 7
        %v2390 = vsub.s32 1, %v2389
        %v2391 = vrot.slane %v799, %v2390
        %v2392 = vlaneseq
        %v2393 = vshrl.u32 %v2392, 7
        %v2394 = vsub.s32 2, %v2393
        %v2395 = vrot.slane %v799, %v2394
        %v2396 = vlaneseq
        %v2397 = vshrl.u32 %v2396, 7
        %v2398 = vsub.s32 3, %v2397
        %v2399 = vrot.slane %v799, %v2398
        %v2436 = vunpack.c.l.b16 %v767
        %v2437 = vunpack.c.h.b16 %v767
        %v2438 = vunpack.c.l.b16 %v768
        %v2439 = vunpack.c.h.b16 %v768
        %v2440 = vunpack.c.l.b16 %v769
        %v2441 = vunpack.c.h.b16 %v769
        %v2442 = vunpack.c.l.b16 %v770
        %v2443 = vunpack.c.h.b16 %v770
        %v2444 = vunpack.c.l.b16 %v771
        %v2445 = vunpack.c.h.b16 %v771
        %v2446 = vunpack.c.l.b16 %v772
        %v2447 = vunpack.c.h.b16 %v772
        %v2448 = vunpack.c.l.b16 %v773
        %v2449 = vunpack.c.h.b16 %v773
        %v2450 = vunpack.c.l.b16 %v774
        %v2451 = vunpack.c.h.b16 %v774
        %v2452 = vunpack.c.l.b16 %v775
        %v2453 = vunpack.c.h.b16 %v775
        %v2454 = vunpack.c.l.b16 %v776
        %v2455 = vunpack.c.h.b16 %v776
        %v2456 = vunpack.c.l.b16 %v777
        %v2457 = vunpack.c.h.b16 %v777
        %v2458 = vunpack.c.l.b16 %v778
        %v2459 = vunpack.c.h.b16 %v778
        %v2460 = vunpack.c.l.b16 %v779
        %v2461 = vunpack.c.h.b16 %v779
        %v2462 = vunpack.c.l.b16 %v780
        %v2463 = vunpack.c.h.b16 %v780
        %v2464 = vunpack.c.l.b16 %v781
        %v2465 = vunpack.c.h.b16 %v781
        %v2466 = vunpack.c.l.b16 %v782
        %v2467 = vunpack.c.h.b16 %v782
        %v2468 = vunpack.c.l.b16 %v783
        %v2469 = vunpack.c.h.b16 %v783
        %v2470 = vunpack.c.l.b16 %v784
        %v2471 = vunpack.c.h.b16 %v784
        %v2472 = vunpack.c.l.b16 %v785
        %v2473 = vunpack.c.h.b16 %v785
        %v2474 = vunpack.c.l.b16 %v786
        %v2475 = vunpack.c.h.b16 %v786
        %v2476 = vunpack.c.l.b16 %v787
        %v2477 = vunpack.c.h.b16 %v787
        %v2478 = vunpack.c.l.b16 %v788
        %v2479 = vunpack.c.h.b16 %v788
        %v2480 = vunpack.c.l.b16 %v789
        %v2481 = vunpack.c.h.b16 %v789
        %v2482 = vunpack.c.l.b16 %v790
        %v2483 = vunpack.c.h.b16 %v790
        %v2484 = vunpack.c.l.b16 %v791
        %v2485 = vunpack.c.h.b16 %v791
        %v2486 = vunpack.c.l.b16 %v792
        %v2487 = vunpack.c.h.b16 %v792
        %v2488 = vunpack.c.l.b16 %v793
        %v2489 = vunpack.c.h.b16 %v793
        %v2490 = vunpack.c.l.b16 %v794
        %v2491 = vunpack.c.h.b16 %v794
        %v2492 = vunpack.c.l.b16 %v795
        %v2493 = vunpack.c.h.b16 %v795
        %v2494 = vunpack.c.l.b16 %v796
        %v2495 = vunpack.c.h.b16 %v796
        %v2496 = vunpack.c.l.b16 %v797
        %v2497 = vunpack.c.h.b16 %v797
        %v2498 = vunpack.c.l.b16 %v798
        %v2499 = vunpack.c.h.b16 %v798
        %v2500 = vpack.c.b16 %v2440, %v2436
        %v2501 = vpack.c.b16 %v2441, %v2437
        %v2502 = vpack.c.b16 %v2442, %v2438
        %v2503 = vpack.c.b16 %v2443, %v2439
        %v2504 = vpack.c.b16 %v2448, %v2444
        %v2505 = vpack.c.b16 %v2449, %v2445
        %v2506 = vpack.c.b16 %v2450, %v2446
        %v2507 = vpack.c.b16 %v2451, %v2447
        %v2508 = vpack.c.b16 %v2456, %v2452
        %v2509 = vpack.c.b16 %v2457, %v2453
        %v2510 = vpack.c.b16 %v2458, %v2454
        %v2511 = vpack.c.b16 %v2459, %v2455
        %v2512 = vpack.c.b16 %v2464, %v2460
        %v2513 = vpack.c.b16 %v2465, %v2461
        %v2514 = vpack.c.b16 %v2466, %v2462
        %v2515 = vpack.c.b16 %v2467, %v2463
        %v2516 = vpack.c.b16 %v2472, %v2468
        %v2517 = vpack.c.b16 %v2473, %v2469
        %v2518 = vpack.c.b16 %v2474, %v2470
        %v2519 = vpack.c.b16 %v2475, %v2471
        %v2520 = vpack.c.b16 %v2480, %v2476
        %v2521 = vpack.c.b16 %v2481, %v2477
        %v2522 = vpack.c.b16 %v2482, %v2478
        %v2523 = vpack.c.b16 %v2483, %v2479
        %v2524 = vpack.c.b16 %v2488, %v2484
        %v2525 = vpack.c.b16 %v2489, %v2485
        %v2526 = vpack.c.b16 %v2490, %v2486
        %v2527 = vpack.c.b16 %v2491, %v2487
        %v2528 = vpack.c.b16 %v2496, %v2492
        %v2529 = vpack.c.b16 %v2497, %v2493
        %v2530 = vpack.c.b16 %v2498, %v2494
        %v2531 = vpack.c.b16 %v2499, %v2495
        %2564 = vmatprep.subr.bf16.mxu0 %v2501
        %2565 = vmatpush1.bf16.msra.mxu0 %v2500
        %2566 = vmatprep.subr.bf16.mxu0 %v2505
        %2567 = vmatpush1.bf16.msra.mxu0 %v2504
        %2568 = vmatprep.subr.bf16.mxu0 %v2509
        %2569 = vmatpush1.bf16.msra.mxu0 %v2508
        %2570 = vmatprep.subr.bf16.mxu0 %v2513
        %2571 = vmatpush1.bf16.msra.mxu0 %v2512
        %2572 = vmatprep.subr.bf16.mxu0 %v2517
        %2573 = vmatpush1.bf16.msra.mxu0 %v2516
        %2574 = vmatprep.subr.bf16.mxu0 %v2521
        %2575 = vmatpush1.bf16.msra.mxu0 %v2520
        %2576 = vmatprep.subr.bf16.mxu0 %v2525
        %2577 = vmatpush1.bf16.msra.mxu0 %v2524
        %2578 = vmatprep.subr.bf16.mxu0 %v2529
        %2579 = vmatpush1.bf16.msra.mxu0 %v2528
        %2580 = vmatprep.subr.bf16.mxu0 0
        %2581 = vmatpush1.bf16.msra.mxu0 0
        %2582 = vmatprep.subr.bf16.mxu0 0
        %2583 = vmatpush1.bf16.msra.mxu0 0
        %2584 = vmatprep.subr.bf16.mxu0 0
        %2585 = vmatpush1.bf16.msra.mxu0 0
        %2586 = vmatprep.subr.bf16.mxu0 0
        %2587 = vmatpush1.bf16.msra.mxu0 0
        %2588 = vmatprep.subr.bf16.mxu0 0
        %2589 = vmatpush1.bf16.msra.mxu0 0
        %2590 = vmatprep.subr.bf16.mxu0 0
        %2591 = vmatpush1.bf16.msra.mxu0 0
        %2592 = vmatprep.subr.bf16.mxu0 0
        %2593 = vmatpush1.bf16.msra.mxu0 0
        %2594 = vmatprep.subr.bf16.mxu0 0
        %2595 = vmatpush1.bf16.msra.mxu0 0
        %2596 = vmatprep.mubr.bf16.mxu0 0
        %2597 = vmatmul.mubr.bf16.gmra.mrb[0].mxu0 %v2381
        %v2598 = vpop.f32.mrb[0].mxu0
        %v2599 = vadd.f32 %v2387, %v2598
        %v2600 = vpop.f32.mrb[0].mxu0
        %v2601 = vadd.f32 %v2391, %v2600
        %v2602 = vpop.f32.mrb[0].mxu0
        %v2603 = vadd.f32 %v2387, %v2602
        %v2604 = vpop.f32.mrb[0].mxu0
        %v2605 = vadd.f32 %v2391, %v2604
        %2606 = vmatprep.mubr.bf16.mxu0 0
        %2607 = vmatmul.mubr.bf16.gmra.mrb[0].mxu0 %v2382
        %v2608 = vpop.f32.mrb[0].mxu0
        %v2609 = vadd.f32 %v2387, %v2608
        %v2610 = vpop.f32.mrb[0].mxu0
        %v2611 = vadd.f32 %v2391, %v2610
        %v2612 = vpop.f32.mrb[0].mxu0
        %v2613 = vadd.f32 %v2387, %v2612
        %v2614 = vpop.f32.mrb[0].mxu0
        %v2615 = vadd.f32 %v2391, %v2614
        %2616 = vdwg.mxu0
        %2617 = vmatprep.subr.bf16.mxu0 %v2503
        %2618 = vmatpush1.bf16.msra.mxu0 %v2502
        %2619 = vmatprep.subr.bf16.mxu0 %v2507
        %2620 = vmatpush1.bf16.msra.mxu0 %v2506
        %2621 = vmatprep.subr.bf16.mxu0 %v2511
        %2622 = vmatpush1.bf16.msra.mxu0 %v2510
        %2623 = vmatprep.subr.bf16.mxu0 %v2515
        %2624 = vmatpush1.bf16.msra.mxu0 %v2514
        %2625 = vmatprep.subr.bf16.mxu0 %v2519
        %2626 = vmatpush1.bf16.msra.mxu0 %v2518
        %2627 = vmatprep.subr.bf16.mxu0 %v2523
        %2628 = vmatpush1.bf16.msra.mxu0 %v2522
        %2629 = vmatprep.subr.bf16.mxu0 %v2527
        %2630 = vmatpush1.bf16.msra.mxu0 %v2526
        %2631 = vmatprep.subr.bf16.mxu0 %v2531
        %2632 = vmatpush1.bf16.msra.mxu0 %v2530
        %2633 = vmatprep.subr.bf16.mxu0 0
        %2634 = vmatpush1.bf16.msra.mxu0 0
        %2635 = vmatprep.subr.bf16.mxu0 0
        %2636 = vmatpush1.bf16.msra.mxu0 0
        %2637 = vmatprep.subr.bf16.mxu0 0
        %2638 = vmatpush1.bf16.msra.mxu0 0
        %2639 = vmatprep.subr.bf16.mxu0 0
        %2640 = vmatpush1.bf16.msra.mxu0 0
        %2641 = vmatprep.subr.bf16.mxu0 0
        %2642 = vmatpush1.bf16.msra.mxu0 0
        %2643 = vmatprep.subr.bf16.mxu0 0
        %2644 = vmatpush1.bf16.msra.mxu0 0
        %2645 = vmatprep.subr.bf16.mxu0 0
        %2646 = vmatpush1.bf16.msra.mxu0 0
        %2647 = vmatprep.subr.bf16.mxu0 0
        %2648 = vmatpush1.bf16.msra.mxu0 0
        %2649 = vmatprep.mubr.bf16.mxu0 0
        %2650 = vmatmul.mubr.bf16.gmra.mrb[0].mxu0 %v2381
        %v2651 = vpop.f32.mrb[0].mxu0
        %v2652 = vadd.f32 %v2395, %v2651
        %v2653 = vpop.f32.mrb[0].mxu0
        %v2654 = vadd.f32 %v2399, %v2653
        %v2655 = vpop.f32.mrb[0].mxu0
        %v2656 = vadd.f32 %v2395, %v2655
        %v2657 = vpop.f32.mrb[0].mxu0
        %v2658 = vadd.f32 %v2399, %v2657
        %2659 = vmatprep.mubr.bf16.mxu0 0
        %2660 = vmatmul.mubr.bf16.gmra.mrb[0].mxu0 %v2382
        %v2661 = vpop.f32.mrb[0].mxu0
        %v2662 = vadd.f32 %v2395, %v2661
        %v2663 = vpop.f32.mrb[0].mxu0
        %v2664 = vadd.f32 %v2399, %v2663
        %v2665 = vpop.f32.mrb[0].mxu0
        %v2666 = vadd.f32 %v2395, %v2665
        %v2667 = vpop.f32.mrb[0].mxu0
        %v2668 = vadd.f32 %v2399, %v2667
        %2669 = vdwg.mxu0
        %v2670 = vmul.f32 %v2599, 0.5
        %v2671 = vmul.f32 %v2601, 0.5
        %v2672 = vmul.f32 %v2652, 0.5
        %v2673 = vmul.f32 %v2654, 0.5
        %v2674 = vmul.f32 %v2603, 0.5
        %v2675 = vmul.f32 %v2605, 0.5
        %v2676 = vmul.f32 %v2656, 0.5
        %v2677 = vmul.f32 %v2658, 0.5
        %v2678 = vmul.f32 %v2609, 0.5
        %v2679 = vmul.f32 %v2611, 0.5
        %v2680 = vmul.f32 %v2662, 0.5
        %v2681 = vmul.f32 %v2664, 0.5
        %v2682 = vmul.f32 %v2613, 0.5
        %v2683 = vmul.f32 %v2615, 0.5
        %v2684 = vmul.f32 %v2666, 0.5
        %v2685 = vmul.f32 %v2668, 0.5
        %v2686 = vmul.f32 %v2599, 0.70710677
        %v2687 = vmul.f32 %v2601, 0.70710677
        %v2688 = vmul.f32 %v2652, 0.70710677
        %v2689 = vmul.f32 %v2654, 0.70710677
        %v2690 = vmul.f32 %v2603, 0.70710677
        %v2691 = vmul.f32 %v2605, 0.70710677
        %v2692 = vmul.f32 %v2656, 0.70710677
        %v2693 = vmul.f32 %v2658, 0.70710677
        %v2694 = vmul.f32 %v2609, 0.70710677
        %v2695 = vmul.f32 %v2611, 0.70710677
        %v2696 = vmul.f32 %v2662, 0.70710677
        %v2697 = vmul.f32 %v2664, 0.70710677
        %v2698 = vmul.f32 %v2613, 0.70710677
        %v2699 = vmul.f32 %v2615, 0.70710677
        %v2700 = vmul.f32 %v2666, 0.70710677
        %v2701 = vmul.f32 %v2668, 0.70710677
        %v2702 = verf.f32.pop %v2686
        %v2703 = verf.f32.pop %v2687
        %v2704 = verf.f32.pop %v2688
        %v2705 = verf.f32.pop %v2689
        %v2706 = verf.f32.pop %v2690
        %v2707 = verf.f32.pop %v2691
        %v2708 = verf.f32.pop %v2692
        %v2709 = verf.f32.pop %v2693
        %v2710 = verf.f32.pop %v2694
        %v2711 = verf.f32.pop %v2695
        %v2712 = verf.f32.pop %v2696
        %v2713 = verf.f32.pop %v2697
        %v2714 = verf.f32.pop %v2698
        %v2715 = verf.f32.pop %v2699
        %v2716 = verf.f32.pop %v2700
        %v2717 = verf.f32.pop %v2701
        %v2718 = vadd.f32 %v2702, 1.0
        %v2719 = vadd.f32 %v2703, 1.0
        %v2720 = vadd.f32 %v2704, 1.0
        %v2721 = vadd.f32 %v2705, 1.0
        %v2722 = vadd.f32 %v2706, 1.0
        %v2723 = vadd.f32 %v2707, 1.0
        %v2724 = vadd.f32 %v2708, 1.0
        %v2725 = vadd.f32 %v2709, 1.0
        %v2726 = vadd.f32 %v2710, 1.0
        %v2727 = vadd.f32 %v2711, 1.0
        %v2728 = vadd.f32 %v2712, 1.0
        %v2729 = vadd.f32 %v2713, 1.0
        %v2730 = vadd.f32 %v2714, 1.0
        %v2731 = vadd.f32 %v2715, 1.0
        %v2732 = vadd.f32 %v2716, 1.0
        %v2733 = vadd.f32 %v2717, 1.0
        %v2734 = vmul.f32 %v2670, %v2718
        %v2735 = vmul.f32 %v2671, %v2719
        %v2736 = vmul.f32 %v2672, %v2720
        %v2737 = vmul.f32 %v2673, %v2721
        %v2738 = vmul.f32 %v2674, %v2722
        %v2739 = vmul.f32 %v2675, %v2723
        %v2740 = vmul.f32 %v2676, %v2724
        %v2741 = vmul.f32 %v2677, %v2725
        %v2742 = vmul.f32 %v2678, %v2726
        %v2743 = vmul.f32 %v2679, %v2727
        %v2744 = vmul.f32 %v2680, %v2728
        %v2745 = vmul.f32 %v2681, %v2729
        %v2746 = vmul.f32 %v2682, %v2730
        %v2747 = vmul.f32 %v2683, %v2731
        %v2748 = vmul.f32 %v2684, %v2732
        %v2749 = vmul.f32 %v2685, %v2733
        %v2750 = vpack.c.bf16 %v2738, %v2734
        %v2751 = vpack.c.bf16 %v2739, %v2735
        %v2752 = vpack.c.bf16 %v2740, %v2736
        %v2753 = vpack.c.bf16 %v2741, %v2737
        %v2754 = vpack.c.bf16 %v2746, %v2742
        %v2755 = vpack.c.bf16 %v2747, %v2743
        %v2756 = vpack.c.bf16 %v2748, %v2744
        %v2757 = vpack.c.bf16 %v2749, %v2745
        %v2759 = vlaneseq
        %v2760 = vshrl.u32 %v2759, 7
        %v2761 = vsub.s32 0, %v2760
        %v2762 = vrot.slane %v864, %v2761
        %v2828 = vunpack.c.l.b16 %v800
        %v2829 = vunpack.c.l.b16 %v801
        %v2830 = vunpack.c.l.b16 %v802
        %v2831 = vunpack.c.l.b16 %v803
        %v2832 = vunpack.c.l.b16 %v804
        %v2833 = vunpack.c.l.b16 %v805
        %v2834 = vunpack.c.l.b16 %v806
        %v2835 = vunpack.c.l.b16 %v807
        %v2836 = vunpack.c.l.b16 %v808
        %v2837 = vunpack.c.l.b16 %v809
        %v2838 = vunpack.c.l.b16 %v810
        %v2839 = vunpack.c.l.b16 %v811
        %v2840 = vunpack.c.l.b16 %v812
        %v2841 = vunpack.c.l.b16 %v813
        %v2842 = vunpack.c.l.b16 %v814
        %v2843 = vunpack.c.l.b16 %v815
        %v2844 = vunpack.c.l.b16 %v816
        %v2845 = vunpack.c.l.b16 %v817
        %v2846 = vunpack.c.l.b16 %v818
        %v2847 = vunpack.c.l.b16 %v819
        %v2848 = vunpack.c.l.b16 %v820
        %v2849 = vunpack.c.l.b16 %v821
        %v2850 = vunpack.c.l.b16 %v822
        %v2851 = vunpack.c.l.b16 %v823
        %v2852 = vunpack.c.l.b16 %v824
        %v2853 = vunpack.c.l.b16 %v825
        %v2854 = vunpack.c.l.b16 %v826
        %v2855 = vunpack.c.l.b16 %v827
        %v2856 = vunpack.c.l.b16 %v828
        %v2857 = vunpack.c.l.b16 %v829
        %v2858 = vunpack.c.l.b16 %v830
        %v2859 = vunpack.c.l.b16 %v831
        %v2860 = vunpack.c.l.b16 %v832
        %v2861 = vunpack.c.l.b16 %v833
        %v2862 = vunpack.c.l.b16 %v834
        %v2863 = vunpack.c.l.b16 %v835
        %v2864 = vunpack.c.l.b16 %v836
        %v2865 = vunpack.c.l.b16 %v837
        %v2866 = vunpack.c.l.b16 %v838
        %v2867 = vunpack.c.l.b16 %v839
        %v2868 = vunpack.c.l.b16 %v840
        %v2869 = vunpack.c.l.b16 %v841
        %v2870 = vunpack.c.l.b16 %v842
        %v2871 = vunpack.c.l.b16 %v843
        %v2872 = vunpack.c.l.b16 %v844
        %v2873 = vunpack.c.l.b16 %v845
        %v2874 = vunpack.c.l.b16 %v846
        %v2875 = vunpack.c.l.b16 %v847
        %v2876 = vunpack.c.l.b16 %v848
        %v2877 = vunpack.c.l.b16 %v849
        %v2878 = vunpack.c.l.b16 %v850
        %v2879 = vunpack.c.l.b16 %v851
        %v2880 = vunpack.c.l.b16 %v852
        %v2881 = vunpack.c.l.b16 %v853
        %v2882 = vunpack.c.l.b16 %v854
        %v2883 = vunpack.c.l.b16 %v855
        %v2884 = vunpack.c.l.b16 %v856
        %v2885 = vunpack.c.l.b16 %v857
        %v2886 = vunpack.c.l.b16 %v858
        %v2887 = vunpack.c.l.b16 %v859
        %v2888 = vunpack.c.l.b16 %v860
        %v2889 = vunpack.c.l.b16 %v861
        %v2890 = vunpack.c.l.b16 %v862
        %v2891 = vunpack.c.l.b16 %v863
        %v2892 = vpack.c.b16 %v2829, %v2828
        %v2893 = vpack.c.b16 %v2831, %v2830
        %v2894 = vpack.c.b16 %v2833, %v2832
        %v2895 = vpack.c.b16 %v2835, %v2834
        %v2896 = vpack.c.b16 %v2837, %v2836
        %v2897 = vpack.c.b16 %v2839, %v2838
        %v2898 = vpack.c.b16 %v2841, %v2840
        %v2899 = vpack.c.b16 %v2843, %v2842
        %v2900 = vpack.c.b16 %v2845, %v2844
        %v2901 = vpack.c.b16 %v2847, %v2846
        %v2902 = vpack.c.b16 %v2849, %v2848
        %v2903 = vpack.c.b16 %v2851, %v2850
        %v2904 = vpack.c.b16 %v2853, %v2852
        %v2905 = vpack.c.b16 %v2855, %v2854
        %v2906 = vpack.c.b16 %v2857, %v2856
        %v2907 = vpack.c.b16 %v2859, %v2858
        %v2908 = vpack.c.b16 %v2861, %v2860
        %v2909 = vpack.c.b16 %v2863, %v2862
        %v2910 = vpack.c.b16 %v2865, %v2864
        %v2911 = vpack.c.b16 %v2867, %v2866
        %v2912 = vpack.c.b16 %v2869, %v2868
        %v2913 = vpack.c.b16 %v2871, %v2870
        %v2914 = vpack.c.b16 %v2873, %v2872
        %v2915 = vpack.c.b16 %v2875, %v2874
        %v2916 = vpack.c.b16 %v2877, %v2876
        %v2917 = vpack.c.b16 %v2879, %v2878
        %v2918 = vpack.c.b16 %v2881, %v2880
        %v2919 = vpack.c.b16 %v2883, %v2882
        %v2920 = vpack.c.b16 %v2885, %v2884
        %v2921 = vpack.c.b16 %v2887, %v2886
        %v2922 = vpack.c.b16 %v2889, %v2888
        %v2923 = vpack.c.b16 %v2891, %v2890
        %2956 = vmatprep.subr.bf16.mxu0 0
        %2957 = vmatpush1.bf16.msra.mxu0 %v2892
        %2958 = vmatprep.subr.bf16.mxu0 0
        %2959 = vmatpush1.bf16.msra.mxu0 %v2893
        %2960 = vmatprep.subr.bf16.mxu0 0
        %2961 = vmatpush1.bf16.msra.mxu0 %v2894
        %2962 = vmatprep.subr.bf16.mxu0 0
        %2963 = vmatpush1.bf16.msra.mxu0 %v2895
        %2964 = vmatprep.subr.bf16.mxu0 0
        %2965 = vmatpush1.bf16.msra.mxu0 %v2896
        %2966 = vmatprep.subr.bf16.mxu0 0
        %2967 = vmatpush1.bf16.msra.mxu0 %v2897
        %2968 = vmatprep.subr.bf16.mxu0 0
        %2969 = vmatpush1.bf16.msra.mxu0 %v2898
        %2970 = vmatprep.subr.bf16.mxu0 0
        %2971 = vmatpush1.bf16.msra.mxu0 %v2899
        %2972 = vmatprep.subr.bf16.mxu0 0
        %2973 = vmatpush1.bf16.msra.mxu0 %v2900
        %2974 = vmatprep.subr.bf16.mxu0 0
        %2975 = vmatpush1.bf16.msra.mxu0 %v2901
        %2976 = vmatprep.subr.bf16.mxu0 0
        %2977 = vmatpush1.bf16.msra.mxu0 %v2902
        %2978 = vmatprep.subr.bf16.mxu0 0
        %2979 = vmatpush1.bf16.msra.mxu0 %v2903
        %2980 = vmatprep.subr.bf16.mxu0 0
        %2981 = vmatpush1.bf16.msra.mxu0 %v2904
        %2982 = vmatprep.subr.bf16.mxu0 0
        %2983 = vmatpush1.bf16.msra.mxu0 %v2905
        %2984 = vmatprep.subr.bf16.mxu0 0
        %2985 = vmatpush1.bf16.msra.mxu0 %v2906
        %2986 = vmatprep.subr.bf16.mxu0 0
        %2987 = vmatpush1.bf16.msra.mxu0 %v2907
        %2988 = vmatprep.mubr.bf16.mxu0 %v2751
        %2989 = vmatmul.mubr.bf16.gmra.mrb[0].mxu0 %v2750
        %v2990 = vpop.f32.mrb[0].mxu0
        %v2991 = vadd.f32 %v2762, %v2990
        %v2992 = vpop.f32.mrb[0].mxu0
        %v2993 = vpop.f32.mrb[0].mxu0
        %v2994 = vadd.f32 %v2762, %v2993
        %v2995 = vpop.f32.mrb[0].mxu0
        %2996 = vmatprep.mubr.bf16.mxu0 %v2755
        %2997 = vmatmul.mubr.bf16.gmra.mrb[0].mxu0 %v2754
        %v2998 = vpop.f32.mrb[0].mxu0
        %v2999 = vadd.f32 %v2762, %v2998
        %v3000 = vpop.f32.mrb[0].mxu0
        %v3001 = vpop.f32.mrb[0].mxu0
        %v3002 = vadd.f32 %v2762, %v3001
        %v3003 = vpop.f32.mrb[0].mxu0
        %3004 = vdwg.mxu0
        %3005 = vmatprep.subr.bf16.mxu0 0
        %3006 = vmatpush1.bf16.msra.mxu0 %v2908
        %3007 = vmatprep.subr.bf16.mxu0 0
        %3008 = vmatpush1.bf16.msra.mxu0 %v2909
        %3009 = vmatprep.subr.bf16.mxu0 0
        %3010 = vmatpush1.bf16.msra.mxu0 %v2910
        %3011 = vmatprep.subr.bf16.mxu0 0
        %3012 = vmatpush1.bf16.msra.mxu0 %v2911
        %3013 = vmatprep.subr.bf16.mxu0 0
        %3014 = vmatpush1.bf16.msra.mxu0 %v2912
        %3015 = vmatprep.subr.bf16.mxu0 0
        %3016 = vmatpush1.bf16.msra.mxu0 %v2913
        %3017 = vmatprep.subr.bf16.mxu0 0
        %3018 = vmatpush1.bf16.msra.mxu0 %v2914
        %3019 = vmatprep.subr.bf16.mxu0 0
        %3020 = vmatpush1.bf16.msra.mxu0 %v2915
        %3021 = vmatprep.subr.bf16.mxu0 0
        %3022 = vmatpush1.bf16.msra.mxu0 %v2916
        %3023 = vmatprep.subr.bf16.mxu0 0
        %3024 = vmatpush1.bf16.msra.mxu0 %v2917
        %3025 = vmatprep.subr.bf16.mxu0 0
        %3026 = vmatpush1.bf16.msra.mxu0 %v2918
        %3027 = vmatprep.subr.bf16.mxu0 0
        %3028 = vmatpush1.bf16.msra.mxu0 %v2919
        %3029 = vmatprep.subr.bf16.mxu0 0
        %3030 = vmatpush1.bf16.msra.mxu0 %v2920
        %3031 = vmatprep.subr.bf16.mxu0 0
        %3032 = vmatpush1.bf16.msra.mxu0 %v2921
        %3033 = vmatprep.subr.bf16.mxu0 0
        %3034 = vmatpush1.bf16.msra.mxu0 %v2922
        %3035 = vmatprep.subr.bf16.mxu0 0
        %3036 = vmatpush1.bf16.msra.mxu0 %v2923
        %3037 = vmatprep.mubr.bf16.mxu0 %v2753
        %3038 = vmatmul.mubr.bf16.gmra.mrb[0].mxu0 %v2752
        %v3039 = vpop.f32.mrb[0].mxu0
        %v3040 = vadd.f32 %v2991, %v3039
        %v3041 = vpop.f32.mrb[0].mxu0
        %v3042 = vpop.f32.mrb[0].mxu0
        %v3043 = vadd.f32 %v2994, %v3042
        %v3044 = vpop.f32.mrb[0].mxu0
        %3045 = vmatprep.mubr.bf16.mxu0 %v2757
        %3046 = vmatmul.mubr.bf16.gmra.mrb[0].mxu0 %v2756
        %v3047 = vpop.f32.mrb[0].mxu0
        %v3048 = vadd.f32 %v2999, %v3047
        %v3049 = vpop.f32.mrb[0].mxu0
        %v3050 = vpop.f32.mrb[0].mxu0
        %v3051 = vadd.f32 %v3002, %v3050
        %v3052 = vpop.f32.mrb[0].mxu0
        %3053 = vdwg.mxu0
        %v3054 = vadd.f32 %v2313, %v3040
        %v3055 = vadd.f32 %v2314, %v3043
        %v3056 = vadd.f32 %v2315, %v3048
        %v3057 = vadd.f32 %v2316, %v3051
        %3058 = vst [vmem:[#allocation2] sm:$0xff] %v3054
        %3059 = vst [vmem:[#allocation2 + $0x8] sm:$0xff] %v3055
        %3060 = vst [vmem:[#allocation2 + $0x10] sm:$0xff] %v3056
        %3061 = vst [vmem:[#allocation2 + $0x18] sm:$0xff] %v3057
        %p3062 = scmp.eq.s32.totalorder %s32, 1
        // Predicated region
        $region115: #{_lambda_.3} parent=75 // pred_check
          %p3063 = pneg %p3062
        $region116: #{_lambda_.3} parent=75 // pred_check_branch
          %3065 = sbr.rel (%p3063) target = $region118
        $region117: #{_lambda_.3} parent=75 // pred_region
          %v3066 = vld [vmem:[%s13] sm:$0x1]
          %v3067 = vld [vmem:[%s14] sm:$0x1]
          %3068 = vadd.xlane.f32.xlu0 %v3054
          %v3069 = vpop.xlane.xlu0 %3068
          %3070 = vadd.xlane.f32.xlu0 %v3055
          %v3071 = vpop.xlane.xlu0 %3070
          %3072 = vadd.xlane.f32.xlu0 %v3056
          %v3073 = vpop.xlane.xlu0 %3072
          %3074 = vadd.xlane.f32.xlu0 %v3057
          %v3075 = vpop.xlane.xlu0 %3074
          %v3076 = vmul.f32 %v3069, %v873
          %v3077 = vmul.f32 %v3071, %v873
          %v3078 = vmul.f32 %v3073, %v873
          %v3079 = vmul.f32 %v3075, %v873
          %v3080 = vsub.f32 %v3054, %v3076
          %v3081 = vsub.f32 %v3055, %v3077
          %v3082 = vsub.f32 %v3056, %v3078
          %v3083 = vsub.f32 %v3057, %v3079
          %v3084 = vmul.f32 %v3080, %v3080
          %v3085 = vmul.f32 %v3081, %v3081
          %v3086 = vmul.f32 %v3082, %v3082
          %v3087 = vmul.f32 %v3083, %v3083
          %3088 = vadd.xlane.f32.xlu0 %v3084
          %v3089 = vpop.xlane.xlu0 %3088
          %3090 = vadd.xlane.f32.xlu0 %v3085
          %v3091 = vpop.xlane.xlu0 %3090
          %3092 = vadd.xlane.f32.xlu0 %v3086
          %v3093 = vpop.xlane.xlu0 %3092
          %3094 = vadd.xlane.f32.xlu0 %v3087
          %v3095 = vpop.xlane.xlu0 %3094
          %v3096 = vmul.f32 %v3089, %v873
          %v3097 = vmul.f32 %v3091, %v873
          %v3098 = vmul.f32 %v3093, %v873
          %v3099 = vmul.f32 %v3095, %v873
          %v3100 = vadd.f32 %v3096, 1e-06
          %v3101 = vadd.f32 %v3097, 1e-06
          %v3102 = vadd.f32 %v3098, 1e-06
          %v3103 = vadd.f32 %v3099, 1e-06
          %v3104 = vrsqrt.pop %v3100
          %v3105 = vrsqrt.pop %v3101
          %v3106 = vrsqrt.pop %v3102
          %v3107 = vrsqrt.pop %v3103
          %v3108 = vmul.f32 %v3080, %v3104
          %v3109 = vmul.f32 %v3081, %v3105
          %v3110 = vmul.f32 %v3082, %v3106
          %v3111 = vmul.f32 %v3083, %v3107
          %v3113 = vlaneseq
          %v3114 = vshrl.u32 %v3113, 7
          %v3115 = vsub.s32 0, %v3114
          %v3116 = vrot.slane %v3066, %v3115
          %v3118 = vmul.f32 %v3108, %v3116
          %v3119 = vmul.f32 %v3109, %v3116
          %v3120 = vmul.f32 %v3110, %v3116
          %v3121 = vmul.f32 %v3111, %v3116
          %v3123 = vlaneseq
          %v3124 = vshrl.u32 %v3123, 7
          %v3125 = vsub.s32 0, %v3124
          %v3126 = vrot.slane %v3067, %v3125
          %v3128 = vadd.f32 %v3118, %v3126
          %v3129 = vadd.f32 %v3119, %v3126
          %v3130 = vadd.f32 %v3120, %v3126
          %v3131 = vadd.f32 %v3121, %v3126
          %3132 = vst [vmem:[#allocation4] sm:$0xff] %v3128
          %3133 = vst [vmem:[#allocation4 + $0x8] sm:$0xff] %v3129
          %3134 = vst [vmem:[#allocation4 + $0x10] sm:$0xff] %v3130
          %3135 = vst [vmem:[#allocation4 + $0x18] sm:$0xff] %v3131
        $region118: #{_lambda_.3} parent=75 // pred_fallthru
          _
        // Predicated region
        $region119: #{_lambda_.3} parent=75 // pred_check
          %p3136 = pneg %p411
        $region120: #{_lambda_.3} parent=75 // pred_check_branch
          %3138 = sbr.rel (%p3136) target = $region122
        $region121: #{_lambda_.3} parent=75 // pred_region
          %s3139 = smul.u32 4, %s31
          %s3141 = ssub.s32 512, 512
          %3142 = vsyncadd [#allocation5], %s3141
          %s3143 = smul.addr %s3139, 128
          %s3144 = scalar_lea.hbm %s15, %s3143
          %s3145 = sshll.u32 [#allocation4], 4
          %s3146 = int_to_ptr.vmem [resolvable:$true] %s3145
          %3151 = dma.vmem_to_hbm [thread:$0]  %s3146, 512, %s3144, [#allocation5], 128, 128, 8
        $region122: #{_lambda_.3} parent=75 // pred_fallthru
          _
        // Predicated region
        $region123: #{_lambda_.3} parent=75 // pred_check
          %p3152 = pneg %p411
        $region124: #{_lambda_.3} parent=75 // pred_check_branch
          %3154 = sbr.rel (%p3152) target = $region126
        $region125: #{_lambda_.3} parent=75 // pred_region
          %3155 = dma.done [#allocation5], 512
        $region126: #{_lambda_.3} parent=75 // pred_fallthru
          _
      $region76: #{_lambda_.3} parent=5 // pred_fallthru
        _
      %p3156 = scmp.le.s32.totalorder 2, %s22
      // Predicated region
      $region127: #{_lambda_.3} parent=5 // pred_check
        %p3157 = pneg %p3156
      $region128: #{_lambda_.3} parent=5 // pred_check_branch
        %3159 = sbr.rel (%p3157) target = $region130
      $region129: #{_lambda_.3} parent=5 // pred_region
        %s3160 = ssub.s32 %s22, 2
      $region130: #{_lambda_.3} parent=5 // pred_fallthru
        _
    $region6: #{_lambda_.3} parent=1 // loop_footer
      %s26 = sadd.s32 1, %s22
    $region7: #{_lambda_.3} parent=1 // loop_footer_branch
      %21 = sbr.rel target = $region3
    $region8: #{_lambda_.3} parent=1 // loop_exit
      _
    %3161 = vsyncpa [#allocation5], 1
    %s3162 = scalar_lea.sflag [#allocation5], 1
    %3163 = vsyncpa %s3162, 1
  %3164 = vsyncmov [#allocation3]
  %s3165 = vpop.sfrf %3164
  %p3166 = scmp.eq.s32.totalorder %s3165, 0
  %p3167 = pneg %p3166
  %3169 = shalt.err (%p3167)

</llo_original>
